<compile_context>
chip_gen: v7x
topology: tpu7x:2x2x1
jax: 0.10.0
libtpu: 0.0.40
codegen_flags: <defaults>
</compile_context>

<pallas_src>
import functools
import math

import jax
import jax.numpy as jnp
from jax import lax
from jax.experimental import pallas as pl
from jax.experimental.pallas import tpu as pltpu

HIDDEN = 256
NUM_HEADS = 8
EPS = 1e-5          # PyTorch nn.LayerNorm default
NEG_SLOPE = 0.4     # F.leaky_relu(x, 0.4)


# ----------------------------- kernel helpers ------------------------------

def _layernorm(h, gamma, beta):
    mean = jnp.mean(h, axis=-1, keepdims=True)
    var = jnp.mean((h - mean) ** 2, axis=-1, keepdims=True)
    return (h - mean) * lax.rsqrt(var + EPS) * gamma + beta


def _leaky_relu(h):
    return jnp.where(h >= 0, h, NEG_SLOPE * h)


# ------------------------------ fused kernel --------------------------------

def _fused_kernel(x_ref, w1_ref, wqkv_ref, wo_ref, w2_ref,
                  vecs_ref, bqkv_ref, b2_ref, y_ref,
                  stk_scr, attn_scr,
                  *, num_heads, seq_len, batch_tile, approx_recip):
    f32 = jnp.float32
    nh = num_heads
    S = seq_len
    Bt = batch_tile
    H = w1_ref.shape[1]
    dh = H // nh
    r = S // nh
    mm = w1_ref.dtype                              # matmul operand dtype

    b1, g1, be1 = vecs_ref[0], vecs_ref[1], vecs_ref[2]
    bo, g2, be2 = vecs_ref[3], vecs_ref[4], vecs_ref[5]

    # ---- linear1 -> layernorm1 -> leaky_relu on the stacked (Bt*S, C) slab --
    x = x_ref[...]
    h = jnp.dot(x.astype(mm), w1_ref[...], preferred_element_type=f32) + b1
    h = _leaky_relu(_layernorm(h, g1, be1))        # (Bt*S, H) f32, residual

    # ---- fused q/k/v projection: one wide MXU push; columns are grouped per
    # lane block j as [q_j | k_j | v_j] (see pack_params) ---------------------
    qkv = (jnp.dot(h.astype(mm), wqkv_ref[...], preferred_element_type=f32)
           + bqkv_ref[0])                          # (Bt*S, 3H) f32

    # ---- per-head attention, torch C-order head split -----------------------
    # TODO(synk): for large S, switch the unrolled head loop to lax.fori_loop
    # and tile the softmax over key blocks (flash-style); untiled (S,S) scores
    # are fine at these sizes under the explicit 32 MiB VMEM budget.
    for b in range(Bt):
        base = b * S
        for hh in range(nh):
            rs = slice(base + hh * r, base + (hh + 1) * r)
            # head split: lane block j of the (r, 3H) slab -> rows [j*r,(j+1)*r)
            for j in range(nh):
                stk_scr[j * r:(j + 1) * r, :] = (
                    qkv[rs, j * 3 * dh:(j + 1) * 3 * dh].astype(mm))
            stacked = stk_scr[...]                 # (S, 3*dh)
            q_h = stacked[:, 0 * dh:1 * dh]        # softmax scale pre-folded
            k_h = stacked[:, 1 * dh:2 * dh]
            v_h = stacked[:, 2 * dh:3 * dh]

            s = lax.dot_general(q_h, k_h, (((1,), (1,)), ((), ())),
                                preferred_element_type=f32)      # (S, S)
            s = s - jnp.max(s, axis=-1, keepdims=True)
            p = jnp.exp(s)
            p = p * pl.reciprocal(jnp.sum(p, axis=-1, keepdims=True),
                                  approx=approx_recip)
            o_h = jnp.dot(p.astype(mm), v_h,
                          preferred_element_type=f32)            # (S, dh)

            # inverse split: rows [j*r,(j+1)*r) of o_h -> lane block j of the
            # output row slab; ONE full-width (r, H) store per head.
            slab_out = jnp.concatenate(
                [o_h[j * r:(j + 1) * r, :] for j in range(nh)], axis=1)
            attn_scr[rs, :] = slab_out.astype(mm)

    # ---- to_out -> +identity -> layernorm2 -> linear2 -> leaky_relu ---------
    o = jnp.dot(attn_scr[...], wo_ref[...], preferred_element_type=f32) + bo
    rsd = _layernorm(o + h, g2, be2)
    y = jnp.dot(rsd.astype(mm), w2_ref[...], preferred_element_type=f32) + b2_ref[0]
    y_ref[...] = _leaky_relu(y)


# ------------------------------ wrapper -------------------------------------

def _choose_batch_tile(batch, seq, target_rows=128):
    """Smallest divisor of `batch` whose slab reaches target_rows MXU rows; if
    none does, keep >=2 grid steps when possible (v7x megacore)."""
    divs = [d for d in range(1, batch + 1) if batch % d == 0]
    for d in divs:
        if d * seq >= target_rows:
            return d
    for d in reversed(divs):
        if batch // d >= 2:
            return d
    return divs[-1]


def pack_params(params, precise=False):
    """One-time repack of PyTorch-style params into the fused-kernel layout.

    * softmax scale folded into Wq / bq (zero runtime cost)
    * q/k/v weight columns interleaved per dh-wide lane block: [q_j | k_j | v_j]
    * matmul weights cast to bf16 unless precise=True (biases / LN vecs stay f32)
    """
    H, nh = HIDDEN, NUM_HEADS
    dh = H // nh
    scale = dh ** (-0.5)
    mm = jnp.float32 if precise else jnp.bfloat16

    wq, bq = params['wq'] * scale, params['bq'] * scale
    wk, bk = params['wk'], params['bk']
    wv, bv = params['wv'], params['bv']
    w_cols, b_cols = [], []
    for j in range(nh):
        sl = slice(j * dh, (j + 1) * dh)
        w_cols += [wq[:, sl], wk[:, sl], wv[:, sl]]
        b_cols += [bq[sl], bk[sl], bv[sl]]
    wqkv = jnp.concatenate(w_cols, axis=1)                 # (H, 3H), j-grouped
    bqkv = jnp.concatenate(b_cols).reshape(1, 3 * H)

    vecs = jnp.stack([params['b1'], params['g1'], params['be1'],
                      params['bo'], params['g2'], params['be2']], axis=0)
    return dict(w1=params['w1'].astype(mm), wqkv=wqkv.astype(mm),
                wo=params['wo'].astype(mm), w2=params['w2'].astype(mm),
                vecs=vecs.astype(jnp.float32),
                bqkv=bqkv.astype(jnp.float32),
                b2=params['b2'].reshape(1, -1).astype(jnp.float32))


def cond_upsampler_forward(x, packed):
    B, S, C = x.shape
    H, nh = HIDDEN, NUM_HEADS
    dh = H // nh
    T = packed['w2'].shape[1]
    mm = packed['w1'].dtype
    if S % nh != 0:
        # TODO(synk): ragged seq lengths (S % num_heads != 0) need an unfused
        # fallback -- the torch head slabs straddle row boundaries there.
        raise NotImplementedError("fused kernel assumes seq_len % num_heads == 0")

    Bt = _choose_batch_tile(B, S)
    rows = Bt * S
    x2d = x.reshape(B * S, C)        # free: (B,S,C) row-major is contiguous

    full = lambda shape: pl.BlockSpec(shape, lambda i: (0, 0))
    # TODO(synk): pl.Buffered(1) on the constant weight specs would reclaim the
    # redundant double-buffer once single-buffered constant blocks are reliable.

    y2d = pl.pallas_call(
        functools.partial(_fused_kernel, num_heads=nh, seq_len=S,
                          batch_tile=Bt,
                          approx_recip=(mm != jnp.float32)),
        grid=(B // Bt,),
        in_specs=[
            pl.BlockSpec((rows, C), lambda i: (i, 0)),           # x slab
            full((C, H)),                                        # w1
            full((H, 3 * H)),                                    # wqkv (fused, j-grouped)
            full((H, H)),                                        # wo
            full((H, T)),                                        # w2
            full((6, H)),                                        # b1,g1,be1,bo,g2,be2
            full((1, 3 * H)),                                    # bqkv
            full((1, T)),                                        # b2
        ],
        out_specs=pl.BlockSpec((rows, T), lambda i: (i, 0)),
        out_shape=jax.ShapeDtypeStruct((B * S, T), jnp.float32),
        scratch_shapes=[
            pltpu.VMEM((S, 3 * dh), mm),     # per-head q|k|v staging
            pltpu.VMEM((rows, H), mm),       # merged attention slab (lane dense)
        ],
        compiler_params=pltpu.CompilerParams(
            dimension_semantics=("parallel",),
            vmem_limit_bytes=32 * 1024 * 1024),
    )(x2d, packed['w1'], packed['wqkv'], packed['wo'], packed['w2'],
      packed['vecs'], packed['bqkv'], packed['b2'])
    return y2d.reshape(B, S, T)


# --------------------------- params & reference ------------------------------

def init_params(key, cond_length, target_dim):
    H = HIDDEN
    keys = jax.random.split(key, 10)

    def lin(k, fan_in, fan_out):
        kw, kb = jax.random.split(k)
        bound = 1.0 / math.sqrt(fan_in)
        w = jax.random.uniform(kw, (fan_in, fan_out), jnp.float32, -bound, bound)
        b = jax.random.uniform(kb, (fan_out,), jnp.float32, -bound, bound)
        return w, b

    w1, b1 = lin(keys[0], cond_length, H)
    wq, bq = lin(keys[1], H, H)
    wk, bk = lin(keys[2], H, H)
    wv, bv = lin(keys[3], H, H)
    wo, bo = lin(keys[4], H, H)
    w2, b2 = lin(keys[5], H, target_dim)
    g1 = 1.0 + 0.1 * jax.random.normal(keys[6], (H,), jnp.float32)
    be1 = 0.1 * jax.random.normal(keys[7], (H,), jnp.float32)
    g2 = 1.0 + 0.1 * jax.random.normal(keys[8], (H,), jnp.float32)
    be2 = 0.1 * jax.random.normal(keys[9], (H,), jnp.float32)
    return dict(w1=w1, b1=b1, g1=g1, be1=be1,
                wq=wq, bq=bq, wk=wk, bk=bk, wv=wv, bv=bv,
                wo=wo, bo=bo, g2=g2, be2=be2, w2=w2, b2=b2)


def reference_forward(x, params):
    """Pure-JAX mirror of the PyTorch forward (for verification)."""
    def ln(h, g, b):
        m = jnp.mean(h, -1, keepdims=True)
        v = jnp.mean((h - m) ** 2, -1, keepdims=True)
        return (h - m) / jnp.sqrt(v + EPS) * g + b

    def lrelu(h):
        return jnp.where(h >= 0, h, NEG_SLOPE * h)

    H, nh = HIDDEN, NUM_HEADS
    dh = H // nh
    h = x @ params['w1'] + params['b1']
    h = lrelu(ln(h, params['g1'], params['be1']))
    identity = h
    q = h @ params['wq'] + params['bq']
    k = h @ params['wk'] + params['bk']
    v = h @ params['wv'] + params['bv']
    q, k, v = (t.reshape(-1, nh, t.shape[1], t.shape[2] // nh) for t in (q, k, v))
    att = jnp.einsum('bhid,bhjd->bhij', q, k) * (dh ** (-0.5))
    att = jax.nn.softmax(att, axis=-1)
    o = jnp.einsum('bhij,bhjd->bhid', att, v).reshape(identity.shape)
    o = o @ params['wo'] + params['bo']
    r = ln(o + identity, params['g2'], params['be2'])
    y = r @ params['w2'] + params['b2']
    return lrelu(y)


# --------------------------------- main --------------------------------------

if __name__ == "__main__":
    def run_case(B, S, C, T, precise, atol, rtol, key):
        kx, kp = jax.random.split(key)
        x = jax.random.normal(kx, (B, S, C), jnp.float32)
        params = init_params(kp, C, T)
        packed = pack_params(params, precise=precise)
        y = jax.block_until_ready(cond_upsampler_forward(x, packed))
        y_ref = reference_forward(x, params)
        assert y.shape == (B, S, T), y.shape
        err = float(jnp.max(jnp.abs(y - y_ref)))
        assert jnp.allclose(y, y_ref, atol=atol, rtol=rtol), (B, S, precise, err)
        return err

    k1, k2, k3 = jax.random.split(jax.random.PRNGKey(0), 3)
    # exact-math (f32 matmul) path at the reference shape
    run_case(2, 8, 16, 32, True, 5e-4, 5e-4, k1)
    # exact-math path with r = S/num_heads > 1 and a batched (Bt=2) grid step:
    # exercises the non-trivial torch head permutation and its inverse
    run_case(4, 64, 16, 32, True, 5e-4, 5e-4, k2)
    # default fast path: bf16 matmul operands, f32 accumulation
    run_case(2, 8, 16, 32, False, 1e-1, 1e-1, k3)
    print("KERNEL_OK")
</pallas_src>

<mosaic_0001>
module attributes {stable_mosaic.version = 11 : i64} {
  func.func @_fused_kernel(%arg0: i32, %arg1: memref<8x16xf32, #tpu.memory_space<vmem>>, %arg2: memref<16x256xf32, #tpu.memory_space<vmem>>, %arg3: memref<256x768xf32, #tpu.memory_space<vmem>>, %arg4: memref<256x256xf32, #tpu.memory_space<vmem>>, %arg5: memref<256x32xf32, #tpu.memory_space<vmem>>, %arg6: memref<6x256xf32, #tpu.memory_space<vmem>>, %arg7: memref<1x768xf32, #tpu.memory_space<vmem>>, %arg8: memref<1x32xf32, #tpu.memory_space<vmem>>, %arg9: memref<8x32xf32, #tpu.memory_space<vmem>>, %arg10: memref<8x96xf32, #tpu.memory_space<vmem>>, %arg11: memref<8x256xf32, #tpu.memory_space<vmem>>) attributes {dimension_semantics = [#tpu.dimension_semantics<parallel>], iteration_bounds = array<i64: 2>, scalar_prefetch = 0 : i64, scratch_operands = 2 : i64, tpu.core_type = #tpu.core_type<tc>, window_params = [{transform_indices = @transform_0, window_bounds = array<i64: 8, 16>}, {pipeline_mode = #tpu.pipeline_mode<synchronous>, transform_indices = @transform_1, window_bounds = array<i64: 16, 256>}, {pipeline_mode = #tpu.pipeline_mode<synchronous>, transform_indices = @transform_2, window_bounds = array<i64: 256, 768>}, {pipeline_mode = #tpu.pipeline_mode<synchronous>, transform_indices = @transform_3, window_bounds = array<i64: 256, 256>}, {pipeline_mode = #tpu.pipeline_mode<synchronous>, transform_indices = @transform_4, window_bounds = array<i64: 256, 32>}, {pipeline_mode = #tpu.pipeline_mode<synchronous>, transform_indices = @transform_5, window_bounds = array<i64: 6, 256>}, {pipeline_mode = #tpu.pipeline_mode<synchronous>, transform_indices = @transform_6, window_bounds = array<i64: 1, 768>}, {pipeline_mode = #tpu.pipeline_mode<synchronous>, transform_indices = @transform_7, window_bounds = array<i64: 1, 32>}, {transform_indices = @transform_8, window_bounds = array<i64: 8, 32>}]} {
    %c0 = arith.constant 0 : index
    %c0_0 = arith.constant 0 : index
    %0 = vector.load %arg6[%c0, %c0_0] : memref<6x256xf32, #tpu.memory_space<vmem>>, vector<1x256xf32>
    %1 = vector.shape_cast %0 : vector<1x256xf32> to vector<256xf32>
    %c1 = arith.constant 1 : index
    %c0_1 = arith.constant 0 : index
    %2 = vector.load %arg6[%c1, %c0_1] : memref<6x256xf32, #tpu.memory_space<vmem>>, vector<1x256xf32>
    %3 = vector.shape_cast %2 : vector<1x256xf32> to vector<256xf32>
    %c2 = arith.constant 2 : index
    %c0_2 = arith.constant 0 : index
    %4 = vector.load %arg6[%c2, %c0_2] : memref<6x256xf32, #tpu.memory_space<vmem>>, vector<1x256xf32>
    %5 = vector.shape_cast %4 : vector<1x256xf32> to vector<256xf32>
    %c3 = arith.constant 3 : index
    %c0_3 = arith.constant 0 : index
    %6 = vector.load %arg6[%c3, %c0_3] : memref<6x256xf32, #tpu.memory_space<vmem>>, vector<1x256xf32>
    %7 = vector.shape_cast %6 : vector<1x256xf32> to vector<256xf32>
    %c4 = arith.constant 4 : index
    %c0_4 = arith.constant 0 : index
    %8 = vector.load %arg6[%c4, %c0_4] : memref<6x256xf32, #tpu.memory_space<vmem>>, vector<1x256xf32>
    %9 = vector.shape_cast %8 : vector<1x256xf32> to vector<256xf32>
    %c5 = arith.constant 5 : index
    %c0_5 = arith.constant 0 : index
    %10 = vector.load %arg6[%c5, %c0_5] : memref<6x256xf32, #tpu.memory_space<vmem>>, vector<1x256xf32>
    %11 = vector.shape_cast %10 : vector<1x256xf32> to vector<256xf32>
    %c0_6 = arith.constant 0 : index
    %c0_7 = arith.constant 0 : index
    %12 = vector.load %arg1[%c0_6, %c0_7] : memref<8x16xf32, #tpu.memory_space<vmem>>, vector<8x16xf32>
    %c0_8 = arith.constant 0 : index
    %c0_9 = arith.constant 0 : index
    %13 = vector.load %arg2[%c0_8, %c0_9] : memref<16x256xf32, #tpu.memory_space<vmem>>, vector<16x256xf32>
    %cst = arith.constant dense<0.000000e+00> : vector<8x256xf32>
    %14 = tpu.matmul %12, %13, %cst {dimension_numbers = #tpu.dot_dimension_numbers<[1], [0], [0], [1], [0, 0, 1, 1], [], []>} : vector<8x16xf32>, vector<16x256xf32>, vector<8x256xf32> -> vector<8x256xf32>
    %15 = vector.shape_cast %1 : vector<256xf32> to vector<1x256xf32>
    %16 = vector.broadcast %15 : vector<1x256xf32> to vector<8x256xf32>
    %17 = arith.addf %14, %16 : vector<8x256xf32>
    %cst_10 = arith.constant dense<0.000000e+00> : vector<8xf32>
    %18 = vector.multi_reduction <add>, %17, %cst_10 [1] : vector<8x256xf32> to vector<8xf32>
    %19 = vector.shape_cast %18 : vector<8xf32> to vector<8x1xf32>
    %cst_11 = arith.constant 2.560000e+02 : f32
    %20 = vector.broadcast %cst_11 : f32 to vector<8x1xf32>
    %21 = arith.divf %19, %20 : vector<8x1xf32>
    %22 = vector.broadcast %21 : vector<8x1xf32> to vector<8x256xf32>
    %23 = arith.subf %17, %22 : vector<8x256xf32>
    %24 = arith.mulf %23, %23 : vector<8x256xf32>
    %cst_12 = arith.constant dense<0.000000e+00> : vector<8xf32>
    %25 = vector.multi_reduction <add>, %24, %cst_12 [1] : vector<8x256xf32> to vector<8xf32>
    %26 = vector.shape_cast %25 : vector<8xf32> to vector<8x1xf32>
    %cst_13 = arith.constant 2.560000e+02 : f32
    %27 = vector.broadcast %cst_13 : f32 to vector<8x1xf32>
    %28 = arith.divf %26, %27 : vector<8x1xf32>
    %29 = vector.broadcast %21 : vector<8x1xf32> to vector<8x256xf32>
    %30 = arith.subf %17, %29 : vector<8x256xf32>
    %cst_14 = arith.constant 9.99999974E-6 : f32
    %31 = vector.broadcast %cst_14 : f32 to vector<8x1xf32>
    %32 = arith.addf %28, %31 : vector<8x1xf32>
    %33 = math.rsqrt %32 : vector<8x1xf32>
    %34 = vector.broadcast %33 : vector<8x1xf32> to vector<8x256xf32>
    %35 = arith.mulf %30, %34 : vector<8x256xf32>
    %36 = vector.shape_cast %3 : vector<256xf32> to vector<1x256xf32>
    %37 = vector.broadcast %36 : vector<1x256xf32> to vector<8x256xf32>
    %38 = arith.mulf %35, %37 : vector<8x256xf32>
    %39 = vector.shape_cast %5 : vector<256xf32> to vector<1x256xf32>
    %40 = vector.broadcast %39 : vector<1x256xf32> to vector<8x256xf32>
    %41 = arith.addf %38, %40 : vector<8x256xf32>
    %cst_15 = arith.constant 0.000000e+00 : f32
    %42 = vector.broadcast %cst_15 : f32 to vector<8x256xf32>
    %43 = arith.cmpf oge, %41, %42 : vector<8x256xf32>
    %cst_16 = arith.constant 4.000000e-01 : f32
    %44 = vector.broadcast %cst_16 : f32 to vector<8x256xf32>
    %45 = arith.mulf %44, %41 : vector<8x256xf32>
    %46 = arith.select %43, %41, %45 : vector<8x256xi1>, vector<8x256xf32>
    %c0_17 = arith.constant 0 : index
    %c0_18 = arith.constant 0 : index
    %47 = vector.load %arg3[%c0_17, %c0_18] : memref<256x768xf32, #tpu.memory_space<vmem>>, vector<256x768xf32>
    %cst_19 = arith.constant dense<0.000000e+00> : vector<8x768xf32>
    %48 = tpu.matmul %46, %47, %cst_19 {dimension_numbers = #tpu.dot_dimension_numbers<[1], [0], [0], [1], [0, 0, 1, 1], [], []>} : vector<8x256xf32>, vector<256x768xf32>, vector<8x768xf32> -> vector<8x768xf32>
    %c0_20 = arith.constant 0 : index
    %c0_21 = arith.constant 0 : index
    %49 = vector.load %arg7[%c0_20, %c0_21] : memref<1x768xf32, #tpu.memory_space<vmem>>, vector<1x768xf32>
    %50 = vector.shape_cast %49 : vector<1x768xf32> to vector<768xf32>
    %51 = vector.shape_cast %50 : vector<768xf32> to vector<1x768xf32>
    %52 = vector.broadcast %51 : vector<1x768xf32> to vector<8x768xf32>
    %53 = arith.addf %48, %52 : vector<8x768xf32>
    %54 = vector.extract_strided_slice %53 {offsets = [0, 0], sizes = [1, 96], strides = [1, 1]} : vector<8x768xf32> to vector<1x96xf32>
    %c0_22 = arith.constant 0 : index
    %c0_23 = arith.constant 0 : index
    %55 = vector.load %arg10[%c0_22, %c0_23] : memref<8x96xf32, #tpu.memory_space<vmem>>, vector<1x96xf32>
    tpu.vector_store %arg10[%c0_22, %c0_23], %54 {strides = array<i32>} : memref<8x96xf32, #tpu.memory_space<vmem>>, vector<1x96xf32>,
    %56 = vector.extract_strided_slice %53 {offsets = [0, 96], sizes = [1, 96], strides = [1, 1]} : vector<8x768xf32> to vector<1x96xf32>
    %c1_24 = arith.constant 1 : index
    %c0_25 = arith.constant 0 : index
    %57 = vector.load %arg10[%c1_24, %c0_25] : memref<8x96xf32, #tpu.memory_space<vmem>>, vector<1x96xf32>
    tpu.vector_store %arg10[%c1_24, %c0_25], %56 {strides = array<i32>} : memref<8x96xf32, #tpu.memory_space<vmem>>, vector<1x96xf32>,
    %58 = vector.extract_strided_slice %53 {offsets = [0, 192], sizes = [1, 96], strides = [1, 1]} : vector<8x768xf32> to vector<1x96xf32>
    %c2_26 = arith.constant 2 : index
    %c0_27 = arith.constant 0 : index
    %59 = vector.load %arg10[%c2_26, %c0_27] : memref<8x96xf32, #tpu.memory_space<vmem>>, vector<1x96xf32>
    tpu.vector_store %arg10[%c2_26, %c0_27], %58 {strides = array<i32>} : memref<8x96xf32, #tpu.memory_space<vmem>>, vector<1x96xf32>,
    %60 = vector.extract_strided_slice %53 {offsets = [0, 288], sizes = [1, 96], strides = [1, 1]} : vector<8x768xf32> to vector<1x96xf32>
    %c3_28 = arith.constant 3 : index
    %c0_29 = arith.constant 0 : index
    %61 = vector.load %arg10[%c3_28, %c0_29] : memref<8x96xf32, #tpu.memory_space<vmem>>, vector<1x96xf32>
    tpu.vector_store %arg10[%c3_28, %c0_29], %60 {strides = array<i32>} : memref<8x96xf32, #tpu.memory_space<vmem>>, vector<1x96xf32>,
    %62 = vector.extract_strided_slice %53 {offsets = [0, 384], sizes = [1, 96], strides = [1, 1]} : vector<8x768xf32> to vector<1x96xf32>
    %c4_30 = arith.constant 4 : index
    %c0_31 = arith.constant 0 : index
    %63 = vector.load %arg10[%c4_30, %c0_31] : memref<8x96xf32, #tpu.memory_space<vmem>>, vector<1x96xf32>
    tpu.vector_store %arg10[%c4_30, %c0_31], %62 {strides = array<i32>} : memref<8x96xf32, #tpu.memory_space<vmem>>, vector<1x96xf32>,
    %64 = vector.extract_strided_slice %53 {offsets = [0, 480], sizes = [1, 96], strides = [1, 1]} : vector<8x768xf32> to vector<1x96xf32>
    %c5_32 = arith.constant 5 : index
    %c0_33 = arith.constant 0 : index
    %65 = vector.load %arg10[%c5_32, %c0_33] : memref<8x96xf32, #tpu.memory_space<vmem>>, vector<1x96xf32>
    tpu.vector_store %arg10[%c5_32, %c0_33], %64 {strides = array<i32>} : memref<8x96xf32, #tpu.memory_space<vmem>>, vector<1x96xf32>,
    %66 = vector.extract_strided_slice %53 {offsets = [0, 576], sizes = [1, 96], strides = [1, 1]} : vector<8x768xf32> to vector<1x96xf32>
    %c6 = arith.constant 6 : index
    %c0_34 = arith.constant 0 : index
    %67 = vector.load %arg10[%c6, %c0_34] : memref<8x96xf32, #tpu.memory_space<vmem>>, vector<1x96xf32>
    tpu.vector_store %arg10[%c6, %c0_34], %66 {strides = array<i32>} : memref<8x96xf32, #tpu.memory_space<vmem>>, vector<1x96xf32>,
    %68 = vector.extract_strided_slice %53 {offsets = [0, 672], sizes = [1, 96], strides = [1, 1]} : vector<8x768xf32> to vector<1x96xf32>
    %c7 = arith.constant 7 : index
    %c0_35 = arith.constant 0 : index
    %69 = vector.load %arg10[%c7, %c0_35] : memref<8x96xf32, #tpu.memory_space<vmem>>, vector<1x96xf32>
    tpu.vector_store %arg10[%c7, %c0_35], %68 {strides = array<i32>} : memref<8x96xf32, #tpu.memory_space<vmem>>, vector<1x96xf32>,
    %c0_36 = arith.constant 0 : index
    %c0_37 = arith.constant 0 : index
    %70 = vector.load %arg10[%c0_36, %c0_37] : memref<8x96xf32, #tpu.memory_space<vmem>>, vector<8x96xf32>
    %71 = vector.extract_strided_slice %70 {offsets = [0, 0], sizes = [8, 32], strides = [1, 1]} : vector<8x96xf32> to vector<8x32xf32>
    %72 = vector.extract_strided_slice %70 {offsets = [0, 32], sizes = [8, 32], strides = [1, 1]} : vector<8x96xf32> to vector<8x32xf32>
    %73 = vector.extract_strided_slice %70 {offsets = [0, 64], sizes = [8, 32], strides = [1, 1]} : vector<8x96xf32> to vector<8x32xf32>
    %cst_38 = arith.constant dense<0.000000e+00> : vector<8x8xf32>
    %74 = tpu.matmul %71, %72, %cst_38 {dimension_numbers = #tpu.dot_dimension_numbers<[1], [1], [0], [0], [0, 0, 1, 0], [], []>} : vector<8x32xf32>, vector<8x32xf32>, vector<8x8xf32> -> vector<8x8xf32>
    %cst_39 = arith.constant dense<0xFF800000> : vector<8xf32>
    %75 = vector.multi_reduction <maximumf>, %74, %cst_39 [1] : vector<8x8xf32> to vector<8xf32>
    %76 = vector.shape_cast %75 : vector<8xf32> to vector<8x1xf32>
    %77 = vector.broadcast %76 : vector<8x1xf32> to vector<8x8xf32>
    %78 = arith.subf %74, %77 : vector<8x8xf32>
    %79 = math.exp %78 : vector<8x8xf32>
    %cst_40 = arith.constant dense<0.000000e+00> : vector<8xf32>
    %80 = vector.multi_reduction <add>, %79, %cst_40 [1] : vector<8x8xf32> to vector<8xf32>
    %81 = vector.shape_cast %80 : vector<8xf32> to vector<8x1xf32>
    %82 = tpu.reciprocal %81 : vector<8x1xf32> -> vector<8x1xf32>
    %83 = vector.broadcast %82 : vector<8x1xf32> to vector<8x8xf32>
    %84 = arith.mulf %79, %83 : vector<8x8xf32>
    %cst_41 = arith.constant dense<0.000000e+00> : vector<8x32xf32>
    %85 = tpu.matmul %84, %73, %cst_41 {dimension_numbers = #tpu.dot_dimension_numbers<[1], [0], [0], [1], [0, 0, 1, 1], [], []>} : vector<8x8xf32>, vector<8x32xf32>, vector<8x32xf32> -> vector<8x32xf32>
    %86 = vector.extract_strided_slice %85 {offsets = [0, 0], sizes = [1, 32], strides = [1, 1]} : vector<8x32xf32> to vector<1x32xf32>
    %87 = vector.extract_strided_slice %85 {offsets = [1, 0], sizes = [1, 32], strides = [1, 1]} : vector<8x32xf32> to vector<1x32xf32>
    %88 = vector.extract_strided_slice %85 {offsets = [2, 0], sizes = [1, 32], strides = [1, 1]} : vector<8x32xf32> to vector<1x32xf32>
    %89 = vector.extract_strided_slice %85 {offsets = [3, 0], sizes = [1, 32], strides = [1, 1]} : vector<8x32xf32> to vector<1x32xf32>
    %90 = vector.extract_strided_slice %85 {offsets = [4, 0], sizes = [1, 32], strides = [1, 1]} : vector<8x32xf32> to vector<1x32xf32>
    %91 = vector.extract_strided_slice %85 {offsets = [5, 0], sizes = [1, 32], strides = [1, 1]} : vector<8x32xf32> to vector<1x32xf32>
    %92 = vector.extract_strided_slice %85 {offsets = [6, 0], sizes = [1, 32], strides = [1, 1]} : vector<8x32xf32> to vector<1x32xf32>
    %93 = vector.extract_strided_slice %85 {offsets = [7, 0], sizes = [1, 32], strides = [1, 1]} : vector<8x32xf32> to vector<1x32xf32>
    %94 = tpu.concatenate %86, %87, %88, %89, %90, %91, %92, %93 in 1 : vector<1x32xf32>, vector<1x32xf32>, vector<1x32xf32>, vector<1x32xf32>, vector<1x32xf32>, vector<1x32xf32>, vector<1x32xf32>, vector<1x32xf32> -> vector<1x256xf32>
    %c0_42 = arith.constant 0 : index
    %c0_43 = arith.constant 0 : index
    %95 = vector.load %arg11[%c0_42, %c0_43] : memref<8x256xf32, #tpu.memory_space<vmem>>, vector<1x256xf32>
    tpu.vector_store %arg11[%c0_42, %c0_43], %94 {strides = array<i32>} : memref<8x256xf32, #tpu.memory_space<vmem>>, vector<1x256xf32>,
    %96 = vector.extract_strided_slice %53 {offsets = [1, 0], sizes = [1, 96], strides = [1, 1]} : vector<8x768xf32> to vector<1x96xf32>
    %c0_44 = arith.constant 0 : index
    %c0_45 = arith.constant 0 : index
    %97 = vector.load %arg10[%c0_44, %c0_45] : memref<8x96xf32, #tpu.memory_space<vmem>>, vector<1x96xf32>
    tpu.vector_store %arg10[%c0_44, %c0_45], %96 {strides = array<i32>} : memref<8x96xf32, #tpu.memory_space<vmem>>, vector<1x96xf32>,
    %98 = vector.extract_strided_slice %53 {offsets = [1, 96], sizes = [1, 96], strides = [1, 1]} : vector<8x768xf32> to vector<1x96xf32>
    %c1_46 = arith.constant 1 : index
    %c0_47 = arith.constant 0 : index
    %99 = vector.load %arg10[%c1_46, %c0_47] : memref<8x96xf32, #tpu.memory_space<vmem>>, vector<1x96xf32>
    tpu.vector_store %arg10[%c1_46, %c0_47], %98 {strides = array<i32>} : memref<8x96xf32, #tpu.memory_space<vmem>>, vector<1x96xf32>,
    %100 = vector.extract_strided_slice %53 {offsets = [1, 192], sizes = [1, 96], strides = [1, 1]} : vector<8x768xf32> to vector<1x96xf32>
    %c2_48 = arith.constant 2 : index
    %c0_49 = arith.constant 0 : index
    %101 = vector.load %arg10[%c2_48, %c0_49] : memref<8x96xf32, #tpu.memory_space<vmem>>, vector<1x96xf32>
    tpu.vector_store %arg10[%c2_48, %c0_49], %100 {strides = array<i32>} : memref<8x96xf32, #tpu.memory_space<vmem>>, vector<1x96xf32>,
    %102 = vector.extract_strided_slice %53 {offsets = [1, 288], sizes = [1, 96], strides = [1, 1]} : vector<8x768xf32> to vector<1x96xf32>
    %c3_50 = arith.constant 3 : index
    %c0_51 = arith.constant 0 : index
    %103 = vector.load %arg10[%c3_50, %c0_51] : memref<8x96xf32, #tpu.memory_space<vmem>>, vector<1x96xf32>
    tpu.vector_store %arg10[%c3_50, %c0_51], %102 {strides = array<i32>} : memref<8x96xf32, #tpu.memory_space<vmem>>, vector<1x96xf32>,
    %104 = vector.extract_strided_slice %53 {offsets = [1, 384], sizes = [1, 96], strides = [1, 1]} : vector<8x768xf32> to vector<1x96xf32>
    %c4_52 = arith.constant 4 : index
    %c0_53 = arith.constant 0 : index
    %105 = vector.load %arg10[%c4_52, %c0_53] : memref<8x96xf32, #tpu.memory_space<vmem>>, vector<1x96xf32>
    tpu.vector_store %arg10[%c4_52, %c0_53], %104 {strides = array<i32>} : memref<8x96xf32, #tpu.memory_space<vmem>>, vector<1x96xf32>,
    %106 = vector.extract_strided_slice %53 {offsets = [1, 480], sizes = [1, 96], strides = [1, 1]} : vector<8x768xf32> to vector<1x96xf32>
    %c5_54 = arith.constant 5 : index
    %c0_55 = arith.constant 0 : index
    %107 = vector.load %arg10[%c5_54, %c0_55] : memref<8x96xf32, #tpu.memory_space<vmem>>, vector<1x96xf32>
    tpu.vector_store %arg10[%c5_54, %c0_55], %106 {strides = array<i32>} : memref<8x96xf32, #tpu.memory_space<vmem>>, vector<1x96xf32>,
    %108 = vector.extract_strided_slice %53 {offsets = [1, 576], sizes = [1, 96], strides = [1, 1]} : vector<8x768xf32> to vector<1x96xf32>
    %c6_56 = arith.constant 6 : index
    %c0_57 = arith.constant 0 : index
    %109 = vector.load %arg10[%c6_56, %c0_57] : memref<8x96xf32, #tpu.memory_space<vmem>>, vector<1x96xf32>
    tpu.vector_store %arg10[%c6_56, %c0_57], %108 {strides = array<i32>} : memref<8x96xf32, #tpu.memory_space<vmem>>, vector<1x96xf32>,
    %110 = vector.extract_strided_slice %53 {offsets = [1, 672], sizes = [1, 96], strides = [1, 1]} : vector<8x768xf32> to vector<1x96xf32>
    %c7_58 = arith.constant 7 : index
    %c0_59 = arith.constant 0 : index
    %111 = vector.load %arg10[%c7_58, %c0_59] : memref<8x96xf32, #tpu.memory_space<vmem>>, vector<1x96xf32>
    tpu.vector_store %arg10[%c7_58, %c0_59], %110 {strides = array<i32>} : memref<8x96xf32, #tpu.memory_space<vmem>>, vector<1x96xf32>,
    %c0_60 = arith.constant 0 : index
    %c0_61 = arith.constant 0 : index
    %112 = vector.load %arg10[%c0_60, %c0_61] : memref<8x96xf32, #tpu.memory_space<vmem>>, vector<8x96xf32>
    %113 = vector.extract_strided_slice %112 {offsets = [0, 0], sizes = [8, 32], strides = [1, 1]} : vector<8x96xf32> to vector<8x32xf32>
    %114 = vector.extract_strided_slice %112 {offsets = [0, 32], sizes = [8, 32], strides = [1, 1]} : vector<8x96xf32> to vector<8x32xf32>
    %115 = vector.extract_strided_slice %112 {offsets = [0, 64], sizes = [8, 32], strides = [1, 1]} : vector<8x96xf32> to vector<8x32xf32>
    %cst_62 = arith.constant dense<0.000000e+00> : vector<8x8xf32>
    %116 = tpu.matmul %113, %114, %cst_62 {dimension_numbers = #tpu.dot_dimension_numbers<[1], [1], [0], [0], [0, 0, 1, 0], [], []>} : vector<8x32xf32>, vector<8x32xf32>, vector<8x8xf32> -> vector<8x8xf32>
    %cst_63 = arith.constant dense<0xFF800000> : vector<8xf32>
    %117 = vector.multi_reduction <maximumf>, %116, %cst_63 [1] : vector<8x8xf32> to vector<8xf32>
    %118 = vector.shape_cast %117 : vector<8xf32> to vector<8x1xf32>
    %119 = vector.broadcast %118 : vector<8x1xf32> to vector<8x8xf32>
    %120 = arith.subf %116, %119 : vector<8x8xf32>
    %121 = math.exp %120 : vector<8x8xf32>
    %cst_64 = arith.constant dense<0.000000e+00> : vector<8xf32>
    %122 = vector.multi_reduction <add>, %121, %cst_64 [1] : vector<8x8xf32> to vector<8xf32>
    %123 = vector.shape_cast %122 : vector<8xf32> to vector<8x1xf32>
    %124 = tpu.reciprocal %123 : vector<8x1xf32> -> vector<8x1xf32>
    %125 = vector.broadcast %124 : vector<8x1xf32> to vector<8x8xf32>
    %126 = arith.mulf %121, %125 : vector<8x8xf32>
    %cst_65 = arith.constant dense<0.000000e+00> : vector<8x32xf32>
    %127 = tpu.matmul %126, %115, %cst_65 {dimension_numbers = #tpu.dot_dimension_numbers<[1], [0], [0], [1], [0, 0, 1, 1], [], []>} : vector<8x8xf32>, vector<8x32xf32>, vector<8x32xf32> -> vector<8x32xf32>
    %128 = vector.extract_strided_slice %127 {offsets = [0, 0], sizes = [1, 32], strides = [1, 1]} : vector<8x32xf32> to vector<1x32xf32>
    %129 = vector.extract_strided_slice %127 {offsets = [1, 0], sizes = [1, 32], strides = [1, 1]} : vector<8x32xf32> to vector<1x32xf32>
    %130 = vector.extract_strided_slice %127 {offsets = [2, 0], sizes = [1, 32], strides = [1, 1]} : vector<8x32xf32> to vector<1x32xf32>
    %131 = vector.extract_strided_slice %127 {offsets = [3, 0], sizes = [1, 32], strides = [1, 1]} : vector<8x32xf32> to vector<1x32xf32>
    %132 = vector.extract_strided_slice %127 {offsets = [4, 0], sizes = [1, 32], strides = [1, 1]} : vector<8x32xf32> to vector<1x32xf32>
    %133 = vector.extract_strided_slice %127 {offsets = [5, 0], sizes = [1, 32], strides = [1, 1]} : vector<8x32xf32> to vector<1x32xf32>
    %134 = vector.extract_strided_slice %127 {offsets = [6, 0], sizes = [1, 32], strides = [1, 1]} : vector<8x32xf32> to vector<1x32xf32>
    %135 = vector.extract_strided_slice %127 {offsets = [7, 0], sizes = [1, 32], strides = [1, 1]} : vector<8x32xf32> to vector<1x32xf32>
    %136 = tpu.concatenate %128, %129, %130, %131, %132, %133, %134, %135 in 1 : vector<1x32xf32>, vector<1x32xf32>, vector<1x32xf32>, vector<1x32xf32>, vector<1x32xf32>, vector<1x32xf32>, vector<1x32xf32>, vector<1x32xf32> -> vector<1x256xf32>
    %c1_66 = arith.constant 1 : index
    %c0_67 = arith.constant 0 : index
    %137 = vector.load %arg11[%c1_66, %c0_67] : memref<8x256xf32, #tpu.memory_space<vmem>>, vector<1x256xf32>
    tpu.vector_store %arg11[%c1_66, %c0_67], %136 {strides = array<i32>} : memref<8x256xf32, #tpu.memory_space<vmem>>, vector<1x256xf32>,
    %138 = vector.extract_strided_slice %53 {offsets = [2, 0], sizes = [1, 96], strides = [1, 1]} : vector<8x768xf32> to vector<1x96xf32>
    %c0_68 = arith.constant 0 : index
    %c0_69 = arith.constant 0 : index
    %139 = vector.load %arg10[%c0_68, %c0_69] : memref<8x96xf32, #tpu.memory_space<vmem>>, vector<1x96xf32>
    tpu.vector_store %arg10[%c0_68, %c0_69], %138 {strides = array<i32>} : memref<8x96xf32, #tpu.memory_space<vmem>>, vector<1x96xf32>,
    %140 = vector.extract_strided_slice %53 {offsets = [2, 96], sizes = [1, 96], strides = [1, 1]} : vector<8x768xf32> to vector<1x96xf32>
    %c1_70 = arith.constant 1 : index
    %c0_71 = arith.constant 0 : index
    %141 = vector.load %arg10[%c1_70, %c0_71] : memref<8x96xf32, #tpu.memory_space<vmem>>, vector<1x96xf32>
    tpu.vector_store %arg10[%c1_70, %c0_71], %140 {strides = array<i32>} : memref<8x96xf32, #tpu.memory_space<vmem>>, vector<1x96xf32>,
    %142 = vector.extract_strided_slice %53 {offsets = [2, 192], sizes = [1, 96], strides = [1, 1]} : vector<8x768xf32> to vector<1x96xf32>
    %c2_72 = arith.constant 2 : index
    %c0_73 = arith.constant 0 : index
    %143 = vector.load %arg10[%c2_72, %c0_73] : memref<8x96xf32, #tpu.memory_space<vmem>>, vector<1x96xf32>
    tpu.vector_store %arg10[%c2_72, %c0_73], %142 {strides = array<i32>} : memref<8x96xf32, #tpu.memory_space<vmem>>, vector<1x96xf32>,
    %144 = vector.extract_strided_slice %53 {offsets = [2, 288], sizes = [1, 96], strides = [1, 1]} : vector<8x768xf32> to vector<1x96xf32>
    %c3_74 = arith.constant 3 : index
    %c0_75 = arith.constant 0 : index
    %145 = vector.load %arg10[%c3_74, %c0_75] : memref<8x96xf32, #tpu.memory_space<vmem>>, vector<1x96xf32>
    tpu.vector_store %arg10[%c3_74, %c0_75], %144 {strides = array<i32>} : memref<8x96xf32, #tpu.memory_space<vmem>>, vector<1x96xf32>,
    %146 = vector.extract_strided_slice %53 {offsets = [2, 384], sizes = [1, 96], strides = [1, 1]} : vector<8x768xf32> to vector<1x96xf32>
    %c4_76 = arith.constant 4 : index
    %c0_77 = arith.constant 0 : index
    %147 = vector.load %arg10[%c4_76, %c0_77] : memref<8x96xf32, #tpu.memory_space<vmem>>, vector<1x96xf32>
    tpu.vector_store %arg10[%c4_76, %c0_77], %146 {strides = array<i32>} : memref<8x96xf32, #tpu.memory_space<vmem>>, vector<1x96xf32>,
    %148 = vector.extract_strided_slice %53 {offsets = [2, 480], sizes = [1, 96], strides = [1, 1]} : vector<8x768xf32> to vector<1x96xf32>
    %c5_78 = arith.constant 5 : index
    %c0_79 = arith.constant 0 : index
    %149 = vector.load %arg10[%c5_78, %c0_79] : memref<8x96xf32, #tpu.memory_space<vmem>>, vector<1x96xf32>
    tpu.vector_store %arg10[%c5_78, %c0_79], %148 {strides = array<i32>} : memref<8x96xf32, #tpu.memory_space<vmem>>, vector<1x96xf32>,
    %150 = vector.extract_strided_slice %53 {offsets = [2, 576], sizes = [1, 96], strides = [1, 1]} : vector<8x768xf32> to vector<1x96xf32>
    %c6_80 = arith.constant 6 : index
    %c0_81 = arith.constant 0 : index
    %151 = vector.load %arg10[%c6_80, %c0_81] : memref<8x96xf32, #tpu.memory_space<vmem>>, vector<1x96xf32>
    tpu.vector_store %arg10[%c6_80, %c0_81], %150 {strides = array<i32>} : memref<8x96xf32, #tpu.memory_space<vmem>>, vector<1x96xf32>,
    %152 = vector.extract_strided_slice %53 {offsets = [2, 672], sizes = [1, 96], strides = [1, 1]} : vector<8x768xf32> to vector<1x96xf32>
    %c7_82 = arith.constant 7 : index
    %c0_83 = arith.constant 0 : index
    %153 = vector.load %arg10[%c7_82, %c0_83] : memref<8x96xf32, #tpu.memory_space<vmem>>, vector<1x96xf32>
    tpu.vector_store %arg10[%c7_82, %c0_83], %152 {strides = array<i32>} : memref<8x96xf32, #tpu.memory_space<vmem>>, vector<1x96xf32>,
    %c0_84 = arith.constant 0 : index
    %c0_85 = arith.constant 0 : index
    %154 = vector.load %arg10[%c0_84, %c0_85] : memref<8x96xf32, #tpu.memory_space<vmem>>, vector<8x96xf32>
    %155 = vector.extract_strided_slice %154 {offsets = [0, 0], sizes = [8, 32], strides = [1, 1]} : vector<8x96xf32> to vector<8x32xf32>
    %156 = vector.extract_strided_slice %154 {offsets = [0, 32], sizes = [8, 32], strides = [1, 1]} : vector<8x96xf32> to vector<8x32xf32>
    %157 = vector.extract_strided_slice %154 {offsets = [0, 64], sizes = [8, 32], strides = [1, 1]} : vector<8x96xf32> to vector<8x32xf32>
    %cst_86 = arith.constant dense<0.000000e+00> : vector<8x8xf32>
    %158 = tpu.matmul %155, %156, %cst_86 {dimension_numbers = #tpu.dot_dimension_numbers<[1], [1], [0], [0], [0, 0, 1, 0], [], []>} : vector<8x32xf32>, vector<8x32xf32>, vector<8x8xf32> -> vector<8x8xf32>
    %cst_87 = arith.constant dense<0xFF800000> : vector<8xf32>
    %159 = vector.multi_reduction <maximumf>, %158, %cst_87 [1] : vector<8x8xf32> to vector<8xf32>
    %160 = vector.shape_cast %159 : vector<8xf32> to vector<8x1xf32>
    %161 = vector.broadcast %160 : vector<8x1xf32> to vector<8x8xf32>
    %162 = arith.subf %158, %161 : vector<8x8xf32>
    %163 = math.exp %162 : vector<8x8xf32>
    %cst_88 = arith.constant dense<0.000000e+00> : vector<8xf32>
    %164 = vector.multi_reduction <add>, %163, %cst_88 [1] : vector<8x8xf32> to vector<8xf32>
    %165 = vector.shape_cast %164 : vector<8xf32> to vector<8x1xf32>
    %166 = tpu.reciprocal %165 : vector<8x1xf32> -> vector<8x1xf32>
    %167 = vector.broadcast %166 : vector<8x1xf32> to vector<8x8xf32>
    %168 = arith.mulf %163, %167 : vector<8x8xf32>
    %cst_89 = arith.constant dense<0.000000e+00> : vector<8x32xf32>
    %169 = tpu.matmul %168, %157, %cst_89 {dimension_numbers = #tpu.dot_dimension_numbers<[1], [0], [0], [1], [0, 0, 1, 1], [], []>} : vector<8x8xf32>, vector<8x32xf32>, vector<8x32xf32> -> vector<8x32xf32>
    %170 = vector.extract_strided_slice %169 {offsets = [0, 0], sizes = [1, 32], strides = [1, 1]} : vector<8x32xf32> to vector<1x32xf32>
    %171 = vector.extract_strided_slice %169 {offsets = [1, 0], sizes = [1, 32], strides = [1, 1]} : vector<8x32xf32> to vector<1x32xf32>
    %172 = vector.extract_strided_slice %169 {offsets = [2, 0], sizes = [1, 32], strides = [1, 1]} : vector<8x32xf32> to vector<1x32xf32>
    %173 = vector.extract_strided_slice %169 {offsets = [3, 0], sizes = [1, 32], strides = [1, 1]} : vector<8x32xf32> to vector<1x32xf32>
    %174 = vector.extract_strided_slice %169 {offsets = [4, 0], sizes = [1, 32], strides = [1, 1]} : vector<8x32xf32> to vector<1x32xf32>
    %175 = vector.extract_strided_slice %169 {offsets = [5, 0], sizes = [1, 32], strides = [1, 1]} : vector<8x32xf32> to vector<1x32xf32>
    %176 = vector.extract_strided_slice %169 {offsets = [6, 0], sizes = [1, 32], strides = [1, 1]} : vector<8x32xf32> to vector<1x32xf32>
    %177 = vector.extract_strided_slice %169 {offsets = [7, 0], sizes = [1, 32], strides = [1, 1]} : vector<8x32xf32> to vector<1x32xf32>
    %178 = tpu.concatenate %170, %171, %172, %173, %174, %175, %176, %177 in 1 : vector<1x32xf32>, vector<1x32xf32>, vector<1x32xf32>, vector<1x32xf32>, vector<1x32xf32>, vector<1x32xf32>, vector<1x32xf32>, vector<1x32xf32> -> vector<1x256xf32>
    %c2_90 = arith.constant 2 : index
    %c0_91 = arith.constant 0 : index
    %179 = vector.load %arg11[%c2_90, %c0_91] : memref<8x256xf32, #tpu.memory_space<vmem>>, vector<1x256xf32>
    tpu.vector_store %arg11[%c2_90, %c0_91], %178 {strides = array<i32>} : memref<8x256xf32, #tpu.memory_space<vmem>>, vector<1x256xf32>,
    %180 = vector.extract_strided_slice %53 {offsets = [3, 0], sizes = [1, 96], strides = [1, 1]} : vector<8x768xf32> to vector<1x96xf32>
    %c0_92 = arith.constant 0 : index
    %c0_93 = arith.constant 0 : index
    %181 = vector.load %arg10[%c0_92, %c0_93] : memref<8x96xf32, #tpu.memory_space<vmem>>, vector<1x96xf32>
    tpu.vector_store %arg10[%c0_92, %c0_93], %180 {strides = array<i32>} : memref<8x96xf32, #tpu.memory_space<vmem>>, vector<1x96xf32>,
    %182 = vector.extract_strided_slice %53 {offsets = [3, 96], sizes = [1, 96], strides = [1, 1]} : vector<8x768xf32> to vector<1x96xf32>
    %c1_94 = arith.constant 1 : index
    %c0_95 = arith.constant 0 : index
    %183 = vector.load %arg10[%c1_94, %c0_95] : memref<8x96xf32, #tpu.memory_space<vmem>>, vector<1x96xf32>
    tpu.vector_store %arg10[%c1_94, %c0_95], %182 {strides = array<i32>} : memref<8x96xf32, #tpu.memory_space<vmem>>, vector<1x96xf32>,
    %184 = vector.extract_strided_slice %53 {offsets = [3, 192], sizes = [1, 96], strides = [1, 1]} : vector<8x768xf32> to vector<1x96xf32>
    %c2_96 = arith.constant 2 : index
    %c0_97 = arith.constant 0 : index
    %185 = vector.load %arg10[%c2_96, %c0_97] : memref<8x96xf32, #tpu.memory_space<vmem>>, vector<1x96xf32>
    tpu.vector_store %arg10[%c2_96, %c0_97], %184 {strides = array<i32>} : memref<8x96xf32, #tpu.memory_space<vmem>>, vector<1x96xf32>,
    %186 = vector.extract_strided_slice %53 {offsets = [3, 288], sizes = [1, 96], strides = [1, 1]} : vector<8x768xf32> to vector<1x96xf32>
    %c3_98 = arith.constant 3 : index
    %c0_99 = arith.constant 0 : index
    %187 = vector.load %arg10[%c3_98, %c0_99] : memref<8x96xf32, #tpu.memory_space<vmem>>, vector<1x96xf32>
    tpu.vector_store %arg10[%c3_98, %c0_99], %186 {strides = array<i32>} : memref<8x96xf32, #tpu.memory_space<vmem>>, vector<1x96xf32>,
    %188 = vector.extract_strided_slice %53 {offsets = [3, 384], sizes = [1, 96], strides = [1, 1]} : vector<8x768xf32> to vector<1x96xf32>
    %c4_100 = arith.constant 4 : index
    %c0_101 = arith.constant 0 : index
    %189 = vector.load %arg10[%c4_100, %c0_101] : memref<8x96xf32, #tpu.memory_space<vmem>>, vector<1x96xf32>
    tpu.vector_store %arg10[%c4_100, %c0_101], %188 {strides = array<i32>} : memref<8x96xf32, #tpu.memory_space<vmem>>, vector<1x96xf32>,
    %190 = vector.extract_strided_slice %53 {offsets = [3, 480], sizes = [1, 96], strides = [1, 1]} : vector<8x768xf32> to vector<1x96xf32>
    %c5_102 = arith.constant 5 : index
    %c0_103 = arith.constant 0 : index
    %191 = vector.load %arg10[%c5_102, %c0_103] : memref<8x96xf32, #tpu.memory_space<vmem>>, vector<1x96xf32>
    tpu.vector_store %arg10[%c5_102, %c0_103], %190 {strides = array<i32>} : memref<8x96xf32, #tpu.memory_space<vmem>>, vector<1x96xf32>,
    %192 = vector.extract_strided_slice %53 {offsets = [3, 576], sizes = [1, 96], strides = [1, 1]} : vector<8x768xf32> to vector<1x96xf32>
    %c6_104 = arith.constant 6 : index
    %c0_105 = arith.constant 0 : index
    %193 = vector.load %arg10[%c6_104, %c0_105] : memref<8x96xf32, #tpu.memory_space<vmem>>, vector<1x96xf32>
    tpu.vector_store %arg10[%c6_104, %c0_105], %192 {strides = array<i32>} : memref<8x96xf32, #tpu.memory_space<vmem>>, vector<1x96xf32>,
    %194 = vector.extract_strided_slice %53 {offsets = [3, 672], sizes = [1, 96], strides = [1, 1]} : vector<8x768xf32> to vector<1x96xf32>
    %c7_106 = arith.constant 7 : index
    %c0_107 = arith.constant 0 : index
    %195 = vector.load %arg10[%c7_106, %c0_107] : memref<8x96xf32, #tpu.memory_space<vmem>>, vector<1x96xf32>
    tpu.vector_store %arg10[%c7_106, %c0_107], %194 {strides = array<i32>} : memref<8x96xf32, #tpu.memory_space<vmem>>, vector<1x96xf32>,
    %c0_108 = arith.constant 0 : index
    %c0_109 = arith.constant 0 : index
    %196 = vector.load %arg10[%c0_108, %c0_109] : memref<8x96xf32, #tpu.memory_space<vmem>>, vector<8x96xf32>
    %197 = vector.extract_strided_slice %196 {offsets = [0, 0], sizes = [8, 32], strides = [1, 1]} : vector<8x96xf32> to vector<8x32xf32>
    %198 = vector.extract_strided_slice %196 {offsets = [0, 32], sizes = [8, 32], strides = [1, 1]} : vector<8x96xf32> to vector<8x32xf32>
    %199 = vector.extract_strided_slice %196 {offsets = [0, 64], sizes = [8, 32], strides = [1, 1]} : vector<8x96xf32> to vector<8x32xf32>
    %cst_110 = arith.constant dense<0.000000e+00> : vector<8x8xf32>
    %200 = tpu.matmul %197, %198, %cst_110 {dimension_numbers = #tpu.dot_dimension_numbers<[1], [1], [0], [0], [0, 0, 1, 0], [], []>} : vector<8x32xf32>, vector<8x32xf32>, vector<8x8xf32> -> vector<8x8xf32>
    %cst_111 = arith.constant dense<0xFF800000> : vector<8xf32>
    %201 = vector.multi_reduction <maximumf>, %200, %cst_111 [1] : vector<8x8xf32> to vector<8xf32>
    %202 = vector.shape_cast %201 : vector<8xf32> to vector<8x1xf32>
    %203 = vector.broadcast %202 : vector<8x1xf32> to vector<8x8xf32>
    %204 = arith.subf %200, %203 : vector<8x8xf32>
    %205 = math.exp %204 : vector<8x8xf32>
    %cst_112 = arith.constant dense<0.000000e+00> : vector<8xf32>
    %206 = vector.multi_reduction <add>, %205, %cst_112 [1] : vector<8x8xf32> to vector<8xf32>
    %207 = vector.shape_cast %206 : vector<8xf32> to vector<8x1xf32>
    %208 = tpu.reciprocal %207 : vector<8x1xf32> -> vector<8x1xf32>
    %209 = vector.broadcast %208 : vector<8x1xf32> to vector<8x8xf32>
    %210 = arith.mulf %205, %209 : vector<8x8xf32>
    %cst_113 = arith.constant dense<0.000000e+00> : vector<8x32xf32>
    %211 = tpu.matmul %210, %199, %cst_113 {dimension_numbers = #tpu.dot_dimension_numbers<[1], [0], [0], [1], [0, 0, 1, 1], [], []>} : vector<8x8xf32>, vector<8x32xf32>, vector<8x32xf32> -> vector<8x32xf32>
    %212 = vector.extract_strided_slice %211 {offsets = [0, 0], sizes = [1, 32], strides = [1, 1]} : vector<8x32xf32> to vector<1x32xf32>
    %213 = vector.extract_strided_slice %211 {offsets = [1, 0], sizes = [1, 32], strides = [1, 1]} : vector<8x32xf32> to vector<1x32xf32>
    %214 = vector.extract_strided_slice %211 {offsets = [2, 0], sizes = [1, 32], strides = [1, 1]} : vector<8x32xf32> to vector<1x32xf32>
    %215 = vector.extract_strided_slice %211 {offsets = [3, 0], sizes = [1, 32], strides = [1, 1]} : vector<8x32xf32> to vector<1x32xf32>
    %216 = vector.extract_strided_slice %211 {offsets = [4, 0], sizes = [1, 32], strides = [1, 1]} : vector<8x32xf32> to vector<1x32xf32>
    %217 = vector.extract_strided_slice %211 {offsets = [5, 0], sizes = [1, 32], strides = [1, 1]} : vector<8x32xf32> to vector<1x32xf32>
    %218 = vector.extract_strided_slice %211 {offsets = [6, 0], sizes = [1, 32], strides = [1, 1]} : vector<8x32xf32> to vector<1x32xf32>
    %219 = vector.extract_strided_slice %211 {offsets = [7, 0], sizes = [1, 32], strides = [1, 1]} : vector<8x32xf32> to vector<1x32xf32>
    %220 = tpu.concatenate %212, %213, %214, %215, %216, %217, %218, %219 in 1 : vector<1x32xf32>, vector<1x32xf32>, vector<1x32xf32>, vector<1x32xf32>, vector<1x32xf32>, vector<1x32xf32>, vector<1x32xf32>, vector<1x32xf32> -> vector<1x256xf32>
    %c3_114 = arith.constant 3 : index
    %c0_115 = arith.constant 0 : index
    %221 = vector.load %arg11[%c3_114, %c0_115] : memref<8x256xf32, #tpu.memory_space<vmem>>, vector<1x256xf32>
    tpu.vector_store %arg11[%c3_114, %c0_115], %220 {strides = array<i32>} : memref<8x256xf32, #tpu.memory_space<vmem>>, vector<1x256xf32>,
    %222 = vector.extract_strided_slice %53 {offsets = [4, 0], sizes = [1, 96], strides = [1, 1]} : vector<8x768xf32> to vector<1x96xf32>
    %c0_116 = arith.constant 0 : index
    %c0_117 = arith.constant 0 : index
    %223 = vector.load %arg10[%c0_116, %c0_117] : memref<8x96xf32, #tpu.memory_space<vmem>>, vector<1x96xf32>
    tpu.vector_store %arg10[%c0_116, %c0_117], %222 {strides = array<i32>} : memref<8x96xf32, #tpu.memory_space<vmem>>, vector<1x96xf32>,
    %224 = vector.extract_strided_slice %53 {offsets = [4, 96], sizes = [1, 96], strides = [1, 1]} : vector<8x768xf32> to vector<1x96xf32>
    %c1_118 = arith.constant 1 : index
    %c0_119 = arith.constant 0 : index
    %225 = vector.load %arg10[%c1_118, %c0_119] : memref<8x96xf32, #tpu.memory_space<vmem>>, vector<1x96xf32>
    tpu.vector_store %arg10[%c1_118, %c0_119], %224 {strides = array<i32>} : memref<8x96xf32, #tpu.memory_space<vmem>>, vector<1x96xf32>,
    %226 = vector.extract_strided_slice %53 {offsets = [4, 192], sizes = [1, 96], strides = [1, 1]} : vector<8x768xf32> to vector<1x96xf32>
    %c2_120 = arith.constant 2 : index
    %c0_121 = arith.constant 0 : index
    %227 = vector.load %arg10[%c2_120, %c0_121] : memref<8x96xf32, #tpu.memory_space<vmem>>, vector<1x96xf32>
    tpu.vector_store %arg10[%c2_120, %c0_121], %226 {strides = array<i32>} : memref<8x96xf32, #tpu.memory_space<vmem>>, vector<1x96xf32>,
    %228 = vector.extract_strided_slice %53 {offsets = [4, 288], sizes = [1, 96], strides = [1, 1]} : vector<8x768xf32> to vector<1x96xf32>
    %c3_122 = arith.constant 3 : index
    %c0_123 = arith.constant 0 : index
    %229 = vector.load %arg10[%c3_122, %c0_123] : memref<8x96xf32, #tpu.memory_space<vmem>>, vector<1x96xf32>
    tpu.vector_store %arg10[%c3_122, %c0_123], %228 {strides = array<i32>} : memref<8x96xf32, #tpu.memory_space<vmem>>, vector<1x96xf32>,
    %230 = vector.extract_strided_slice %53 {offsets = [4, 384], sizes = [1, 96], strides = [1, 1]} : vector<8x768xf32> to vector<1x96xf32>
    %c4_124 = arith.constant 4 : index
    %c0_125 = arith.constant 0 : index
    %231 = vector.load %arg10[%c4_124, %c0_125] : memref<8x96xf32, #tpu.memory_space<vmem>>, vector<1x96xf32>
    tpu.vector_store %arg10[%c4_124, %c0_125], %230 {strides = array<i32>} : memref<8x96xf32, #tpu.memory_space<vmem>>, vector<1x96xf32>,
    %232 = vector.extract_strided_slice %53 {offsets = [4, 480], sizes = [1, 96], strides = [1, 1]} : vector<8x768xf32> to vector<1x96xf32>
    %c5_126 = arith.constant 5 : index
    %c0_127 = arith.constant 0 : index
    %233 = vector.load %arg10[%c5_126, %c0_127] : memref<8x96xf32, #tpu.memory_space<vmem>>, vector<1x96xf32>
    tpu.vector_store %arg10[%c5_126, %c0_127], %232 {strides = array<i32>} : memref<8x96xf32, #tpu.memory_space<vmem>>, vector<1x96xf32>,
    %234 = vector.extract_strided_slice %53 {offsets = [4, 576], sizes = [1, 96], strides = [1, 1]} : vector<8x768xf32> to vector<1x96xf32>
    %c6_128 = arith.constant 6 : index
    %c0_129 = arith.constant 0 : index
    %235 = vector.load %arg10[%c6_128, %c0_129] : memref<8x96xf32, #tpu.memory_space<vmem>>, vector<1x96xf32>
    tpu.vector_store %arg10[%c6_128, %c0_129], %234 {strides = array<i32>} : memref<8x96xf32, #tpu.memory_space<vmem>>, vector<1x96xf32>,
    %236 = vector.extract_strided_slice %53 {offsets = [4, 672], sizes = [1, 96], strides = [1, 1]} : vector<8x768xf32> to vector<1x96xf32>
    %c7_130 = arith.constant 7 : index
    %c0_131 = arith.constant 0 : index
    %237 = vector.load %arg10[%c7_130, %c0_131] : memref<8x96xf32, #tpu.memory_space<vmem>>, vector<1x96xf32>
    tpu.vector_store %arg10[%c7_130, %c0_131], %236 {strides = array<i32>} : memref<8x96xf32, #tpu.memory_space<vmem>>, vector<1x96xf32>,
    %c0_132 = arith.constant 0 : index
    %c0_133 = arith.constant 0 : index
    %238 = vector.load %arg10[%c0_132, %c0_133] : memref<8x96xf32, #tpu.memory_space<vmem>>, vector<8x96xf32>
    %239 = vector.extract_strided_slice %238 {offsets = [0, 0], sizes = [8, 32], strides = [1, 1]} : vector<8x96xf32> to vector<8x32xf32>
    %240 = vector.extract_strided_slice %238 {offsets = [0, 32], sizes = [8, 32], strides = [1, 1]} : vector<8x96xf32> to vector<8x32xf32>
    %241 = vector.extract_strided_slice %238 {offsets = [0, 64], sizes = [8, 32], strides = [1, 1]} : vector<8x96xf32> to vector<8x32xf32>
    %cst_134 = arith.constant dense<0.000000e+00> : vector<8x8xf32>
    %242 = tpu.matmul %239, %240, %cst_134 {dimension_numbers = #tpu.dot_dimension_numbers<[1], [1], [0], [0], [0, 0, 1, 0], [], []>} : vector<8x32xf32>, vector<8x32xf32>, vector<8x8xf32> -> vector<8x8xf32>
    %cst_135 = arith.constant dense<0xFF800000> : vector<8xf32>
    %243 = vector.multi_reduction <maximumf>, %242, %cst_135 [1] : vector<8x8xf32> to vector<8xf32>
    %244 = vector.shape_cast %243 : vector<8xf32> to vector<8x1xf32>
    %245 = vector.broadcast %244 : vector<8x1xf32> to vector<8x8xf32>
    %246 = arith.subf %242, %245 : vector<8x8xf32>
    %247 = math.exp %246 : vector<8x8xf32>
    %cst_136 = arith.constant dense<0.000000e+00> : vector<8xf32>
    %248 = vector.multi_reduction <add>, %247, %cst_136 [1] : vector<8x8xf32> to vector<8xf32>
    %249 = vector.shape_cast %248 : vector<8xf32> to vector<8x1xf32>
    %250 = tpu.reciprocal %249 : vector<8x1xf32> -> vector<8x1xf32>
    %251 = vector.broadcast %250 : vector<8x1xf32> to vector<8x8xf32>
    %252 = arith.mulf %247, %251 : vector<8x8xf32>
    %cst_137 = arith.constant dense<0.000000e+00> : vector<8x32xf32>
    %253 = tpu.matmul %252, %241, %cst_137 {dimension_numbers = #tpu.dot_dimension_numbers<[1], [0], [0], [1], [0, 0, 1, 1], [], []>} : vector<8x8xf32>, vector<8x32xf32>, vector<8x32xf32> -> vector<8x32xf32>
    %254 = vector.extract_strided_slice %253 {offsets = [0, 0], sizes = [1, 32], strides = [1, 1]} : vector<8x32xf32> to vector<1x32xf32>
    %255 = vector.extract_strided_slice %253 {offsets = [1, 0], sizes = [1, 32], strides = [1, 1]} : vector<8x32xf32> to vector<1x32xf32>
    %256 = vector.extract_strided_slice %253 {offsets = [2, 0], sizes = [1, 32], strides = [1, 1]} : vector<8x32xf32> to vector<1x32xf32>
    %257 = vector.extract_strided_slice %253 {offsets = [3, 0], sizes = [1, 32], strides = [1, 1]} : vector<8x32xf32> to vector<1x32xf32>
    %258 = vector.extract_strided_slice %253 {offsets = [4, 0], sizes = [1, 32], strides = [1, 1]} : vector<8x32xf32> to vector<1x32xf32>
    %259 = vector.extract_strided_slice %253 {offsets = [5, 0], sizes = [1, 32], strides = [1, 1]} : vector<8x32xf32> to vector<1x32xf32>
    %260 = vector.extract_strided_slice %253 {offsets = [6, 0], sizes = [1, 32], strides = [1, 1]} : vector<8x32xf32> to vector<1x32xf32>
    %261 = vector.extract_strided_slice %253 {offsets = [7, 0], sizes = [1, 32], strides = [1, 1]} : vector<8x32xf32> to vector<1x32xf32>
    %262 = tpu.concatenate %254, %255, %256, %257, %258, %259, %260, %261 in 1 : vector<1x32xf32>, vector<1x32xf32>, vector<1x32xf32>, vector<1x32xf32>, vector<1x32xf32>, vector<1x32xf32>, vector<1x32xf32>, vector<1x32xf32> -> vector<1x256xf32>
    %c4_138 = arith.constant 4 : index
    %c0_139 = arith.constant 0 : index
    %263 = vector.load %arg11[%c4_138, %c0_139] : memref<8x256xf32, #tpu.memory_space<vmem>>, vector<1x256xf32>
    tpu.vector_store %arg11[%c4_138, %c0_139], %262 {strides = array<i32>} : memref<8x256xf32, #tpu.memory_space<vmem>>, vector<1x256xf32>,
    %264 = vector.extract_strided_slice %53 {offsets = [5, 0], sizes = [1, 96], strides = [1, 1]} : vector<8x768xf32> to vector<1x96xf32>
    %c0_140 = arith.constant 0 : index
    %c0_141 = arith.constant 0 : index
    %265 = vector.load %arg10[%c0_140, %c0_141] : memref<8x96xf32, #tpu.memory_space<vmem>>, vector<1x96xf32>
    tpu.vector_store %arg10[%c0_140, %c0_141], %264 {strides = array<i32>} : memref<8x96xf32, #tpu.memory_space<vmem>>, vector<1x96xf32>,
    %266 = vector.extract_strided_slice %53 {offsets = [5, 96], sizes = [1, 96], strides = [1, 1]} : vector<8x768xf32> to vector<1x96xf32>
    %c1_142 = arith.constant 1 : index
    %c0_143 = arith.constant 0 : index
    %267 = vector.load %arg10[%c1_142, %c0_143] : memref<8x96xf32, #tpu.memory_space<vmem>>, vector<1x96xf32>
    tpu.vector_store %arg10[%c1_142, %c0_143], %266 {strides = array<i32>} : memref<8x96xf32, #tpu.memory_space<vmem>>, vector<1x96xf32>,
    %268 = vector.extract_strided_slice %53 {offsets = [5, 192], sizes = [1, 96], strides = [1, 1]} : vector<8x768xf32> to vector<1x96xf32>
    %c2_144 = arith.constant 2 : index
    %c0_145 = arith.constant 0 : index
    %269 = vector.load %arg10[%c2_144, %c0_145] : memref<8x96xf32, #tpu.memory_space<vmem>>, vector<1x96xf32>
    tpu.vector_store %arg10[%c2_144, %c0_145], %268 {strides = array<i32>} : memref<8x96xf32, #tpu.memory_space<vmem>>, vector<1x96xf32>,
    %270 = vector.extract_strided_slice %53 {offsets = [5, 288], sizes = [1, 96], strides = [1, 1]} : vector<8x768xf32> to vector<1x96xf32>
    %c3_146 = arith.constant 3 : index
    %c0_147 = arith.constant 0 : index
    %271 = vector.load %arg10[%c3_146, %c0_147] : memref<8x96xf32, #tpu.memory_space<vmem>>, vector<1x96xf32>
    tpu.vector_store %arg10[%c3_146, %c0_147], %270 {strides = array<i32>} : memref<8x96xf32, #tpu.memory_space<vmem>>, vector<1x96xf32>,
    %272 = vector.extract_strided_slice %53 {offsets = [5, 384], sizes = [1, 96], strides = [1, 1]} : vector<8x768xf32> to vector<1x96xf32>
    %c4_148 = arith.constant 4 : index
    %c0_149 = arith.constant 0 : index
    %273 = vector.load %arg10[%c4_148, %c0_149] : memref<8x96xf32, #tpu.memory_space<vmem>>, vector<1x96xf32>
    tpu.vector_store %arg10[%c4_148, %c0_149], %272 {strides = array<i32>} : memref<8x96xf32, #tpu.memory_space<vmem>>, vector<1x96xf32>,
    %274 = vector.extract_strided_slice %53 {offsets = [5, 480], sizes = [1, 96], strides = [1, 1]} : vector<8x768xf32> to vector<1x96xf32>
    %c5_150 = arith.constant 5 : index
    %c0_151 = arith.constant 0 : index
    %275 = vector.load %arg10[%c5_150, %c0_151] : memref<8x96xf32, #tpu.memory_space<vmem>>, vector<1x96xf32>
    tpu.vector_store %arg10[%c5_150, %c0_151], %274 {strides = array<i32>} : memref<8x96xf32, #tpu.memory_space<vmem>>, vector<1x96xf32>,
    %276 = vector.extract_strided_slice %53 {offsets = [5, 576], sizes = [1, 96], strides = [1, 1]} : vector<8x768xf32> to vector<1x96xf32>
    %c6_152 = arith.constant 6 : index
    %c0_153 = arith.constant 0 : index
    %277 = vector.load %arg10[%c6_152, %c0_153] : memref<8x96xf32, #tpu.memory_space<vmem>>, vector<1x96xf32>
    tpu.vector_store %arg10[%c6_152, %c0_153], %276 {strides = array<i32>} : memref<8x96xf32, #tpu.memory_space<vmem>>, vector<1x96xf32>,
    %278 = vector.extract_strided_slice %53 {offsets = [5, 672], sizes = [1, 96], strides = [1, 1]} : vector<8x768xf32> to vector<1x96xf32>
    %c7_154 = arith.constant 7 : index
    %c0_155 = arith.constant 0 : index
    %279 = vector.load %arg10[%c7_154, %c0_155] : memref<8x96xf32, #tpu.memory_space<vmem>>, vector<1x96xf32>
    tpu.vector_store %arg10[%c7_154, %c0_155], %278 {strides = array<i32>} : memref<8x96xf32, #tpu.memory_space<vmem>>, vector<1x96xf32>,
    %c0_156 = arith.constant 0 : index
    %c0_157 = arith.constant 0 : index
    %280 = vector.load %arg10[%c0_156, %c0_157] : memref<8x96xf32, #tpu.memory_space<vmem>>, vector<8x96xf32>
    %281 = vector.extract_strided_slice %280 {offsets = [0, 0], sizes = [8, 32], strides = [1, 1]} : vector<8x96xf32> to vector<8x32xf32>
    %282 = vector.extract_strided_slice %280 {offsets = [0, 32], sizes = [8, 32], strides = [1, 1]} : vector<8x96xf32> to vector<8x32xf32>
    %283 = vector.extract_strided_slice %280 {offsets = [0, 64], sizes = [8, 32], strides = [1, 1]} : vector<8x96xf32> to vector<8x32xf32>
    %cst_158 = arith.constant dense<0.000000e+00> : vector<8x8xf32>
    %284 = tpu.matmul %281, %282, %cst_158 {dimension_numbers = #tpu.dot_dimension_numbers<[1], [1], [0], [0], [0, 0, 1, 0], [], []>} : vector<8x32xf32>, vector<8x32xf32>, vector<8x8xf32> -> vector<8x8xf32>
    %cst_159 = arith.constant dense<0xFF800000> : vector<8xf32>
    %285 = vector.multi_reduction <maximumf>, %284, %cst_159 [1] : vector<8x8xf32> to vector<8xf32>
    %286 = vector.shape_cast %285 : vector<8xf32> to vector<8x1xf32>
    %287 = vector.broadcast %286 : vector<8x1xf32> to vector<8x8xf32>
    %288 = arith.subf %284, %287 : vector<8x8xf32>
    %289 = math.exp %288 : vector<8x8xf32>
    %cst_160 = arith.constant dense<0.000000e+00> : vector<8xf32>
    %290 = vector.multi_reduction <add>, %289, %cst_160 [1] : vector<8x8xf32> to vector<8xf32>
    %291 = vector.shape_cast %290 : vector<8xf32> to vector<8x1xf32>
    %292 = tpu.reciprocal %291 : vector<8x1xf32> -> vector<8x1xf32>
    %293 = vector.broadcast %292 : vector<8x1xf32> to vector<8x8xf32>
    %294 = arith.mulf %289, %293 : vector<8x8xf32>
    %cst_161 = arith.constant dense<0.000000e+00> : vector<8x32xf32>
    %295 = tpu.matmul %294, %283, %cst_161 {dimension_numbers = #tpu.dot_dimension_numbers<[1], [0], [0], [1], [0, 0, 1, 1], [], []>} : vector<8x8xf32>, vector<8x32xf32>, vector<8x32xf32> -> vector<8x32xf32>
    %296 = vector.extract_strided_slice %295 {offsets = [0, 0], sizes = [1, 32], strides = [1, 1]} : vector<8x32xf32> to vector<1x32xf32>
    %297 = vector.extract_strided_slice %295 {offsets = [1, 0], sizes = [1, 32], strides = [1, 1]} : vector<8x32xf32> to vector<1x32xf32>
    %298 = vector.extract_strided_slice %295 {offsets = [2, 0], sizes = [1, 32], strides = [1, 1]} : vector<8x32xf32> to vector<1x32xf32>
    %299 = vector.extract_strided_slice %295 {offsets = [3, 0], sizes = [1, 32], strides = [1, 1]} : vector<8x32xf32> to vector<1x32xf32>
    %300 = vector.extract_strided_slice %295 {offsets = [4, 0], sizes = [1, 32], strides = [1, 1]} : vector<8x32xf32> to vector<1x32xf32>
    %301 = vector.extract_strided_slice %295 {offsets = [5, 0], sizes = [1, 32], strides = [1, 1]} : vector<8x32xf32> to vector<1x32xf32>
    %302 = vector.extract_strided_slice %295 {offsets = [6, 0], sizes = [1, 32], strides = [1, 1]} : vector<8x32xf32> to vector<1x32xf32>
    %303 = vector.extract_strided_slice %295 {offsets = [7, 0], sizes = [1, 32], strides = [1, 1]} : vector<8x32xf32> to vector<1x32xf32>
    %304 = tpu.concatenate %296, %297, %298, %299, %300, %301, %302, %303 in 1 : vector<1x32xf32>, vector<1x32xf32>, vector<1x32xf32>, vector<1x32xf32>, vector<1x32xf32>, vector<1x32xf32>, vector<1x32xf32>, vector<1x32xf32> -> vector<1x256xf32>
    %c5_162 = arith.constant 5 : index
    %c0_163 = arith.constant 0 : index
    %305 = vector.load %arg11[%c5_162, %c0_163] : memref<8x256xf32, #tpu.memory_space<vmem>>, vector<1x256xf32>
    tpu.vector_store %arg11[%c5_162, %c0_163], %304 {strides = array<i32>} : memref<8x256xf32, #tpu.memory_space<vmem>>, vector<1x256xf32>,
    %306 = vector.extract_strided_slice %53 {offsets = [6, 0], sizes = [1, 96], strides = [1, 1]} : vector<8x768xf32> to vector<1x96xf32>
    %c0_164 = arith.constant 0 : index
    %c0_165 = arith.constant 0 : index
    %307 = vector.load %arg10[%c0_164, %c0_165] : memref<8x96xf32, #tpu.memory_space<vmem>>, vector<1x96xf32>
    tpu.vector_store %arg10[%c0_164, %c0_165], %306 {strides = array<i32>} : memref<8x96xf32, #tpu.memory_space<vmem>>, vector<1x96xf32>,
    %308 = vector.extract_strided_slice %53 {offsets = [6, 96], sizes = [1, 96], strides = [1, 1]} : vector<8x768xf32> to vector<1x96xf32>
    %c1_166 = arith.constant 1 : index
    %c0_167 = arith.constant 0 : index
    %309 = vector.load %arg10[%c1_166, %c0_167] : memref<8x96xf32, #tpu.memory_space<vmem>>, vector<1x96xf32>
    tpu.vector_store %arg10[%c1_166, %c0_167], %308 {strides = array<i32>} : memref<8x96xf32, #tpu.memory_space<vmem>>, vector<1x96xf32>,
    %310 = vector.extract_strided_slice %53 {offsets = [6, 192], sizes = [1, 96], strides = [1, 1]} : vector<8x768xf32> to vector<1x96xf32>
    %c2_168 = arith.constant 2 : index
    %c0_169 = arith.constant 0 : index
    %311 = vector.load %arg10[%c2_168, %c0_169] : memref<8x96xf32, #tpu.memory_space<vmem>>, vector<1x96xf32>
    tpu.vector_store %arg10[%c2_168, %c0_169], %310 {strides = array<i32>} : memref<8x96xf32, #tpu.memory_space<vmem>>, vector<1x96xf32>,
    %312 = vector.extract_strided_slice %53 {offsets = [6, 288], sizes = [1, 96], strides = [1, 1]} : vector<8x768xf32> to vector<1x96xf32>
    %c3_170 = arith.constant 3 : index
    %c0_171 = arith.constant 0 : index
    %313 = vector.load %arg10[%c3_170, %c0_171] : memref<8x96xf32, #tpu.memory_space<vmem>>, vector<1x96xf32>
    tpu.vector_store %arg10[%c3_170, %c0_171], %312 {strides = array<i32>} : memref<8x96xf32, #tpu.memory_space<vmem>>, vector<1x96xf32>,
    %314 = vector.extract_strided_slice %53 {offsets = [6, 384], sizes = [1, 96], strides = [1, 1]} : vector<8x768xf32> to vector<1x96xf32>
    %c4_172 = arith.constant 4 : index
    %c0_173 = arith.constant 0 : index
    %315 = vector.load %arg10[%c4_172, %c0_173] : memref<8x96xf32, #tpu.memory_space<vmem>>, vector<1x96xf32>
    tpu.vector_store %arg10[%c4_172, %c0_173], %314 {strides = array<i32>} : memref<8x96xf32, #tpu.memory_space<vmem>>, vector<1x96xf32>,
    %316 = vector.extract_strided_slice %53 {offsets = [6, 480], sizes = [1, 96], strides = [1, 1]} : vector<8x768xf32> to vector<1x96xf32>
    %c5_174 = arith.constant 5 : index
    %c0_175 = arith.constant 0 : index
    %317 = vector.load %arg10[%c5_174, %c0_175] : memref<8x96xf32, #tpu.memory_space<vmem>>, vector<1x96xf32>
    tpu.vector_store %arg10[%c5_174, %c0_175], %316 {strides = array<i32>} : memref<8x96xf32, #tpu.memory_space<vmem>>, vector<1x96xf32>,
    %318 = vector.extract_strided_slice %53 {offsets = [6, 576], sizes = [1, 96], strides = [1, 1]} : vector<8x768xf32> to vector<1x96xf32>
    %c6_176 = arith.constant 6 : index
    %c0_177 = arith.constant 0 : index
    %319 = vector.load %arg10[%c6_176, %c0_177] : memref<8x96xf32, #tpu.memory_space<vmem>>, vector<1x96xf32>
    tpu.vector_store %arg10[%c6_176, %c0_177], %318 {strides = array<i32>} : memref<8x96xf32, #tpu.memory_space<vmem>>, vector<1x96xf32>,
    %320 = vector.extract_strided_slice %53 {offsets = [6, 672], sizes = [1, 96], strides = [1, 1]} : vector<8x768xf32> to vector<1x96xf32>
    %c7_178 = arith.constant 7 : index
    %c0_179 = arith.constant 0 : index
    %321 = vector.load %arg10[%c7_178, %c0_179] : memref<8x96xf32, #tpu.memory_space<vmem>>, vector<1x96xf32>
    tpu.vector_store %arg10[%c7_178, %c0_179], %320 {strides = array<i32>} : memref<8x96xf32, #tpu.memory_space<vmem>>, vector<1x96xf32>,
    %c0_180 = arith.constant 0 : index
    %c0_181 = arith.constant 0 : index
    %322 = vector.load %arg10[%c0_180, %c0_181] : memref<8x96xf32, #tpu.memory_space<vmem>>, vector<8x96xf32>
    %323 = vector.extract_strided_slice %322 {offsets = [0, 0], sizes = [8, 32], strides = [1, 1]} : vector<8x96xf32> to vector<8x32xf32>
    %324 = vector.extract_strided_slice %322 {offsets = [0, 32], sizes = [8, 32], strides = [1, 1]} : vector<8x96xf32> to vector<8x32xf32>
    %325 = vector.extract_strided_slice %322 {offsets = [0, 64], sizes = [8, 32], strides = [1, 1]} : vector<8x96xf32> to vector<8x32xf32>
    %cst_182 = arith.constant dense<0.000000e+00> : vector<8x8xf32>
    %326 = tpu.matmul %323, %324, %cst_182 {dimension_numbers = #tpu.dot_dimension_numbers<[1], [1], [0], [0], [0, 0, 1, 0], [], []>} : vector<8x32xf32>, vector<8x32xf32>, vector<8x8xf32> -> vector<8x8xf32>
    %cst_183 = arith.constant dense<0xFF800000> : vector<8xf32>
    %327 = vector.multi_reduction <maximumf>, %326, %cst_183 [1] : vector<8x8xf32> to vector<8xf32>
    %328 = vector.shape_cast %327 : vector<8xf32> to vector<8x1xf32>
    %329 = vector.broadcast %328 : vector<8x1xf32> to vector<8x8xf32>
    %330 = arith.subf %326, %329 : vector<8x8xf32>
    %331 = math.exp %330 : vector<8x8xf32>
    %cst_184 = arith.constant dense<0.000000e+00> : vector<8xf32>
    %332 = vector.multi_reduction <add>, %331, %cst_184 [1] : vector<8x8xf32> to vector<8xf32>
    %333 = vector.shape_cast %332 : vector<8xf32> to vector<8x1xf32>
    %334 = tpu.reciprocal %333 : vector<8x1xf32> -> vector<8x1xf32>
    %335 = vector.broadcast %334 : vector<8x1xf32> to vector<8x8xf32>
    %336 = arith.mulf %331, %335 : vector<8x8xf32>
    %cst_185 = arith.constant dense<0.000000e+00> : vector<8x32xf32>
    %337 = tpu.matmul %336, %325, %cst_185 {dimension_numbers = #tpu.dot_dimension_numbers<[1], [0], [0], [1], [0, 0, 1, 1], [], []>} : vector<8x8xf32>, vector<8x32xf32>, vector<8x32xf32> -> vector<8x32xf32>
    %338 = vector.extract_strided_slice %337 {offsets = [0, 0], sizes = [1, 32], strides = [1, 1]} : vector<8x32xf32> to vector<1x32xf32>
    %339 = vector.extract_strided_slice %337 {offsets = [1, 0], sizes = [1, 32], strides = [1, 1]} : vector<8x32xf32> to vector<1x32xf32>
    %340 = vector.extract_strided_slice %337 {offsets = [2, 0], sizes = [1, 32], strides = [1, 1]} : vector<8x32xf32> to vector<1x32xf32>
    %341 = vector.extract_strided_slice %337 {offsets = [3, 0], sizes = [1, 32], strides = [1, 1]} : vector<8x32xf32> to vector<1x32xf32>
    %342 = vector.extract_strided_slice %337 {offsets = [4, 0], sizes = [1, 32], strides = [1, 1]} : vector<8x32xf32> to vector<1x32xf32>
    %343 = vector.extract_strided_slice %337 {offsets = [5, 0], sizes = [1, 32], strides = [1, 1]} : vector<8x32xf32> to vector<1x32xf32>
    %344 = vector.extract_strided_slice %337 {offsets = [6, 0], sizes = [1, 32], strides = [1, 1]} : vector<8x32xf32> to vector<1x32xf32>
    %345 = vector.extract_strided_slice %337 {offsets = [7, 0], sizes = [1, 32], strides = [1, 1]} : vector<8x32xf32> to vector<1x32xf32>
    %346 = tpu.concatenate %338, %339, %340, %341, %342, %343, %344, %345 in 1 : vector<1x32xf32>, vector<1x32xf32>, vector<1x32xf32>, vector<1x32xf32>, vector<1x32xf32>, vector<1x32xf32>, vector<1x32xf32>, vector<1x32xf32> -> vector<1x256xf32>
    %c6_186 = arith.constant 6 : index
    %c0_187 = arith.constant 0 : index
    %347 = vector.load %arg11[%c6_186, %c0_187] : memref<8x256xf32, #tpu.memory_space<vmem>>, vector<1x256xf32>
    tpu.vector_store %arg11[%c6_186, %c0_187], %346 {strides = array<i32>} : memref<8x256xf32, #tpu.memory_space<vmem>>, vector<1x256xf32>,
    %348 = vector.extract_strided_slice %53 {offsets = [7, 0], sizes = [1, 96], strides = [1, 1]} : vector<8x768xf32> to vector<1x96xf32>
    %c0_188 = arith.constant 0 : index
    %c0_189 = arith.constant 0 : index
    %349 = vector.load %arg10[%c0_188, %c0_189] : memref<8x96xf32, #tpu.memory_space<vmem>>, vector<1x96xf32>
    tpu.vector_store %arg10[%c0_188, %c0_189], %348 {strides = array<i32>} : memref<8x96xf32, #tpu.memory_space<vmem>>, vector<1x96xf32>,
    %350 = vector.extract_strided_slice %53 {offsets = [7, 96], sizes = [1, 96], strides = [1, 1]} : vector<8x768xf32> to vector<1x96xf32>
    %c1_190 = arith.constant 1 : index
    %c0_191 = arith.constant 0 : index
    %351 = vector.load %arg10[%c1_190, %c0_191] : memref<8x96xf32, #tpu.memory_space<vmem>>, vector<1x96xf32>
    tpu.vector_store %arg10[%c1_190, %c0_191], %350 {strides = array<i32>} : memref<8x96xf32, #tpu.memory_space<vmem>>, vector<1x96xf32>,
    %352 = vector.extract_strided_slice %53 {offsets = [7, 192], sizes = [1, 96], strides = [1, 1]} : vector<8x768xf32> to vector<1x96xf32>
    %c2_192 = arith.constant 2 : index
    %c0_193 = arith.constant 0 : index
    %353 = vector.load %arg10[%c2_192, %c0_193] : memref<8x96xf32, #tpu.memory_space<vmem>>, vector<1x96xf32>
    tpu.vector_store %arg10[%c2_192, %c0_193], %352 {strides = array<i32>} : memref<8x96xf32, #tpu.memory_space<vmem>>, vector<1x96xf32>,
    %354 = vector.extract_strided_slice %53 {offsets = [7, 288], sizes = [1, 96], strides = [1, 1]} : vector<8x768xf32> to vector<1x96xf32>
    %c3_194 = arith.constant 3 : index
    %c0_195 = arith.constant 0 : index
    %355 = vector.load %arg10[%c3_194, %c0_195] : memref<8x96xf32, #tpu.memory_space<vmem>>, vector<1x96xf32>
    tpu.vector_store %arg10[%c3_194, %c0_195], %354 {strides = array<i32>} : memref<8x96xf32, #tpu.memory_space<vmem>>, vector<1x96xf32>,
    %356 = vector.extract_strided_slice %53 {offsets = [7, 384], sizes = [1, 96], strides = [1, 1]} : vector<8x768xf32> to vector<1x96xf32>
    %c4_196 = arith.constant 4 : index
    %c0_197 = arith.constant 0 : index
    %357 = vector.load %arg10[%c4_196, %c0_197] : memref<8x96xf32, #tpu.memory_space<vmem>>, vector<1x96xf32>
    tpu.vector_store %arg10[%c4_196, %c0_197], %356 {strides = array<i32>} : memref<8x96xf32, #tpu.memory_space<vmem>>, vector<1x96xf32>,
    %358 = vector.extract_strided_slice %53 {offsets = [7, 480], sizes = [1, 96], strides = [1, 1]} : vector<8x768xf32> to vector<1x96xf32>
    %c5_198 = arith.constant 5 : index
    %c0_199 = arith.constant 0 : index
    %359 = vector.load %arg10[%c5_198, %c0_199] : memref<8x96xf32, #tpu.memory_space<vmem>>, vector<1x96xf32>
    tpu.vector_store %arg10[%c5_198, %c0_199], %358 {strides = array<i32>} : memref<8x96xf32, #tpu.memory_space<vmem>>, vector<1x96xf32>,
    %360 = vector.extract_strided_slice %53 {offsets = [7, 576], sizes = [1, 96], strides = [1, 1]} : vector<8x768xf32> to vector<1x96xf32>
    %c6_200 = arith.constant 6 : index
    %c0_201 = arith.constant 0 : index
    %361 = vector.load %arg10[%c6_200, %c0_201] : memref<8x96xf32, #tpu.memory_space<vmem>>, vector<1x96xf32>
    tpu.vector_store %arg10[%c6_200, %c0_201], %360 {strides = array<i32>} : memref<8x96xf32, #tpu.memory_space<vmem>>, vector<1x96xf32>,
    %362 = vector.extract_strided_slice %53 {offsets = [7, 672], sizes = [1, 96], strides = [1, 1]} : vector<8x768xf32> to vector<1x96xf32>
    %c7_202 = arith.constant 7 : index
    %c0_203 = arith.constant 0 : index
    %363 = vector.load %arg10[%c7_202, %c0_203] : memref<8x96xf32, #tpu.memory_space<vmem>>, vector<1x96xf32>
    tpu.vector_store %arg10[%c7_202, %c0_203], %362 {strides = array<i32>} : memref<8x96xf32, #tpu.memory_space<vmem>>, vector<1x96xf32>,
    %c0_204 = arith.constant 0 : index
    %c0_205 = arith.constant 0 : index
    %364 = vector.load %arg10[%c0_204, %c0_205] : memref<8x96xf32, #tpu.memory_space<vmem>>, vector<8x96xf32>
    %365 = vector.extract_strided_slice %364 {offsets = [0, 0], sizes = [8, 32], strides = [1, 1]} : vector<8x96xf32> to vector<8x32xf32>
    %366 = vector.extract_strided_slice %364 {offsets = [0, 32], sizes = [8, 32], strides = [1, 1]} : vector<8x96xf32> to vector<8x32xf32>
    %367 = vector.extract_strided_slice %364 {offsets = [0, 64], sizes = [8, 32], strides = [1, 1]} : vector<8x96xf32> to vector<8x32xf32>
    %cst_206 = arith.constant dense<0.000000e+00> : vector<8x8xf32>
    %368 = tpu.matmul %365, %366, %cst_206 {dimension_numbers = #tpu.dot_dimension_numbers<[1], [1], [0], [0], [0, 0, 1, 0], [], []>} : vector<8x32xf32>, vector<8x32xf32>, vector<8x8xf32> -> vector<8x8xf32>
    %cst_207 = arith.constant dense<0xFF800000> : vector<8xf32>
    %369 = vector.multi_reduction <maximumf>, %368, %cst_207 [1] : vector<8x8xf32> to vector<8xf32>
    %370 = vector.shape_cast %369 : vector<8xf32> to vector<8x1xf32>
    %371 = vector.broadcast %370 : vector<8x1xf32> to vector<8x8xf32>
    %372 = arith.subf %368, %371 : vector<8x8xf32>
    %373 = math.exp %372 : vector<8x8xf32>
    %cst_208 = arith.constant dense<0.000000e+00> : vector<8xf32>
    %374 = vector.multi_reduction <add>, %373, %cst_208 [1] : vector<8x8xf32> to vector<8xf32>
    %375 = vector.shape_cast %374 : vector<8xf32> to vector<8x1xf32>
    %376 = tpu.reciprocal %375 : vector<8x1xf32> -> vector<8x1xf32>
    %377 = vector.broadcast %376 : vector<8x1xf32> to vector<8x8xf32>
    %378 = arith.mulf %373, %377 : vector<8x8xf32>
    %cst_209 = arith.constant dense<0.000000e+00> : vector<8x32xf32>
    %379 = tpu.matmul %378, %367, %cst_209 {dimension_numbers = #tpu.dot_dimension_numbers<[1], [0], [0], [1], [0, 0, 1, 1], [], []>} : vector<8x8xf32>, vector<8x32xf32>, vector<8x32xf32> -> vector<8x32xf32>
    %380 = vector.extract_strided_slice %379 {offsets = [0, 0], sizes = [1, 32], strides = [1, 1]} : vector<8x32xf32> to vector<1x32xf32>
    %381 = vector.extract_strided_slice %379 {offsets = [1, 0], sizes = [1, 32], strides = [1, 1]} : vector<8x32xf32> to vector<1x32xf32>
    %382 = vector.extract_strided_slice %379 {offsets = [2, 0], sizes = [1, 32], strides = [1, 1]} : vector<8x32xf32> to vector<1x32xf32>
    %383 = vector.extract_strided_slice %379 {offsets = [3, 0], sizes = [1, 32], strides = [1, 1]} : vector<8x32xf32> to vector<1x32xf32>
    %384 = vector.extract_strided_slice %379 {offsets = [4, 0], sizes = [1, 32], strides = [1, 1]} : vector<8x32xf32> to vector<1x32xf32>
    %385 = vector.extract_strided_slice %379 {offsets = [5, 0], sizes = [1, 32], strides = [1, 1]} : vector<8x32xf32> to vector<1x32xf32>
    %386 = vector.extract_strided_slice %379 {offsets = [6, 0], sizes = [1, 32], strides = [1, 1]} : vector<8x32xf32> to vector<1x32xf32>
    %387 = vector.extract_strided_slice %379 {offsets = [7, 0], sizes = [1, 32], strides = [1, 1]} : vector<8x32xf32> to vector<1x32xf32>
    %388 = tpu.concatenate %380, %381, %382, %383, %384, %385, %386, %387 in 1 : vector<1x32xf32>, vector<1x32xf32>, vector<1x32xf32>, vector<1x32xf32>, vector<1x32xf32>, vector<1x32xf32>, vector<1x32xf32>, vector<1x32xf32> -> vector<1x256xf32>
    %c7_210 = arith.constant 7 : index
    %c0_211 = arith.constant 0 : index
    %389 = vector.load %arg11[%c7_210, %c0_211] : memref<8x256xf32, #tpu.memory_space<vmem>>, vector<1x256xf32>
    tpu.vector_store %arg11[%c7_210, %c0_211], %388 {strides = array<i32>} : memref<8x256xf32, #tpu.memory_space<vmem>>, vector<1x256xf32>,
    %c0_212 = arith.constant 0 : index
    %c0_213 = arith.constant 0 : index
    %390 = vector.load %arg11[%c0_212, %c0_213] : memref<8x256xf32, #tpu.memory_space<vmem>>, vector<8x256xf32>
    %c0_214 = arith.constant 0 : index
    %c0_215 = arith.constant 0 : index
    %391 = vector.load %arg4[%c0_214, %c0_215] : memref<256x256xf32, #tpu.memory_space<vmem>>, vector<256x256xf32>
    %cst_216 = arith.constant dense<0.000000e+00> : vector<8x256xf32>
    %392 = tpu.matmul %390, %391, %cst_216 {dimension_numbers = #tpu.dot_dimension_numbers<[1], [0], [0], [1], [0, 0, 1, 1], [], []>} : vector<8x256xf32>, vector<256x256xf32>, vector<8x256xf32> -> vector<8x256xf32>
    %393 = vector.shape_cast %7 : vector<256xf32> to vector<1x256xf32>
    %394 = vector.broadcast %393 : vector<1x256xf32> to vector<8x256xf32>
    %395 = arith.addf %392, %394 : vector<8x256xf32>
    %396 = arith.addf %395, %46 : vector<8x256xf32>
    %cst_217 = arith.constant dense<0.000000e+00> : vector<8xf32>
    %397 = vector.multi_reduction <add>, %396, %cst_217 [1] : vector<8x256xf32> to vector<8xf32>
    %398 = vector.shape_cast %397 : vector<8xf32> to vector<8x1xf32>
    %cst_218 = arith.constant 2.560000e+02 : f32
    %399 = vector.broadcast %cst_218 : f32 to vector<8x1xf32>
    %400 = arith.divf %398, %399 : vector<8x1xf32>
    %401 = vector.broadcast %400 : vector<8x1xf32> to vector<8x256xf32>
    %402 = arith.subf %396, %401 : vector<8x256xf32>
    %403 = arith.mulf %402, %402 : vector<8x256xf32>
    %cst_219 = arith.constant dense<0.000000e+00> : vector<8xf32>
    %404 = vector.multi_reduction <add>, %403, %cst_219 [1] : vector<8x256xf32> to vector<8xf32>
    %405 = vector.shape_cast %404 : vector<8xf32> to vector<8x1xf32>
    %cst_220 = arith.constant 2.560000e+02 : f32
    %406 = vector.broadcast %cst_220 : f32 to vector<8x1xf32>
    %407 = arith.divf %405, %406 : vector<8x1xf32>
    %408 = vector.broadcast %400 : vector<8x1xf32> to vector<8x256xf32>
    %409 = arith.subf %396, %408 : vector<8x256xf32>
    %cst_221 = arith.constant 9.99999974E-6 : f32
    %410 = vector.broadcast %cst_221 : f32 to vector<8x1xf32>
    %411 = arith.addf %407, %410 : vector<8x1xf32>
    %412 = math.rsqrt %411 : vector<8x1xf32>
    %413 = vector.broadcast %412 : vector<8x1xf32> to vector<8x256xf32>
    %414 = arith.mulf %409, %413 : vector<8x256xf32>
    %415 = vector.shape_cast %9 : vector<256xf32> to vector<1x256xf32>
    %416 = vector.broadcast %415 : vector<1x256xf32> to vector<8x256xf32>
    %417 = arith.mulf %414, %416 : vector<8x256xf32>
    %418 = vector.shape_cast %11 : vector<256xf32> to vector<1x256xf32>
    %419 = vector.broadcast %418 : vector<1x256xf32> to vector<8x256xf32>
    %420 = arith.addf %417, %419 : vector<8x256xf32>
    %c0_222 = arith.constant 0 : index
    %c0_223 = arith.constant 0 : index
    %421 = vector.load %arg5[%c0_222, %c0_223] : memref<256x32xf32, #tpu.memory_space<vmem>>, vector<256x32xf32>
    %cst_224 = arith.constant dense<0.000000e+00> : vector<8x32xf32>
    %422 = tpu.matmul %420, %421, %cst_224 {dimension_numbers = #tpu.dot_dimension_numbers<[1], [0], [0], [1], [0, 0, 1, 1], [], []>} : vector<8x256xf32>, vector<256x32xf32>, vector<8x32xf32> -> vector<8x32xf32>
    %c0_225 = arith.constant 0 : index
    %c0_226 = arith.constant 0 : index
    %423 = vector.load %arg8[%c0_225, %c0_226] : memref<1x32xf32, #tpu.memory_space<vmem>>, vector<1x32xf32>
    %424 = vector.shape_cast %423 : vector<1x32xf32> to vector<32xf32>
    %425 = vector.shape_cast %424 : vector<32xf32> to vector<1x32xf32>
    %426 = vector.broadcast %425 : vector<1x32xf32> to vector<8x32xf32>
    %427 = arith.addf %422, %426 : vector<8x32xf32>
    %cst_227 = arith.constant 0.000000e+00 : f32
    %428 = vector.broadcast %cst_227 : f32 to vector<8x32xf32>
    %429 = arith.cmpf oge, %427, %428 : vector<8x32xf32>
    %cst_228 = arith.constant 4.000000e-01 : f32
    %430 = vector.broadcast %cst_228 : f32 to vector<8x32xf32>
    %431 = arith.mulf %430, %427 : vector<8x32xf32>
    %432 = arith.select %429, %427, %431 : vector<8x32xi1>, vector<8x32xf32>
    %c0_229 = arith.constant 0 : index
    %c0_230 = arith.constant 0 : index
    %433 = vector.load %arg9[%c0_229, %c0_230] : memref<8x32xf32, #tpu.memory_space<vmem>>, vector<8x32xf32>
    tpu.vector_store %arg9[%c0_229, %c0_230], %432 {strides = array<i32>} : memref<8x32xf32, #tpu.memory_space<vmem>>, vector<8x32xf32>,
    return
  }
  func.func @transform_0(%arg0: i32) -> (i32, i32) {
    %c0_i32 = arith.constant 0 : i32
    %c0_i32_0 = arith.constant 0 : i32
    return %arg0, %c0_i32 : i32, i32
  }
  func.func @transform_1(%arg0: i32) -> (i32, i32) {
    %c0_i32 = arith.constant 0 : i32
    %c0_i32_0 = arith.constant 0 : i32
    %c0_i32_1 = arith.constant 0 : i32
    return %c0_i32, %c0_i32_0 : i32, i32
  }
  func.func @transform_2(%arg0: i32) -> (i32, i32) {
    %c0_i32 = arith.constant 0 : i32
    %c0_i32_0 = arith.constant 0 : i32
    %c0_i32_1 = arith.constant 0 : i32
    return %c0_i32, %c0_i32_0 : i32, i32
  }
  func.func @transform_3(%arg0: i32) -> (i32, i32) {
    %c0_i32 = arith.constant 0 : i32
    %c0_i32_0 = arith.constant 0 : i32
    %c0_i32_1 = arith.constant 0 : i32
    return %c0_i32, %c0_i32_0 : i32, i32
  }
  func.func @transform_4(%arg0: i32) -> (i32, i32) {
    %c0_i32 = arith.constant 0 : i32
    %c0_i32_0 = arith.constant 0 : i32
    %c0_i32_1 = arith.constant 0 : i32
    return %c0_i32, %c0_i32_0 : i32, i32
  }
  func.func @transform_5(%arg0: i32) -> (i32, i32) {
    %c0_i32 = arith.constant 0 : i32
    %c0_i32_0 = arith.constant 0 : i32
    %c0_i32_1 = arith.constant 0 : i32
    return %c0_i32, %c0_i32_0 : i32, i32
  }
  func.func @transform_6(%arg0: i32) -> (i32, i32) {
    %c0_i32 = arith.constant 0 : i32
    %c0_i32_0 = arith.constant 0 : i32
    %c0_i32_1 = arith.constant 0 : i32
    return %c0_i32, %c0_i32_0 : i32, i32
  }
  func.func @transform_7(%arg0: i32) -> (i32, i32) {
    %c0_i32 = arith.constant 0 : i32
    %c0_i32_0 = arith.constant 0 : i32
    %c0_i32_1 = arith.constant 0 : i32
    return %c0_i32, %c0_i32_0 : i32, i32
  }
  func.func @transform_8(%arg0: i32) -> (i32, i32) {
    %c0_i32 = arith.constant 0 : i32
    %c0_i32_0 = arith.constant 0 : i32
    return %arg0, %c0_i32 : i32, i32
  }
}

</mosaic_0001>

<llo_original>
// kernel: tpu_custom_call.1
$region0: #{tpu_custom_call.1}
  #allocation0 [shape = 'u32[]', space=smem, size = 0x4, offset = 0x4, fixed_abs, tag = 'smem constant byte address 0x4 - core index']
  #allocation1 [shape = 'u32[144,128]{1,0:T(1,128)}', space=vmem, size = 0x12000, scoped, tag = 'internal scratch']
  #allocation2 [shape = 'f32[8,96]{1,0:T(8,128)}', space=vmem, size = 0x1000, scoped, tag = 'scratch operand']
  #allocation3 [shape = 'f32[8,256]{1,0:T(8,128)}', space=vmem, size = 0x2000, scoped, tag = 'scratch operand']
  %s0 = inlined_call_operand.vmem [shape: f32[16,16], index: 0, kind: input, shape index: {}]
  %s1 = inlined_call_operand.vmem [shape: f32[16,256], index: 1, kind: input, shape index: {}]
  %s2 = inlined_call_operand.hbm [shape: f32[256,768], index: 2, kind: input, shape index: {}]
  %s3 = inlined_call_operand.hbm [shape: f32[256,256], index: 3, kind: input, shape index: {}]
  %s4 = inlined_call_operand.vmem [shape: f32[256,32], index: 4, kind: input, shape index: {}]
  %s5 = inlined_call_operand.vmem [shape: f32[6,256], index: 5, kind: input, shape index: {}]
  %s6 = inlined_call_operand.vmem [shape: f32[1,768], index: 6, kind: input, shape index: {}]
  %s7 = inlined_call_operand.vmem [shape: f32[1,32], index: 7, kind: input, shape index: {}]
  %s8 = inlined_call_operand.hbm [shape: f32[16,32], index: 8, kind: output, shape index: {}]
  %s9 = sld [smem:[#allocation0]]
  $region73: #{tpu_custom_call.1} parent=0
    _
  %s11 = ssub.s32 1, %s9
  %s12 = scalar_select 0, %s11, %s9
  $region1: #{tpu_custom_call.1} parent=0
    #allocation4 [shape = 'u8[786432]{0}', space=vmem, size = 0xc0000, scoped, tag = 'input window, operand 2, single buffered']
    #allocation5 [shape = 's32[2]{0}', space=sflag, size = 0x8, scoped, tag = 'scoped memory for tpu_custom_call.1']
    #allocation6 [shape = 's32[2]{0}', space=sflag, size = 0x8, scoped, tag = 'scoped memory for tpu_custom_call.1']
    #allocation7 [shape = 'u8[262144]{0}', space=vmem, size = 0x40000, scoped, tag = 'input window, operand 3, single buffered']
    #allocation8 [shape = 's32[1]{0}', space=sflag, size = 0x4, scoped, tag = 'scoped memory for tpu_custom_call.1']
    #allocation9 [shape = 'u8[8192]{0}', space=vmem, size = 0x2000, scoped, tag = 'output window, operand 0']
    %13 = vsyncpa [#allocation5], 0
    %14 = vsyncpa [#allocation8], 0
    %15 = vsyncpa [#allocation6], 0
    %s16 = scalar_lea.sflag [#allocation6], 1
    %17 = vsyncpa %s16, 0
    loop: start=0, step=1, limit=4
    $region2: #{tpu_custom_call.1} parent=1 // loop_pre_header
      _
    $region3: #{tpu_custom_call.1} parent=1 // loop_header
      %s19 = sphi 0, %s23
      %p20 = scmp.ge.s32.totalorder %s19, 4
      %s29 = sphi 0, %s31
      %s32 = sphi 0, %s29
      %s33 = sphi 0, %s32
      %s49 = sphi 0, %s33
      %s53 = sphi 0, %s53
      %s55 = sphi 0, %s53
      %s56 = sphi 0, %s55
      %s70 = sphi 0, %s56
      %s74 = sphi 0, %s74
      %s76 = sphi 0, %s74
      %s77 = sphi 0, %s76
      %s91 = sphi 0, %s77
      %s95 = sphi 0, %s95
      %s97 = sphi 0, %s95
      %s98 = sphi 0, %s97
      %s112 = sphi 0, %s98
      %s116 = sphi 0, %s116
      %s118 = sphi 0, %s116
      %s119 = sphi 0, %s118
      %s133 = sphi 0, %s119
      %s137 = sphi 0, %s137
      %s139 = sphi 0, %s137
      %s140 = sphi 0, %s139
      %s154 = sphi 0, %s140
      %s158 = sphi 0, %s158
      %s160 = sphi 0, %s158
      %s161 = sphi 0, %s160
      %s175 = sphi 0, %s161
      %s179 = sphi 0, %s179
      %s181 = sphi 0, %s179
      %s182 = sphi 0, %s181
      %s196 = sphi 0, %s182
      %s202 = sphi 0, %s204
      %s205 = sphi 0, %s202
      %s206 = sphi 0, %s205
      %s222 = sphi 0, %s206
    $region4: #{tpu_custom_call.1} parent=1 // loop_header_branch
      %22 = sbr.rel (%p20) target = $region8
    $region5: #{tpu_custom_call.1} parent=1 // loop_body
      %s24 = ssub.s32 %s19, 1
      %s25 = ssub.s32 %s19, 2
      %s26 = sadd.s32 %s19, 1
      %s27 = ssub.s32 %s19, %s26
      %p28 = scmp.eq.s32.totalorder %s27, 0
      %s30 = sadd.s32 %s29, 1
      %s31 = scalar_select %p28, %s29, %s30
      %p34 = pneg %p28
      %p35 = scmp.eq.s32.totalorder %s19, 1
      %p36 = por %p34, %p35
      %p37 = scmp.ne.s32.totalorder %s29, %s32
      %p38 = scmp.eq.s32.totalorder %s19, 0
      %p39 = por %p37, %p38
      %p40 = scmp.ne.s32.totalorder %s29, %s32
      %p41 = scmp.eq.s32.totalorder %s24, 1
      %p42 = por %p40, %p41
      %p43 = scmp.ne.s32.totalorder %s32, %s33
      %p44 = scmp.eq.s32.totalorder %s24, 0
      %p45 = por %p43, %p44
      %p46 = scmp.ne.s32.totalorder %s32, %s33
      %p47 = scmp.eq.s32.totalorder %s25, 1
      %p48 = por %p46, %p47
      %p50 = scmp.ne.s32.totalorder %s33, %s49
      %p51 = scmp.eq.s32.totalorder %s25, 0
      %p52 = por %p50, %p51
      %s54 = sadd.s32 %s53, 1
      %p57 = scmp.eq.s32.totalorder %s19, 1
      %p58 = scmp.ne.s32.totalorder %s53, %s55
      %p59 = scmp.eq.s32.totalorder %s19, 0
      %p60 = por %p58, %p59
      %p61 = scmp.ne.s32.totalorder %s53, %s55
      %p62 = scmp.eq.s32.totalorder %s24, 1
      %p63 = por %p61, %p62
      %p64 = scmp.ne.s32.totalorder %s55, %s56
      %p65 = scmp.eq.s32.totalorder %s24, 0
      %p66 = por %p64, %p65
      %p67 = scmp.ne.s32.totalorder %s55, %s56
      %p68 = scmp.eq.s32.totalorder %s25, 1
      %p69 = por %p67, %p68
      %p71 = scmp.ne.s32.totalorder %s56, %s70
      %p72 = scmp.eq.s32.totalorder %s25, 0
      %p73 = por %p71, %p72
      %s75 = sadd.s32 %s74, 1
      %p78 = scmp.eq.s32.totalorder %s19, 1
      %p79 = scmp.ne.s32.totalorder %s74, %s76
      %p80 = scmp.eq.s32.totalorder %s19, 0
      %p81 = por %p79, %p80
      %p82 = scmp.ne.s32.totalorder %s74, %s76
      %p83 = scmp.eq.s32.totalorder %s24, 1
      %p84 = por %p82, %p83
      %p85 = scmp.ne.s32.totalorder %s76, %s77
      %p86 = scmp.eq.s32.totalorder %s24, 0
      %p87 = por %p85, %p86
      %p88 = scmp.ne.s32.totalorder %s76, %s77
      %p89 = scmp.eq.s32.totalorder %s25, 1
      %p90 = por %p88, %p89
      %p92 = scmp.ne.s32.totalorder %s77, %s91
      %p93 = scmp.eq.s32.totalorder %s25, 0
      %p94 = por %p92, %p93
      %s96 = sadd.s32 %s95, 1
      %p99 = scmp.eq.s32.totalorder %s19, 1
      %p100 = scmp.ne.s32.totalorder %s95, %s97
      %p101 = scmp.eq.s32.totalorder %s19, 0
      %p102 = por %p100, %p101
      %p103 = scmp.ne.s32.totalorder %s95, %s97
      %p104 = scmp.eq.s32.totalorder %s24, 1
      %p105 = por %p103, %p104
      %p106 = scmp.ne.s32.totalorder %s97, %s98
      %p107 = scmp.eq.s32.totalorder %s24, 0
      %p108 = por %p106, %p107
      %p109 = scmp.ne.s32.totalorder %s97, %s98
      %p110 = scmp.eq.s32.totalorder %s25, 1
      %p111 = por %p109, %p110
      %p113 = scmp.ne.s32.totalorder %s98, %s112
      %p114 = scmp.eq.s32.totalorder %s25, 0
      %p115 = por %p113, %p114
      %s117 = sadd.s32 %s116, 1
      %p120 = scmp.eq.s32.totalorder %s19, 1
      %p121 = scmp.ne.s32.totalorder %s116, %s118
      %p122 = scmp.eq.s32.totalorder %s19, 0
      %p123 = por %p121, %p122
      %p124 = scmp.ne.s32.totalorder %s116, %s118
      %p125 = scmp.eq.s32.totalorder %s24, 1
      %p126 = por %p124, %p125
      %p127 = scmp.ne.s32.totalorder %s118, %s119
      %p128 = scmp.eq.s32.totalorder %s24, 0
      %p129 = por %p127, %p128
      %p130 = scmp.ne.s32.totalorder %s118, %s119
      %p131 = scmp.eq.s32.totalorder %s25, 1
      %p132 = por %p130, %p131
      %p134 = scmp.ne.s32.totalorder %s119, %s133
      %p135 = scmp.eq.s32.totalorder %s25, 0
      %p136 = por %p134, %p135
      %s138 = sadd.s32 %s137, 1
      %p141 = scmp.eq.s32.totalorder %s19, 1
      %p142 = scmp.ne.s32.totalorder %s137, %s139
      %p143 = scmp.eq.s32.totalorder %s19, 0
      %p144 = por %p142, %p143
      %p145 = scmp.ne.s32.totalorder %s137, %s139
      %p146 = scmp.eq.s32.totalorder %s24, 1
      %p147 = por %p145, %p146
      %p148 = scmp.ne.s32.totalorder %s139, %s140
      %p149 = scmp.eq.s32.totalorder %s24, 0
      %p150 = por %p148, %p149
      %p151 = scmp.ne.s32.totalorder %s139, %s140
      %p152 = scmp.eq.s32.totalorder %s25, 1
      %p153 = por %p151, %p152
      %p155 = scmp.ne.s32.totalorder %s140, %s154
      %p156 = scmp.eq.s32.totalorder %s25, 0
      %p157 = por %p155, %p156
      %s159 = sadd.s32 %s158, 1
      %p162 = scmp.eq.s32.totalorder %s19, 1
      %p163 = scmp.ne.s32.totalorder %s158, %s160
      %p164 = scmp.eq.s32.totalorder %s19, 0
      %p165 = por %p163, %p164
      %p166 = scmp.ne.s32.totalorder %s158, %s160
      %p167 = scmp.eq.s32.totalorder %s24, 1
      %p168 = por %p166, %p167
      %p169 = scmp.ne.s32.totalorder %s160, %s161
      %p170 = scmp.eq.s32.totalorder %s24, 0
      %p171 = por %p169, %p170
      %p172 = scmp.ne.s32.totalorder %s160, %s161
      %p173 = scmp.eq.s32.totalorder %s25, 1
      %p174 = por %p172, %p173
      %p176 = scmp.ne.s32.totalorder %s161, %s175
      %p177 = scmp.eq.s32.totalorder %s25, 0
      %p178 = por %p176, %p177
      %s180 = sadd.s32 %s179, 1
      %p183 = scmp.eq.s32.totalorder %s19, 1
      %p184 = scmp.ne.s32.totalorder %s179, %s181
      %p185 = scmp.eq.s32.totalorder %s19, 0
      %p186 = por %p184, %p185
      %p187 = scmp.ne.s32.totalorder %s179, %s181
      %p188 = scmp.eq.s32.totalorder %s24, 1
      %p189 = por %p187, %p188
      %p190 = scmp.ne.s32.totalorder %s181, %s182
      %p191 = scmp.eq.s32.totalorder %s24, 0
      %p192 = por %p190, %p191
      %p193 = scmp.ne.s32.totalorder %s181, %s182
      %p194 = scmp.eq.s32.totalorder %s25, 1
      %p195 = por %p193, %p194
      %p197 = scmp.ne.s32.totalorder %s182, %s196
      %p198 = scmp.eq.s32.totalorder %s25, 0
      %p199 = por %p197, %p198
      %s200 = ssub.s32 %s19, %s26
      %p201 = scmp.eq.s32.totalorder %s200, 0
      %s203 = sadd.s32 %s202, 1
      %s204 = scalar_select %p201, %s202, %s203
      %p207 = pneg %p201
      %p208 = scmp.eq.s32.totalorder %s19, 1
      %p209 = por %p207, %p208
      %p210 = scmp.ne.s32.totalorder %s202, %s205
      %p211 = scmp.eq.s32.totalorder %s19, 0
      %p212 = por %p210, %p211
      %p213 = scmp.ne.s32.totalorder %s202, %s205
      %p214 = scmp.eq.s32.totalorder %s24, 1
      %p215 = por %p213, %p214
      %p216 = scmp.ne.s32.totalorder %s205, %s206
      %p217 = scmp.eq.s32.totalorder %s24, 0
      %p218 = por %p216, %p217
      %p219 = scmp.ne.s32.totalorder %s205, %s206
      %p220 = scmp.eq.s32.totalorder %s25, 1
      %p221 = por %p219, %p220
      %p223 = scmp.ne.s32.totalorder %s206, %s222
      %p224 = scmp.eq.s32.totalorder %s25, 0
      %p225 = por %p223, %p224
      %p226 = scmp.le.s32.totalorder 1, %s19
      %p227 = scmp.lt.s32.totalorder %s19, 3
      %p228 = pnand %p226, %p227
      %p229 = pneg %p228
      // Predicated region
      $region9: #{tpu_custom_call.1} parent=5 // pred_check
        _
      $region10: #{tpu_custom_call.1} parent=5 // pred_check_branch
        %231 = sbr.rel (%p228) target = $region12
      $region11: #{tpu_custom_call.1} parent=5 // pred_region
        %s232 = ssub.s32 %s19, 1
        // Predicated region
        $region13: #{tpu_custom_call.1} parent=11 // pred_check
          %p233 = pneg %p66
        $region14: #{tpu_custom_call.1} parent=11 // pred_check_branch
          %235 = sbr.rel (%p233) target = $region16
        $region15: #{tpu_custom_call.1} parent=11 // pred_region
          _
        $region16: #{tpu_custom_call.1} parent=11 // pred_fallthru
          _
        // Predicated region
        $region17: #{tpu_custom_call.1} parent=11 // pred_check
          %p236 = pneg %p87
        $region18: #{tpu_custom_call.1} parent=11 // pred_check_branch
          %238 = sbr.rel (%p236) target = $region20
        $region19: #{tpu_custom_call.1} parent=11 // pred_region
          %s240 = ssub.s32 24576, 24576
          %241 = vsyncadd [#allocation5], %s240
          %s242 = sshll.u32 [#allocation4], 4
          %s243 = int_to_ptr.vmem [resolvable:$true] %s242
          %248 = dma.hbm_to_vmem [thread:$0]  %s2, 24576, %s243, [#allocation5], 768, 768, 48
        $region20: #{tpu_custom_call.1} parent=11 // pred_fallthru
          _
        // Predicated region
        $region21: #{tpu_custom_call.1} parent=11 // pred_check
          %p249 = pneg %p108
        $region22: #{tpu_custom_call.1} parent=11 // pred_check_branch
          %251 = sbr.rel (%p249) target = $region24
        $region23: #{tpu_custom_call.1} parent=11 // pred_region
          %s253 = ssub.s32 8192, 8192
          %254 = vsyncadd [#allocation8], %s253
          %s255 = sshll.u32 [#allocation7], 4
          %s256 = int_to_ptr.vmem [resolvable:$true] %s255
          %261 = dma.hbm_to_vmem [thread:$0]  %s3, 8192, %s256, [#allocation8], 256, 256, 16
        $region24: #{tpu_custom_call.1} parent=11 // pred_fallthru
          _
        // Predicated region
        $region25: #{tpu_custom_call.1} parent=11 // pred_check
          %p262 = pneg %p129
        $region26: #{tpu_custom_call.1} parent=11 // pred_check_branch
          %264 = sbr.rel (%p262) target = $region28
        $region27: #{tpu_custom_call.1} parent=11 // pred_region
          _
        $region28: #{tpu_custom_call.1} parent=11 // pred_fallthru
          _
        // Predicated region
        $region29: #{tpu_custom_call.1} parent=11 // pred_check
          %p265 = pneg %p150
        $region30: #{tpu_custom_call.1} parent=11 // pred_check_branch
          %267 = sbr.rel (%p265) target = $region32
        $region31: #{tpu_custom_call.1} parent=11 // pred_region
          _
        $region32: #{tpu_custom_call.1} parent=11 // pred_fallthru
          _
        // Predicated region
        $region33: #{tpu_custom_call.1} parent=11 // pred_check
          %p268 = pneg %p171
        $region34: #{tpu_custom_call.1} parent=11 // pred_check_branch
          %270 = sbr.rel (%p268) target = $region36
        $region35: #{tpu_custom_call.1} parent=11 // pred_region
          _
        $region36: #{tpu_custom_call.1} parent=11 // pred_fallthru
          _
        // Predicated region
        $region37: #{tpu_custom_call.1} parent=11 // pred_check
          %p271 = pneg %p192
        $region38: #{tpu_custom_call.1} parent=11 // pred_check_branch
          %273 = sbr.rel (%p271) target = $region40
        $region39: #{tpu_custom_call.1} parent=11 // pred_region
          _
        $region40: #{tpu_custom_call.1} parent=11 // pred_fallthru
          _
      $region12: #{tpu_custom_call.1} parent=5 // pred_fallthru
        _
      %p274 = scmp.lt.s32.totalorder %s19, 2
      // Predicated region
      $region41: #{tpu_custom_call.1} parent=5 // pred_check
        %p275 = pneg %p274
      $region42: #{tpu_custom_call.1} parent=5 // pred_check_branch
        %277 = sbr.rel (%p275) target = $region44
      $region43: #{tpu_custom_call.1} parent=5 // pred_region
        // Predicated region
        $region45: #{tpu_custom_call.1} parent=43 // pred_check
          %p278 = pneg %p39
        $region46: #{tpu_custom_call.1} parent=43 // pred_check_branch
          %280 = sbr.rel (%p278) target = $region48
        $region47: #{tpu_custom_call.1} parent=43 // pred_region
          %p281 = scmp.lt.s32.totalorder %s19, 1
          %s282 = scalar_select %p281, %s19, 1
          %s283 = smul.addr %s282, 8
          %s284 = scalar_lea.vmem %s0, %s283
        $region48: #{tpu_custom_call.1} parent=43 // pred_fallthru
          _
      $region44: #{tpu_custom_call.1} parent=5 // pred_fallthru
        _
      %p285 = scmp.le.s32.totalorder 1, %s19
      %p286 = scmp.lt.s32.totalorder %s19, 3
      %p287 = pnand %p285, %p286
      %p288 = pneg %p287
      // Predicated region
      $region49: #{tpu_custom_call.1} parent=5 // pred_check
        _
      $region50: #{tpu_custom_call.1} parent=5 // pred_check_branch
        %290 = sbr.rel (%p287) target = $region52
      $region51: #{tpu_custom_call.1} parent=5 // pred_region
        %s291 = ssub.s32 %s19, 1
        // Predicated region
        $region53: #{tpu_custom_call.1} parent=51 // pred_check
          %p292 = pneg %p87
        $region54: #{tpu_custom_call.1} parent=51 // pred_check_branch
          %294 = sbr.rel (%p292) target = $region56
        $region55: #{tpu_custom_call.1} parent=51 // pred_region
          %295 = dma.done [#allocation5], 24576
        $region56: #{tpu_custom_call.1} parent=51 // pred_fallthru
          _
        // Predicated region
        $region57: #{tpu_custom_call.1} parent=51 // pred_check
          %p296 = pneg %p108
        $region58: #{tpu_custom_call.1} parent=51 // pred_check_branch
          %298 = sbr.rel (%p296) target = $region60
        $region59: #{tpu_custom_call.1} parent=51 // pred_region
          %299 = dma.done [#allocation8], 8192
        $region60: #{tpu_custom_call.1} parent=51 // pred_fallthru
          _
        %p300 = scmp.lt.s32.totalorder %s24, 1
        %s301 = scalar_select %p300, %s24, 1
        %s302 = smul.addr %s301, 8
        %s303 = scalar_lea.vmem %s0, %s302
        %p304 = pneg %p45
        %p305 = pneg %p42
        %p306 = pneg %p66
        %p307 = pneg %p63
        %p308 = pneg %p87
        %p309 = pneg %p84
        %p310 = pneg %p108
        %p311 = pneg %p105
        %p312 = pneg %p129
        %p313 = pneg %p126
        %p314 = pneg %p150
        %p315 = pneg %p147
        %p316 = pneg %p171
        %p317 = pneg %p168
        %p318 = pneg %p192
        %p319 = pneg %p189
        %p320 = pneg %p218
        %p321 = pneg %p215
        %s322 = sand.u32 %s205, 1
        %s323 = scalar_lea.sflag [#allocation6], %s322
        %s324 = sand.u32 %s205, 1
        %s325 = smul.addr %s324, 8
        %s326 = scalar_lea.vmem [#allocation9], %s325
        %p327 = scmp.lt.s32.totalorder %s24, 1
        %s328 = scalar_select %p327, %s24, 1
        %s329 = smul.addr %s328, 8
        %s330 = scalar_lea.vmem %s0, %s329
        %v331 = vld [vmem:[%s5] ss:$8 sm:$0x3]
        %s332 = scalar_lea.vmem %s5, 1
        %v333 = vld [vmem:[%s332] ss:$8 sm:$0x3]
        %s334 = scalar_lea.vmem %s5, 2
        %v335 = vld [vmem:[%s334] ss:$8 sm:$0x3]
        %s336 = scalar_lea.vmem %s5, 3
        %v337 = vld [vmem:[%s336] ss:$8 sm:$0x3]
        %s338 = scalar_lea.vmem %s5, 4
        %v339 = vld [vmem:[%s338] ss:$8 sm:$0x3]
        %s340 = scalar_lea.vmem %s5, 5
        %v341 = vld [vmem:[%s340] ss:$8 sm:$0x3]
        %v342 = vld [vmem:[%s330] sm:$0xff]
        %v343 = vld [vmem:[%s1] sm:$0xff]
        %v344 = vld [vmem:[%s1 + $0x8] sm:$0xff]
        %v345 = vld [vmem:[%s1 + $0x10] sm:$0xff]
        %v346 = vld [vmem:[%s1 + $0x18] sm:$0xff]
        %v348 = vlaneseq
        %v349 = vshrl.u32 %v348, 7
        %v350 = vsub.s32 0, %v349
        %v351 = vrot.slane %v331, %v350
        %v352 = vlaneseq
        %v353 = vshrl.u32 %v352, 7
        %v354 = vsub.s32 1, %v353
        %v355 = vrot.slane %v331, %v354
        %vm358 = vcmask 130048
        %v360 = vsel %vm358, %v342, 0
        %362 = vmatprep.subr.mxu0 %v344
        %363 = vmatpush1.msra.mxu0 %v343
        %364 = vmatprep.subr.mxu0 %v346
        %365 = vmatpush1.msra.mxu0 %v345
        %366 = vmatprep.subr.mxu0 0.0
        %367 = vmatpush1.msra.mxu0 0.0
        %368 = vmatprep.subr.mxu0 0.0
        %369 = vmatpush1.msra.mxu0 0.0
        %370 = vmatprep.subr.mxu0 0.0
        %371 = vmatpush1.msra.mxu0 0.0
        %372 = vmatprep.subr.mxu0 0.0
        %373 = vmatpush1.msra.mxu0 0.0
        %374 = vmatprep.subr.mxu0 0.0
        %375 = vmatpush1.msra.mxu0 0.0
        %376 = vmatprep.subr.mxu0 0.0
        %377 = vmatpush1.msra.mxu0 0.0
        %378 = vmatprep.subr.mxu0 0.0
        %379 = vmatpush1.msra.mxu0 0.0
        %380 = vmatprep.subr.mxu0 0.0
        %381 = vmatpush1.msra.mxu0 0.0
        %382 = vmatprep.subr.mxu0 0.0
        %383 = vmatpush1.msra.mxu0 0.0
        %384 = vmatprep.subr.mxu0 0.0
        %385 = vmatpush1.msra.mxu0 0.0
        %386 = vmatprep.subr.mxu0 0.0
        %387 = vmatpush1.msra.mxu0 0.0
        %388 = vmatprep.subr.mxu0 0.0
        %389 = vmatpush1.msra.mxu0 0.0
        %390 = vmatprep.subr.mxu0 0.0
        %391 = vmatpush1.msra.mxu0 0.0
        %392 = vmatprep.subr.mxu0 0.0
        %393 = vmatpush1.msra.mxu0 0.0
        %394 = vmatprep.subr.mxu0 0.0
        %395 = vmatpush1.msra.mxu0 0.0
        %396 = vmatprep.subr.mxu0 0.0
        %397 = vmatpush1.msra.mxu0 0.0
        %398 = vmatprep.subr.mxu0 0.0
        %399 = vmatpush1.msra.mxu0 0.0
        %400 = vmatprep.subr.mxu0 0.0
        %401 = vmatpush1.msra.mxu0 0.0
        %402 = vmatprep.subr.mxu0 0.0
        %403 = vmatpush1.msra.mxu0 0.0
        %404 = vmatprep.subr.mxu0 0.0
        %405 = vmatpush1.msra.mxu0 0.0
        %406 = vmatprep.subr.mxu0 0.0
        %407 = vmatpush1.msra.mxu0 0.0
        %408 = vmatprep.subr.mxu0 0.0
        %409 = vmatpush1.msra.mxu0 0.0
        %410 = vmatprep.subr.mxu0 0.0
        %411 = vmatpush1.msra.mxu0 0.0
        %412 = vmatprep.subr.mxu0 0.0
        %413 = vmatpush1.msra.mxu0 0.0
        %414 = vmatprep.subr.mxu0 0.0
        %415 = vmatpush1.msra.mxu0 0.0
        %416 = vmatprep.subr.mxu0 0.0
        %417 = vmatpush1.msra.mxu0 0.0
        %418 = vmatprep.subr.mxu0 0.0
        %419 = vmatpush1.msra.mxu0 0.0
        %420 = vmatprep.subr.mxu0 0.0
        %421 = vmatpush1.msra.mxu0 0.0
        %422 = vmatprep.subr.mxu0 0.0
        %423 = vmatpush1.msra.mxu0 0.0
        %424 = vmatprep.subr.mxu0 0.0
        %425 = vmatpush1.msra.mxu0 0.0
        %426 = vmatprep.mubr.f32.mxu0 0.0
        %427 = vmatmul.mubr.f32.gmra.mrb[0].mxu0 %v360
        %v428 = vpop.f32.mrb[0].mxu0
        %v429 = vadd.f32 %v351, %v428
        %v430 = vpop.f32.mrb[0].mxu0
        %v431 = vadd.f32 %v355, %v430
        %432 = vdwg.mxu0
        %v433 = vadd.f32 %v429, %v431
        %434 = vadd.xlane.f32.xlu0 %v433
        %v435 = vpop.xlane.xlu0 %434
        %v436 = vrcp.pop 256.0
        %v437 = vmul.f32 %v435, %v436
        %v438 = vsub.f32 %v429, %v437
        %v439 = vsub.f32 %v431, %v437
        %v440 = vmul.f32 %v438, %v438
        %v441 = vmul.f32 %v439, %v439
        %v442 = vadd.f32 %v440, %v441
        %443 = vadd.xlane.f32.xlu0 %v442
        %v444 = vpop.xlane.xlu0 %443
        %v445 = vmul.f32 %v444, %v436
        %v446 = vadd.f32 %v445, 1e-05
        %v447 = vrsqrt.pop %v446
        %v448 = vmul.f32 %v438, %v447
        %v449 = vmul.f32 %v439, %v447
        %v451 = vlaneseq
        %v452 = vshrl.u32 %v451, 7
        %v453 = vsub.s32 0, %v452
        %v454 = vrot.slane %v333, %v453
        %v455 = vlaneseq
        %v456 = vshrl.u32 %v455, 7
        %v457 = vsub.s32 1, %v456
        %v458 = vrot.slane %v333, %v457
        %v461 = vmul.f32 %v448, %v454
        %v462 = vmul.f32 %v449, %v458
        %v464 = vlaneseq
        %v465 = vshrl.u32 %v464, 7
        %v466 = vsub.s32 0, %v465
        %v467 = vrot.slane %v335, %v466
        %v468 = vlaneseq
        %v469 = vshrl.u32 %v468, 7
        %v470 = vsub.s32 1, %v469
        %v471 = vrot.slane %v335, %v470
        %v474 = vadd.f32 %v461, %v467
        %v475 = vadd.f32 %v462, %v471
        %vm476 = vcmp.ge.f32.partialorder %v474, 0.0
        %vm477 = vcmp.ge.f32.partialorder %v475, 0.0
        %v478 = vmul.f32 %v474, 0.4
        %v479 = vmul.f32 %v475, 0.4
        %v480 = vsel %vm476, %v474, %v478
        %v481 = vsel %vm477, %v475, %v479
        %v482 = vld [vmem:[#allocation4] sm:$0xff]
        %v483 = vld [vmem:[#allocation4 + $0x8] sm:$0xff]
        %v484 = vld [vmem:[#allocation4 + $0x10] sm:$0xff]
        %v485 = vld [vmem:[#allocation4 + $0x18] sm:$0xff]
        %v486 = vld [vmem:[#allocation4 + $0x20] sm:$0xff]
        %v487 = vld [vmem:[#allocation4 + $0x28] sm:$0xff]
        %v488 = vld [vmem:[#allocation4 + $0x30] sm:$0xff]
        %v489 = vld [vmem:[#allocation4 + $0x38] sm:$0xff]
        %v490 = vld [vmem:[#allocation4 + $0x40] sm:$0xff]
        %v491 = vld [vmem:[#allocation4 + $0x48] sm:$0xff]
        %v492 = vld [vmem:[#allocation4 + $0x50] sm:$0xff]
        %v493 = vld [vmem:[#allocation4 + $0x58] sm:$0xff]
        %v494 = vld [vmem:[#allocation4 + $0x60] sm:$0xff]
        %v495 = vld [vmem:[#allocation4 + $0x68] sm:$0xff]
        %v496 = vld [vmem:[#allocation4 + $0x70] sm:$0xff]
        %v497 = vld [vmem:[#allocation4 + $0x78] sm:$0xff]
        %v498 = vld [vmem:[#allocation4 + $0x80] sm:$0xff]
        %v499 = vld [vmem:[#allocation4 + $0x88] sm:$0xff]
        %v500 = vld [vmem:[#allocation4 + $0x90] sm:$0xff]
        %v501 = vld [vmem:[#allocation4 + $0x98] sm:$0xff]
        %v502 = vld [vmem:[#allocation4 + $0xa0] sm:$0xff]
        %v503 = vld [vmem:[#allocation4 + $0xa8] sm:$0xff]
        %v504 = vld [vmem:[#allocation4 + $0xb0] sm:$0xff]
        %v505 = vld [vmem:[#allocation4 + $0xb8] sm:$0xff]
        %v506 = vld [vmem:[#allocation4 + $0xc0] sm:$0xff]
        %v507 = vld [vmem:[#allocation4 + $0xc8] sm:$0xff]
        %v508 = vld [vmem:[#allocation4 + $0xd0] sm:$0xff]
        %v509 = vld [vmem:[#allocation4 + $0xd8] sm:$0xff]
        %v510 = vld [vmem:[#allocation4 + $0xe0] sm:$0xff]
        %v511 = vld [vmem:[#allocation4 + $0xe8] sm:$0xff]
        %v512 = vld [vmem:[#allocation4 + $0xf0] sm:$0xff]
        %v513 = vld [vmem:[#allocation4 + $0xf8] sm:$0xff]
        %v514 = vld [vmem:[#allocation4 + $0x100] sm:$0xff]
        %v515 = vld [vmem:[#allocation4 + $0x108] sm:$0xff]
        %v516 = vld [vmem:[#allocation4 + $0x110] sm:$0xff]
        %v517 = vld [vmem:[#allocation4 + $0x118] sm:$0xff]
        %v518 = vld [vmem:[#allocation4 + $0x120] sm:$0xff]
        %v519 = vld [vmem:[#allocation4 + $0x128] sm:$0xff]
        %v520 = vld [vmem:[#allocation4 + $0x130] sm:$0xff]
        %v521 = vld [vmem:[#allocation4 + $0x138] sm:$0xff]
        %v522 = vld [vmem:[#allocation4 + $0x140] sm:$0xff]
        %v523 = vld [vmem:[#allocation4 + $0x148] sm:$0xff]
        %v524 = vld [vmem:[#allocation4 + $0x150] sm:$0xff]
        %v525 = vld [vmem:[#allocation4 + $0x158] sm:$0xff]
        %v526 = vld [vmem:[#allocation4 + $0x160] sm:$0xff]
        %v527 = vld [vmem:[#allocation4 + $0x168] sm:$0xff]
        %v528 = vld [vmem:[#allocation4 + $0x170] sm:$0xff]
        %v529 = vld [vmem:[#allocation4 + $0x178] sm:$0xff]
        %v530 = vld [vmem:[#allocation4 + $0x180] sm:$0xff]
        %v531 = vld [vmem:[#allocation4 + $0x188] sm:$0xff]
        %v532 = vld [vmem:[#allocation4 + $0x190] sm:$0xff]
        %v533 = vld [vmem:[#allocation4 + $0x198] sm:$0xff]
        %v534 = vld [vmem:[#allocation4 + $0x1a0] sm:$0xff]
        %v535 = vld [vmem:[#allocation4 + $0x1a8] sm:$0xff]
        %v536 = vld [vmem:[#allocation4 + $0x1b0] sm:$0xff]
        %v537 = vld [vmem:[#allocation4 + $0x1b8] sm:$0xff]
        %v538 = vld [vmem:[#allocation4 + $0x1c0] sm:$0xff]
        %v539 = vld [vmem:[#allocation4 + $0x1c8] sm:$0xff]
        %v540 = vld [vmem:[#allocation4 + $0x1d0] sm:$0xff]
        %v541 = vld [vmem:[#allocation4 + $0x1d8] sm:$0xff]
        %v542 = vld [vmem:[#allocation4 + $0x1e0] sm:$0xff]
        %v543 = vld [vmem:[#allocation4 + $0x1e8] sm:$0xff]
        %v544 = vld [vmem:[#allocation4 + $0x1f0] sm:$0xff]
        %v545 = vld [vmem:[#allocation4 + $0x1f8] sm:$0xff]
        %v546 = vld [vmem:[#allocation4 + $0x200] sm:$0xff]
        %v547 = vld [vmem:[#allocation4 + $0x208] sm:$0xff]
        %v548 = vld [vmem:[#allocation4 + $0x210] sm:$0xff]
        %v549 = vld [vmem:[#allocation4 + $0x218] sm:$0xff]
        %v550 = vld [vmem:[#allocation4 + $0x220] sm:$0xff]
        %v551 = vld [vmem:[#allocation4 + $0x228] sm:$0xff]
        %v552 = vld [vmem:[#allocation4 + $0x230] sm:$0xff]
        %v553 = vld [vmem:[#allocation4 + $0x238] sm:$0xff]
        %v554 = vld [vmem:[#allocation4 + $0x240] sm:$0xff]
        %v555 = vld [vmem:[#allocation4 + $0x248] sm:$0xff]
        %v556 = vld [vmem:[#allocation4 + $0x250] sm:$0xff]
        %v557 = vld [vmem:[#allocation4 + $0x258] sm:$0xff]
        %v558 = vld [vmem:[#allocation4 + $0x260] sm:$0xff]
        %v559 = vld [vmem:[#allocation4 + $0x268] sm:$0xff]
        %v560 = vld [vmem:[#allocation4 + $0x270] sm:$0xff]
        %v561 = vld [vmem:[#allocation4 + $0x278] sm:$0xff]
        %v562 = vld [vmem:[#allocation4 + $0x280] sm:$0xff]
        %v563 = vld [vmem:[#allocation4 + $0x288] sm:$0xff]
        %v564 = vld [vmem:[#allocation4 + $0x290] sm:$0xff]
        %v565 = vld [vmem:[#allocation4 + $0x298] sm:$0xff]
        %v566 = vld [vmem:[#allocation4 + $0x2a0] sm:$0xff]
        %v567 = vld [vmem:[#allocation4 + $0x2a8] sm:$0xff]
        %v568 = vld [vmem:[#allocation4 + $0x2b0] sm:$0xff]
        %v569 = vld [vmem:[#allocation4 + $0x2b8] sm:$0xff]
        %v570 = vld [vmem:[#allocation4 + $0x2c0] sm:$0xff]
        %v571 = vld [vmem:[#allocation4 + $0x2c8] sm:$0xff]
        %v572 = vld [vmem:[#allocation4 + $0x2d0] sm:$0xff]
        %v573 = vld [vmem:[#allocation4 + $0x2d8] sm:$0xff]
        %v574 = vld [vmem:[#allocation4 + $0x2e0] sm:$0xff]
        %v575 = vld [vmem:[#allocation4 + $0x2e8] sm:$0xff]
        %v576 = vld [vmem:[#allocation4 + $0x2f0] sm:$0xff]
        %v577 = vld [vmem:[#allocation4 + $0x2f8] sm:$0xff]
        %v578 = vld [vmem:[#allocation4 + $0x300] sm:$0xff]
        %v579 = vld [vmem:[#allocation4 + $0x308] sm:$0xff]
        %v580 = vld [vmem:[#allocation4 + $0x310] sm:$0xff]
        %v581 = vld [vmem:[#allocation4 + $0x318] sm:$0xff]
        %v582 = vld [vmem:[#allocation4 + $0x320] sm:$0xff]
        %v583 = vld [vmem:[#allocation4 + $0x328] sm:$0xff]
        %v584 = vld [vmem:[#allocation4 + $0x330] sm:$0xff]
        %v585 = vld [vmem:[#allocation4 + $0x338] sm:$0xff]
        %v586 = vld [vmem:[#allocation4 + $0x340] sm:$0xff]
        %v587 = vld [vmem:[#allocation4 + $0x348] sm:$0xff]
        %v588 = vld [vmem:[#allocation4 + $0x350] sm:$0xff]
        %v589 = vld [vmem:[#allocation4 + $0x358] sm:$0xff]
        %v590 = vld [vmem:[#allocation4 + $0x360] sm:$0xff]
        %v591 = vld [vmem:[#allocation4 + $0x368] sm:$0xff]
        %v592 = vld [vmem:[#allocation4 + $0x370] sm:$0xff]
        %v593 = vld [vmem:[#allocation4 + $0x378] sm:$0xff]
        %v594 = vld [vmem:[#allocation4 + $0x380] sm:$0xff]
        %v595 = vld [vmem:[#allocation4 + $0x388] sm:$0xff]
        %v596 = vld [vmem:[#allocation4 + $0x390] sm:$0xff]
        %v597 = vld [vmem:[#allocation4 + $0x398] sm:$0xff]
        %v598 = vld [vmem:[#allocation4 + $0x3a0] sm:$0xff]
        %v599 = vld [vmem:[#allocation4 + $0x3a8] sm:$0xff]
        %v600 = vld [vmem:[#allocation4 + $0x3b0] sm:$0xff]
        %v601 = vld [vmem:[#allocation4 + $0x3b8] sm:$0xff]
        %v602 = vld [vmem:[#allocation4 + $0x3c0] sm:$0xff]
        %v603 = vld [vmem:[#allocation4 + $0x3c8] sm:$0xff]
        %v604 = vld [vmem:[#allocation4 + $0x3d0] sm:$0xff]
        %v605 = vld [vmem:[#allocation4 + $0x3d8] sm:$0xff]
        %v606 = vld [vmem:[#allocation4 + $0x3e0] sm:$0xff]
        %v607 = vld [vmem:[#allocation4 + $0x3e8] sm:$0xff]
        %v608 = vld [vmem:[#allocation4 + $0x3f0] sm:$0xff]
        %v609 = vld [vmem:[#allocation4 + $0x3f8] sm:$0xff]
        %v610 = vld [vmem:[#allocation4 + $0x400] sm:$0xff]
        %v611 = vld [vmem:[#allocation4 + $0x408] sm:$0xff]
        %v612 = vld [vmem:[#allocation4 + $0x410] sm:$0xff]
        %v613 = vld [vmem:[#allocation4 + $0x418] sm:$0xff]
        %v614 = vld [vmem:[#allocation4 + $0x420] sm:$0xff]
        %v615 = vld [vmem:[#allocation4 + $0x428] sm:$0xff]
        %v616 = vld [vmem:[#allocation4 + $0x430] sm:$0xff]
        %v617 = vld [vmem:[#allocation4 + $0x438] sm:$0xff]
        %v618 = vld [vmem:[#allocation4 + $0x440] sm:$0xff]
        %v619 = vld [vmem:[#allocation4 + $0x448] sm:$0xff]
        %v620 = vld [vmem:[#allocation4 + $0x450] sm:$0xff]
        %v621 = vld [vmem:[#allocation4 + $0x458] sm:$0xff]
        %v622 = vld [vmem:[#allocation4 + $0x460] sm:$0xff]
        %v623 = vld [vmem:[#allocation4 + $0x468] sm:$0xff]
        %v624 = vld [vmem:[#allocation4 + $0x470] sm:$0xff]
        %v625 = vld [vmem:[#allocation4 + $0x478] sm:$0xff]
        %v626 = vld [vmem:[#allocation4 + $0x480] sm:$0xff]
        %v627 = vld [vmem:[#allocation4 + $0x488] sm:$0xff]
        %v628 = vld [vmem:[#allocation4 + $0x490] sm:$0xff]
        %v629 = vld [vmem:[#allocation4 + $0x498] sm:$0xff]
        %v630 = vld [vmem:[#allocation4 + $0x4a0] sm:$0xff]
        %v631 = vld [vmem:[#allocation4 + $0x4a8] sm:$0xff]
        %v632 = vld [vmem:[#allocation4 + $0x4b0] sm:$0xff]
        %v633 = vld [vmem:[#allocation4 + $0x4b8] sm:$0xff]
        %v634 = vld [vmem:[#allocation4 + $0x4c0] sm:$0xff]
        %v635 = vld [vmem:[#allocation4 + $0x4c8] sm:$0xff]
        %v636 = vld [vmem:[#allocation4 + $0x4d0] sm:$0xff]
        %v637 = vld [vmem:[#allocation4 + $0x4d8] sm:$0xff]
        %v638 = vld [vmem:[#allocation4 + $0x4e0] sm:$0xff]
        %v639 = vld [vmem:[#allocation4 + $0x4e8] sm:$0xff]
        %v640 = vld [vmem:[#allocation4 + $0x4f0] sm:$0xff]
        %v641 = vld [vmem:[#allocation4 + $0x4f8] sm:$0xff]
        %v642 = vld [vmem:[#allocation4 + $0x500] sm:$0xff]
        %v643 = vld [vmem:[#allocation4 + $0x508] sm:$0xff]
        %v644 = vld [vmem:[#allocation4 + $0x510] sm:$0xff]
        %v645 = vld [vmem:[#allocation4 + $0x518] sm:$0xff]
        %v646 = vld [vmem:[#allocation4 + $0x520] sm:$0xff]
        %v647 = vld [vmem:[#allocation4 + $0x528] sm:$0xff]
        %v648 = vld [vmem:[#allocation4 + $0x530] sm:$0xff]
        %v649 = vld [vmem:[#allocation4 + $0x538] sm:$0xff]
        %v650 = vld [vmem:[#allocation4 + $0x540] sm:$0xff]
        %v651 = vld [vmem:[#allocation4 + $0x548] sm:$0xff]
        %v652 = vld [vmem:[#allocation4 + $0x550] sm:$0xff]
        %v653 = vld [vmem:[#allocation4 + $0x558] sm:$0xff]
        %v654 = vld [vmem:[#allocation4 + $0x560] sm:$0xff]
        %v655 = vld [vmem:[#allocation4 + $0x568] sm:$0xff]
        %v656 = vld [vmem:[#allocation4 + $0x570] sm:$0xff]
        %v657 = vld [vmem:[#allocation4 + $0x578] sm:$0xff]
        %v658 = vld [vmem:[#allocation4 + $0x580] sm:$0xff]
        %v659 = vld [vmem:[#allocation4 + $0x588] sm:$0xff]
        %v660 = vld [vmem:[#allocation4 + $0x590] sm:$0xff]
        %v661 = vld [vmem:[#allocation4 + $0x598] sm:$0xff]
        %v662 = vld [vmem:[#allocation4 + $0x5a0] sm:$0xff]
        %v663 = vld [vmem:[#allocation4 + $0x5a8] sm:$0xff]
        %v664 = vld [vmem:[#allocation4 + $0x5b0] sm:$0xff]
        %v665 = vld [vmem:[#allocation4 + $0x5b8] sm:$0xff]
        %v666 = vld [vmem:[#allocation4 + $0x5c0] sm:$0xff]
        %v667 = vld [vmem:[#allocation4 + $0x5c8] sm:$0xff]
        %v668 = vld [vmem:[#allocation4 + $0x5d0] sm:$0xff]
        %v669 = vld [vmem:[#allocation4 + $0x5d8] sm:$0xff]
        %v670 = vld [vmem:[#allocation4 + $0x5e0] sm:$0xff]
        %v671 = vld [vmem:[#allocation4 + $0x5e8] sm:$0xff]
        %v672 = vld [vmem:[#allocation4 + $0x5f0] sm:$0xff]
        %v673 = vld [vmem:[#allocation4 + $0x5f8] sm:$0xff]
        %v674 = vld [vmem:[%s6] sm:$0x3f]
        %v676 = vlaneseq
        %v677 = vshrl.u32 %v676, 7
        %v678 = vsub.s32 0, %v677
        %v679 = vrot.slane %v674, %v678
        %v680 = vlaneseq
        %v681 = vshrl.u32 %v680, 7
        %v682 = vsub.s32 1, %v681
        %v683 = vrot.slane %v674, %v682
        %v684 = vlaneseq
        %v685 = vshrl.u32 %v684, 7
        %v686 = vsub.s32 2, %v685
        %v687 = vrot.slane %v674, %v686
        %v688 = vlaneseq
        %v689 = vshrl.u32 %v688, 7
        %v690 = vsub.s32 3, %v689
        %v691 = vrot.slane %v674, %v690
        %v692 = vlaneseq
        %v693 = vshrl.u32 %v692, 7
        %v694 = vsub.s32 4, %v693
        %v695 = vrot.slane %v674, %v694
        %v696 = vlaneseq
        %v697 = vshrl.u32 %v696, 7
        %v698 = vsub.s32 5, %v697
        %v699 = vrot.slane %v674, %v698
        %706 = vmatprep.subr.mxu0 %v483
        %707 = vmatpush1.msra.mxu0 %v482
        %708 = vmatprep.subr.mxu0 %v489
        %709 = vmatpush1.msra.mxu0 %v488
        %710 = vmatprep.subr.mxu0 %v495
        %711 = vmatpush1.msra.mxu0 %v494
        %712 = vmatprep.subr.mxu0 %v501
        %713 = vmatpush1.msra.mxu0 %v500
        %714 = vmatprep.subr.mxu0 %v507
        %715 = vmatpush1.msra.mxu0 %v506
        %716 = vmatprep.subr.mxu0 %v513
        %717 = vmatpush1.msra.mxu0 %v512
        %718 = vmatprep.subr.mxu0 %v519
        %719 = vmatpush1.msra.mxu0 %v518
        %720 = vmatprep.subr.mxu0 %v525
        %721 = vmatpush1.msra.mxu0 %v524
        %722 = vmatprep.subr.mxu0 %v531
        %723 = vmatpush1.msra.mxu0 %v530
        %724 = vmatprep.subr.mxu0 %v537
        %725 = vmatpush1.msra.mxu0 %v536
        %726 = vmatprep.subr.mxu0 %v543
        %727 = vmatpush1.msra.mxu0 %v542
        %728 = vmatprep.subr.mxu0 %v549
        %729 = vmatpush1.msra.mxu0 %v548
        %730 = vmatprep.subr.mxu0 %v555
        %731 = vmatpush1.msra.mxu0 %v554
        %732 = vmatprep.subr.mxu0 %v561
        %733 = vmatpush1.msra.mxu0 %v560
        %734 = vmatprep.subr.mxu0 %v567
        %735 = vmatpush1.msra.mxu0 %v566
        %736 = vmatprep.subr.mxu0 %v573
        %737 = vmatpush1.msra.mxu0 %v572
        %738 = vmatprep.subr.mxu0 %v579
        %739 = vmatpush1.msra.mxu0 %v578
        %740 = vmatprep.subr.mxu0 %v585
        %741 = vmatpush1.msra.mxu0 %v584
        %742 = vmatprep.subr.mxu0 %v591
        %743 = vmatpush1.msra.mxu0 %v590
        %744 = vmatprep.subr.mxu0 %v597
        %745 = vmatpush1.msra.mxu0 %v596
        %746 = vmatprep.subr.mxu0 %v603
        %747 = vmatpush1.msra.mxu0 %v602
        %748 = vmatprep.subr.mxu0 %v609
        %749 = vmatpush1.msra.mxu0 %v608
        %750 = vmatprep.subr.mxu0 %v615
        %751 = vmatpush1.msra.mxu0 %v614
        %752 = vmatprep.subr.mxu0 %v621
        %753 = vmatpush1.msra.mxu0 %v620
        %754 = vmatprep.subr.mxu0 %v627
        %755 = vmatpush1.msra.mxu0 %v626
        %756 = vmatprep.subr.mxu0 %v633
        %757 = vmatpush1.msra.mxu0 %v632
        %758 = vmatprep.subr.mxu0 %v639
        %759 = vmatpush1.msra.mxu0 %v638
        %760 = vmatprep.subr.mxu0 %v645
        %761 = vmatpush1.msra.mxu0 %v644
        %762 = vmatprep.subr.mxu0 %v651
        %763 = vmatpush1.msra.mxu0 %v650
        %764 = vmatprep.subr.mxu0 %v657
        %765 = vmatpush1.msra.mxu0 %v656
        %766 = vmatprep.subr.mxu0 %v663
        %767 = vmatpush1.msra.mxu0 %v662
        %768 = vmatprep.subr.mxu0 %v669
        %769 = vmatpush1.msra.mxu0 %v668
        %770 = vmatprep.mubr.f32.mxu0 %v481
        %771 = vmatmul.mubr.f32.gmra.mrb[0].mxu0 %v480
        %v772 = vpop.f32.mrb[0].mxu0
        %v773 = vadd.f32 %v679, %v772
        %v774 = vpop.f32.mrb[0].mxu0
        %v775 = vadd.f32 %v683, %v774
        %776 = vdwg.mxu0
        %777 = vmatprep.subr.mxu0 %v485
        %778 = vmatpush1.msra.mxu0 %v484
        %779 = vmatprep.subr.mxu0 %v491
        %780 = vmatpush1.msra.mxu0 %v490
        %781 = vmatprep.subr.mxu0 %v497
        %782 = vmatpush1.msra.mxu0 %v496
        %783 = vmatprep.subr.mxu0 %v503
        %784 = vmatpush1.msra.mxu0 %v502
        %785 = vmatprep.subr.mxu0 %v509
        %786 = vmatpush1.msra.mxu0 %v508
        %787 = vmatprep.subr.mxu0 %v515
        %788 = vmatpush1.msra.mxu0 %v514
        %789 = vmatprep.subr.mxu0 %v521
        %790 = vmatpush1.msra.mxu0 %v520
        %791 = vmatprep.subr.mxu0 %v527
        %792 = vmatpush1.msra.mxu0 %v526
        %793 = vmatprep.subr.mxu0 %v533
        %794 = vmatpush1.msra.mxu0 %v532
        %795 = vmatprep.subr.mxu0 %v539
        %796 = vmatpush1.msra.mxu0 %v538
        %797 = vmatprep.subr.mxu0 %v545
        %798 = vmatpush1.msra.mxu0 %v544
        %799 = vmatprep.subr.mxu0 %v551
        %800 = vmatpush1.msra.mxu0 %v550
        %801 = vmatprep.subr.mxu0 %v557
        %802 = vmatpush1.msra.mxu0 %v556
        %803 = vmatprep.subr.mxu0 %v563
        %804 = vmatpush1.msra.mxu0 %v562
        %805 = vmatprep.subr.mxu0 %v569
        %806 = vmatpush1.msra.mxu0 %v568
        %807 = vmatprep.subr.mxu0 %v575
        %808 = vmatpush1.msra.mxu0 %v574
        %809 = vmatprep.subr.mxu0 %v581
        %810 = vmatpush1.msra.mxu0 %v580
        %811 = vmatprep.subr.mxu0 %v587
        %812 = vmatpush1.msra.mxu0 %v586
        %813 = vmatprep.subr.mxu0 %v593
        %814 = vmatpush1.msra.mxu0 %v592
        %815 = vmatprep.subr.mxu0 %v599
        %816 = vmatpush1.msra.mxu0 %v598
        %817 = vmatprep.subr.mxu0 %v605
        %818 = vmatpush1.msra.mxu0 %v604
        %819 = vmatprep.subr.mxu0 %v611
        %820 = vmatpush1.msra.mxu0 %v610
        %821 = vmatprep.subr.mxu0 %v617
        %822 = vmatpush1.msra.mxu0 %v616
        %823 = vmatprep.subr.mxu0 %v623
        %824 = vmatpush1.msra.mxu0 %v622
        %825 = vmatprep.subr.mxu0 %v629
        %826 = vmatpush1.msra.mxu0 %v628
        %827 = vmatprep.subr.mxu0 %v635
        %828 = vmatpush1.msra.mxu0 %v634
        %829 = vmatprep.subr.mxu0 %v641
        %830 = vmatpush1.msra.mxu0 %v640
        %831 = vmatprep.subr.mxu0 %v647
        %832 = vmatpush1.msra.mxu0 %v646
        %833 = vmatprep.subr.mxu0 %v653
        %834 = vmatpush1.msra.mxu0 %v652
        %835 = vmatprep.subr.mxu0 %v659
        %836 = vmatpush1.msra.mxu0 %v658
        %837 = vmatprep.subr.mxu0 %v665
        %838 = vmatpush1.msra.mxu0 %v664
        %839 = vmatprep.subr.mxu0 %v671
        %840 = vmatpush1.msra.mxu0 %v670
        %841 = vmatprep.mubr.f32.mxu0 %v481
        %842 = vmatmul.mubr.f32.gmra.mrb[0].mxu0 %v480
        %v843 = vpop.f32.mrb[0].mxu0
        %v844 = vadd.f32 %v687, %v843
        %v845 = vpop.f32.mrb[0].mxu0
        %v846 = vadd.f32 %v691, %v845
        %847 = vdwg.mxu0
        %848 = vmatprep.subr.mxu0 %v487
        %849 = vmatpush1.msra.mxu0 %v486
        %850 = vmatprep.subr.mxu0 %v493
        %851 = vmatpush1.msra.mxu0 %v492
        %852 = vmatprep.subr.mxu0 %v499
        %853 = vmatpush1.msra.mxu0 %v498
        %854 = vmatprep.subr.mxu0 %v505
        %855 = vmatpush1.msra.mxu0 %v504
        %856 = vmatprep.subr.mxu0 %v511
        %857 = vmatpush1.msra.mxu0 %v510
        %858 = vmatprep.subr.mxu0 %v517
        %859 = vmatpush1.msra.mxu0 %v516
        %860 = vmatprep.subr.mxu0 %v523
        %861 = vmatpush1.msra.mxu0 %v522
        %862 = vmatprep.subr.mxu0 %v529
        %863 = vmatpush1.msra.mxu0 %v528
        %864 = vmatprep.subr.mxu0 %v535
        %865 = vmatpush1.msra.mxu0 %v534
        %866 = vmatprep.subr.mxu0 %v541
        %867 = vmatpush1.msra.mxu0 %v540
        %868 = vmatprep.subr.mxu0 %v547
        %869 = vmatpush1.msra.mxu0 %v546
        %870 = vmatprep.subr.mxu0 %v553
        %871 = vmatpush1.msra.mxu0 %v552
        %872 = vmatprep.subr.mxu0 %v559
        %873 = vmatpush1.msra.mxu0 %v558
        %874 = vmatprep.subr.mxu0 %v565
        %875 = vmatpush1.msra.mxu0 %v564
        %876 = vmatprep.subr.mxu0 %v571
        %877 = vmatpush1.msra.mxu0 %v570
        %878 = vmatprep.subr.mxu0 %v577
        %879 = vmatpush1.msra.mxu0 %v576
        %880 = vmatprep.subr.mxu0 %v583
        %881 = vmatpush1.msra.mxu0 %v582
        %882 = vmatprep.subr.mxu0 %v589
        %883 = vmatpush1.msra.mxu0 %v588
        %884 = vmatprep.subr.mxu0 %v595
        %885 = vmatpush1.msra.mxu0 %v594
        %886 = vmatprep.subr.mxu0 %v601
        %887 = vmatpush1.msra.mxu0 %v600
        %888 = vmatprep.subr.mxu0 %v607
        %889 = vmatpush1.msra.mxu0 %v606
        %890 = vmatprep.subr.mxu0 %v613
        %891 = vmatpush1.msra.mxu0 %v612
        %892 = vmatprep.subr.mxu0 %v619
        %893 = vmatpush1.msra.mxu0 %v618
        %894 = vmatprep.subr.mxu0 %v625
        %895 = vmatpush1.msra.mxu0 %v624
        %896 = vmatprep.subr.mxu0 %v631
        %897 = vmatpush1.msra.mxu0 %v630
        %898 = vmatprep.subr.mxu0 %v637
        %899 = vmatpush1.msra.mxu0 %v636
        %900 = vmatprep.subr.mxu0 %v643
        %901 = vmatpush1.msra.mxu0 %v642
        %902 = vmatprep.subr.mxu0 %v649
        %903 = vmatpush1.msra.mxu0 %v648
        %904 = vmatprep.subr.mxu0 %v655
        %905 = vmatpush1.msra.mxu0 %v654
        %906 = vmatprep.subr.mxu0 %v661
        %907 = vmatpush1.msra.mxu0 %v660
        %908 = vmatprep.subr.mxu0 %v667
        %909 = vmatpush1.msra.mxu0 %v666
        %910 = vmatprep.subr.mxu0 %v673
        %911 = vmatpush1.msra.mxu0 %v672
        %912 = vmatprep.mubr.f32.mxu0 %v481
        %913 = vmatmul.mubr.f32.gmra.mrb[0].mxu0 %v480
        %v914 = vpop.f32.mrb[0].mxu0
        %v915 = vadd.f32 %v695, %v914
        %v916 = vpop.f32.mrb[0].mxu0
        %v917 = vadd.f32 %v699, %v916
        %918 = vdwg.mxu0
        %vm919 = vcmask 778240
        %920 = vst.msk [vmem:[#allocation2] sm:$0x1] %vm919, %v773
        %923 = vrot.lane.b32.xlu0 %v773, 32
        %v924 = vpop.permute.xlu0 %923
        %925 = vrot.lane.b32.xlu0 %v775, 32
        %v926 = vpop.permute.xlu0 %925
        %vm927 = vcmask 261120
        %v928 = vsel %vm927, %v924, %v926
        %930 = vst.msk [vmem:[#allocation2 + $0x1] sm:$0x1] %vm919, %v928
        %932 = vrot.lane.b32.xlu0 %v775, 64
        %v933 = vpop.permute.xlu0 %932
        %934 = vrot.lane.b32.xlu0 %v844, 64
        %v935 = vpop.permute.xlu0 %934
        %vm936 = vcmask 523264
        %v937 = vsel %vm936, %v933, %v935
        %939 = vst.msk [vmem:[#allocation2 + $0x2] sm:$0x1] %vm919, %v937
        %940 = vrot.lane.b32.xlu0 %v844, 96
        %v941 = vpop.permute.xlu0 %940
        %943 = vst.msk [vmem:[#allocation2 + $0x3] sm:$0x1] %vm919, %v941
        %944 = vst.msk [vmem:[#allocation2 + $0x4] sm:$0x1] %vm919, %v846
        %947 = vrot.lane.b32.xlu0 %v846, 32
        %v948 = vpop.permute.xlu0 %947
        %949 = vrot.lane.b32.xlu0 %v915, 32
        %v950 = vpop.permute.xlu0 %949
        %v951 = vsel %vm927, %v948, %v950
        %953 = vst.msk [vmem:[#allocation2 + $0x5] sm:$0x1] %vm919, %v951
        %955 = vrot.lane.b32.xlu0 %v915, 64
        %v956 = vpop.permute.xlu0 %955
        %957 = vrot.lane.b32.xlu0 %v917, 64
        %v958 = vpop.permute.xlu0 %957
        %v959 = vsel %vm936, %v956, %v958
        %961 = vst.msk [vmem:[#allocation2 + $0x6] sm:$0x1] %vm919, %v959
        %962 = vrot.lane.b32.xlu0 %v917, 96
        %v963 = vpop.permute.xlu0 %962
        %965 = vst.msk [vmem:[#allocation2 + $0x7] sm:$0x1] %vm919, %v963
        %v966 = vld [vmem:[#allocation2] sm:$0xff]
        %968 = vrot.lane.b32.xlu0 %v966, 96
        %v969 = vpop.permute.xlu0 %968
        %v970 = vsel %vm927, %v966, 0
        %v972 = vsel %vm927, %v969, 0
        %974 = vmatprep.subr.mxu0 0.0
        %975 = vmatpush1.xpose.msra.mxu0 %v972
        %976 = vmatprep.subr.mxu0 0.0
        %977 = vmatpush1.xpose.msra.mxu0 0.0
        %978 = vmatprep.subr.mxu0 0.0
        %979 = vmatpush1.xpose.msra.mxu0 0.0
        %980 = vmatprep.subr.mxu0 0.0
        %981 = vmatpush1.xpose.msra.mxu0 0.0
        %982 = vmatprep.subr.mxu0 0.0
        %983 = vmatpush1.xpose.msra.mxu0 0.0
        %984 = vmatprep.subr.mxu0 0.0
        %985 = vmatpush1.xpose.msra.mxu0 0.0
        %986 = vmatprep.subr.mxu0 0.0
        %987 = vmatpush1.xpose.msra.mxu0 0.0
        %988 = vmatprep.subr.mxu0 0.0
        %989 = vmatpush1.xpose.msra.mxu0 0.0
        %990 = vmatprep.subr.mxu0 0.0
        %991 = vmatpush1.xpose.msra.mxu0 0.0
        %992 = vmatprep.subr.mxu0 0.0
        %993 = vmatpush1.xpose.msra.mxu0 0.0
        %994 = vmatprep.subr.mxu0 0.0
        %995 = vmatpush1.xpose.msra.mxu0 0.0
        %996 = vmatprep.subr.mxu0 0.0
        %997 = vmatpush1.xpose.msra.mxu0 0.0
        %998 = vmatprep.subr.mxu0 0.0
        %999 = vmatpush1.xpose.msra.mxu0 0.0
        %1000 = vmatprep.subr.mxu0 0.0
        %1001 = vmatpush1.xpose.msra.mxu0 0.0
        %1002 = vmatprep.subr.mxu0 0.0
        %1003 = vmatpush1.xpose.msra.mxu0 0.0
        %1004 = vmatprep.subr.mxu0 0.0
        %1005 = vmatpush1.xpose.msra.mxu0 0.0
        %1006 = vmatprep.subr.mxu0 0.0
        %1007 = vmatpush1.xpose.msra.mxu0 0.0
        %1008 = vmatprep.subr.mxu0 0.0
        %1009 = vmatpush1.xpose.msra.mxu0 0.0
        %1010 = vmatprep.subr.mxu0 0.0
        %1011 = vmatpush1.xpose.msra.mxu0 0.0
        %1012 = vmatprep.subr.mxu0 0.0
        %1013 = vmatpush1.xpose.msra.mxu0 0.0
        %1014 = vmatprep.subr.mxu0 0.0
        %1015 = vmatpush1.xpose.msra.mxu0 0.0
        %1016 = vmatprep.subr.mxu0 0.0
        %1017 = vmatpush1.xpose.msra.mxu0 0.0
        %1018 = vmatprep.subr.mxu0 0.0
        %1019 = vmatpush1.xpose.msra.mxu0 0.0
        %1020 = vmatprep.subr.mxu0 0.0
        %1021 = vmatpush1.xpose.msra.mxu0 0.0
        %1022 = vmatprep.subr.mxu0 0.0
        %1023 = vmatpush1.xpose.msra.mxu0 0.0
        %1024 = vmatprep.subr.mxu0 0.0
        %1025 = vmatpush1.xpose.msra.mxu0 0.0
        %1026 = vmatprep.subr.mxu0 0.0
        %1027 = vmatpush1.xpose.msra.mxu0 0.0
        %1028 = vmatprep.subr.mxu0 0.0
        %1029 = vmatpush1.xpose.msra.mxu0 0.0
        %1030 = vmatprep.subr.mxu0 0.0
        %1031 = vmatpush1.xpose.msra.mxu0 0.0
        %1032 = vmatprep.subr.mxu0 0.0
        %1033 = vmatpush1.xpose.msra.mxu0 0.0
        %1034 = vmatprep.subr.mxu0 0.0
        %1035 = vmatpush1.xpose.msra.mxu0 0.0
        %1036 = vmatprep.subr.mxu0 0.0
        %1037 = vmatpush1.xpose.msra.mxu0 0.0
        %1038 = vmatprep.mubr.f32.mxu0 0.0
        %1039 = vmatmul.mubr.f32.gmra.mrb[0].mxu0 %v970
        %v1040 = vpop.f32.mrb[0].mxu0
        %v1041 = vadd.f32 0.0, %v1040
        %v1042 = vpop.f32.mrb[0].mxu0
        %1043 = vdwg.mxu0
        %vm1044 = vcmask 64512
        %v1045 = vsel %vm1044, %v1041, -inf
        %1046 = vmax.xlane.f32.xlu0 %v1045
        %v1047 = vpop.xlane.xlu0 %1046
        %v1048 = vsub.f32 %v1041, %v1047
        %v1049 = vmul.f32 %v1048, 1.442695
        %v1050 = vpow.pop %v1049
        %v1051 = vsel %vm1044, %v1050, 0.0
        %1052 = vadd.xlane.f32.xlu0 %v1051
        %v1053 = vpop.xlane.xlu0 %1052
        %v1054 = vrcp.pop %v1053
        %v1055 = vmul.f32 %v1050, %v1054
        %1056 = vrot.lane.b32.xlu0 %v966, 64
        %v1057 = vpop.permute.xlu0 %1056
        %v1060 = vsel %vm1044, %v1055, 0
        %1062 = vmatprep.subr.mxu0 0.0
        %1063 = vmatpush1.msra.mxu0 %v1057
        %1064 = vmatprep.subr.mxu0 0.0
        %1065 = vmatpush1.msra.mxu0 0.0
        %1066 = vmatprep.subr.mxu0 0.0
        %1067 = vmatpush1.msra.mxu0 0.0
        %1068 = vmatprep.subr.mxu0 0.0
        %1069 = vmatpush1.msra.mxu0 0.0
        %1070 = vmatprep.subr.mxu0 0.0
        %1071 = vmatpush1.msra.mxu0 0.0
        %1072 = vmatprep.subr.mxu0 0.0
        %1073 = vmatpush1.msra.mxu0 0.0
        %1074 = vmatprep.subr.mxu0 0.0
        %1075 = vmatpush1.msra.mxu0 0.0
        %1076 = vmatprep.subr.mxu0 0.0
        %1077 = vmatpush1.msra.mxu0 0.0
        %1078 = vmatprep.subr.mxu0 0.0
        %1079 = vmatpush1.msra.mxu0 0.0
        %1080 = vmatprep.subr.mxu0 0.0
        %1081 = vmatpush1.msra.mxu0 0.0
        %1082 = vmatprep.subr.mxu0 0.0
        %1083 = vmatpush1.msra.mxu0 0.0
        %1084 = vmatprep.subr.mxu0 0.0
        %1085 = vmatpush1.msra.mxu0 0.0
        %1086 = vmatprep.subr.mxu0 0.0
        %1087 = vmatpush1.msra.mxu0 0.0
        %1088 = vmatprep.subr.mxu0 0.0
        %1089 = vmatpush1.msra.mxu0 0.0
        %1090 = vmatprep.subr.mxu0 0.0
        %1091 = vmatpush1.msra.mxu0 0.0
        %1092 = vmatprep.subr.mxu0 0.0
        %1093 = vmatpush1.msra.mxu0 0.0
        %1094 = vmatprep.subr.mxu0 0.0
        %1095 = vmatpush1.msra.mxu0 0.0
        %1096 = vmatprep.subr.mxu0 0.0
        %1097 = vmatpush1.msra.mxu0 0.0
        %1098 = vmatprep.subr.mxu0 0.0
        %1099 = vmatpush1.msra.mxu0 0.0
        %1100 = vmatprep.subr.mxu0 0.0
        %1101 = vmatpush1.msra.mxu0 0.0
        %1102 = vmatprep.subr.mxu0 0.0
        %1103 = vmatpush1.msra.mxu0 0.0
        %1104 = vmatprep.subr.mxu0 0.0
        %1105 = vmatpush1.msra.mxu0 0.0
        %1106 = vmatprep.subr.mxu0 0.0
        %1107 = vmatpush1.msra.mxu0 0.0
        %1108 = vmatprep.subr.mxu0 0.0
        %1109 = vmatpush1.msra.mxu0 0.0
        %1110 = vmatprep.subr.mxu0 0.0
        %1111 = vmatpush1.msra.mxu0 0.0
        %1112 = vmatprep.subr.mxu0 0.0
        %1113 = vmatpush1.msra.mxu0 0.0
        %1114 = vmatprep.subr.mxu0 0.0
        %1115 = vmatpush1.msra.mxu0 0.0
        %1116 = vmatprep.subr.mxu0 0.0
        %1117 = vmatpush1.msra.mxu0 0.0
        %1118 = vmatprep.subr.mxu0 0.0
        %1119 = vmatpush1.msra.mxu0 0.0
        %1120 = vmatprep.subr.mxu0 0.0
        %1121 = vmatpush1.msra.mxu0 0.0
        %1122 = vmatprep.subr.mxu0 0.0
        %1123 = vmatpush1.msra.mxu0 0.0
        %1124 = vmatprep.subr.mxu0 0.0
        %1125 = vmatpush1.msra.mxu0 0.0
        %1126 = vmatprep.mubr.f32.mxu0 0.0
        %1127 = vmatmul.mubr.f32.gmra.mrb[0].mxu0 %v1060
        %v1128 = vpop.f32.mrb[0].mxu0
        %v1129 = vadd.f32 0.0, %v1128
        %v1130 = vpop.f32.mrb[0].mxu0
        %1131 = vdwg.mxu0
        %v1133 = vrot.slane %v1129, 1
        %1134 = vrot.lane.b32.xlu0 %v1133, 32
        %v1135 = vpop.permute.xlu0 %1134
        %v1137 = vrot.slane %v1129, 2
        %1138 = vrot.lane.b32.xlu0 %v1137, 64
        %v1139 = vpop.permute.xlu0 %1138
        %v1141 = vrot.slane %v1129, 3
        %1142 = vrot.lane.b32.xlu0 %v1141, 96
        %v1143 = vpop.permute.xlu0 %1142
        %v1145 = vrot.slane %v1129, 4
        %v1147 = vrot.slane %v1129, 5
        %1148 = vrot.lane.b32.xlu0 %v1147, 32
        %v1149 = vpop.permute.xlu0 %1148
        %v1151 = vrot.slane %v1129, 6
        %1152 = vrot.lane.b32.xlu0 %v1151, 64
        %v1153 = vpop.permute.xlu0 %1152
        %v1155 = vrot.slane %v1129, 7
        %1156 = vrot.lane.b32.xlu0 %v1155, 96
        %v1157 = vpop.permute.xlu0 %1156
        %v1159 = vsel %vm927, %v1129, %v1135
        %v1160 = vsel %vm936, %v1159, %v1139
        %vm1161 = vcmask 785408
        %v1162 = vsel %vm1161, %v1160, %v1143
        %v1163 = vsel %vm927, %v1145, %v1149
        %v1164 = vsel %vm936, %v1163, %v1153
        %v1165 = vsel %vm1161, %v1164, %v1157
        %v1168 = vcombine.low %v1162, %v1165
        %v1170 = vunpack.c.l.s4 1966171168
        %v1171 = vunpack.c.0.s8 %v1170
        %v1172 = vlaneseq
        %v1173 = vshrl.u32 %v1172, 7
        %v1174 = vsub.s32 %v1171, %v1173
        %v1175 = vrot.slane %v1168, %v1174
        %v1177 = vunpack.c.l.s4 1966171168
        %v1178 = vunpack.c.0.s8 %v1177
        %v1179 = vlaneseq
        %v1180 = vshrl.u32 %v1179, 7
        %v1181 = vsub.s32 %v1178, %v1180
        %v1182 = vrot.slane %v1175, %v1181
        %v1184 = vlaneseq
        %vm1185 = vcmp.ge.s32.totalorder %v1184, 0
        %vm1186 = vcmp.lt.s32.totalorder %v1184, 256
        %vm1187 = vmand %vm1185, %vm1186
        %1188 = vst.msk [vmem:[#allocation3] ss:$8 sm:$0x3] %vm1187, %v1182
        %1189 = vst.msk [vmem:[#allocation3] ss:$8 sm:$0x0] %vm1187, %v1182
        %vm1190 = vcmask 779265
        %1191 = vst.msk [vmem:[#allocation2 - $0x1] sm:$0x2] %vm1190, %v773
        %1192 = vst.msk [vmem:[#allocation2] sm:$0x2] %vm1190, %v928
        %1193 = vst.msk [vmem:[#allocation2 + $0x1] sm:$0x2] %vm1190, %v937
        %1194 = vst.msk [vmem:[#allocation2 + $0x2] sm:$0x2] %vm1190, %v941
        %1195 = vst.msk [vmem:[#allocation2 + $0x3] sm:$0x2] %vm1190, %v846
        %1196 = vst.msk [vmem:[#allocation2 + $0x4] sm:$0x2] %vm1190, %v951
        %1197 = vst.msk [vmem:[#allocation2 + $0x5] sm:$0x2] %vm1190, %v959
        %1198 = vst.msk [vmem:[#allocation2 + $0x6] sm:$0x2] %vm1190, %v963
        %v1199 = vld [vmem:[#allocation2] sm:$0xff]
        %1201 = vrot.lane.b32.xlu0 %v1199, 96
        %v1202 = vpop.permute.xlu0 %1201
        %v1203 = vsel %vm927, %v1199, 0
        %v1205 = vsel %vm927, %v1202, 0
        %1207 = vmatprep.subr.mxu0 0.0
        %1208 = vmatpush1.xpose.msra.mxu0 %v1205
        %1209 = vmatprep.subr.mxu0 0.0
        %1210 = vmatpush1.xpose.msra.mxu0 0.0
        %1211 = vmatprep.subr.mxu0 0.0
        %1212 = vmatpush1.xpose.msra.mxu0 0.0
        %1213 = vmatprep.subr.mxu0 0.0
        %1214 = vmatpush1.xpose.msra.mxu0 0.0
        %1215 = vmatprep.subr.mxu0 0.0
        %1216 = vmatpush1.xpose.msra.mxu0 0.0
        %1217 = vmatprep.subr.mxu0 0.0
        %1218 = vmatpush1.xpose.msra.mxu0 0.0
        %1219 = vmatprep.subr.mxu0 0.0
        %1220 = vmatpush1.xpose.msra.mxu0 0.0
        %1221 = vmatprep.subr.mxu0 0.0
        %1222 = vmatpush1.xpose.msra.mxu0 0.0
        %1223 = vmatprep.subr.mxu0 0.0
        %1224 = vmatpush1.xpose.msra.mxu0 0.0
        %1225 = vmatprep.subr.mxu0 0.0
        %1226 = vmatpush1.xpose.msra.mxu0 0.0
        %1227 = vmatprep.subr.mxu0 0.0
        %1228 = vmatpush1.xpose.msra.mxu0 0.0
        %1229 = vmatprep.subr.mxu0 0.0
        %1230 = vmatpush1.xpose.msra.mxu0 0.0
        %1231 = vmatprep.subr.mxu0 0.0
        %1232 = vmatpush1.xpose.msra.mxu0 0.0
        %1233 = vmatprep.subr.mxu0 0.0
        %1234 = vmatpush1.xpose.msra.mxu0 0.0
        %1235 = vmatprep.subr.mxu0 0.0
        %1236 = vmatpush1.xpose.msra.mxu0 0.0
        %1237 = vmatprep.subr.mxu0 0.0
        %1238 = vmatpush1.xpose.msra.mxu0 0.0
        %1239 = vmatprep.subr.mxu0 0.0
        %1240 = vmatpush1.xpose.msra.mxu0 0.0
        %1241 = vmatprep.subr.mxu0 0.0
        %1242 = vmatpush1.xpose.msra.mxu0 0.0
        %1243 = vmatprep.subr.mxu0 0.0
        %1244 = vmatpush1.xpose.msra.mxu0 0.0
        %1245 = vmatprep.subr.mxu0 0.0
        %1246 = vmatpush1.xpose.msra.mxu0 0.0
        %1247 = vmatprep.subr.mxu0 0.0
        %1248 = vmatpush1.xpose.msra.mxu0 0.0
        %1249 = vmatprep.subr.mxu0 0.0
        %1250 = vmatpush1.xpose.msra.mxu0 0.0
        %1251 = vmatprep.subr.mxu0 0.0
        %1252 = vmatpush1.xpose.msra.mxu0 0.0
        %1253 = vmatprep.subr.mxu0 0.0
        %1254 = vmatpush1.xpose.msra.mxu0 0.0
        %1255 = vmatprep.subr.mxu0 0.0
        %1256 = vmatpush1.xpose.msra.mxu0 0.0
        %1257 = vmatprep.subr.mxu0 0.0
        %1258 = vmatpush1.xpose.msra.mxu0 0.0
        %1259 = vmatprep.subr.mxu0 0.0
        %1260 = vmatpush1.xpose.msra.mxu0 0.0
        %1261 = vmatprep.subr.mxu0 0.0
        %1262 = vmatpush1.xpose.msra.mxu0 0.0
        %1263 = vmatprep.subr.mxu0 0.0
        %1264 = vmatpush1.xpose.msra.mxu0 0.0
        %1265 = vmatprep.subr.mxu0 0.0
        %1266 = vmatpush1.xpose.msra.mxu0 0.0
        %1267 = vmatprep.subr.mxu0 0.0
        %1268 = vmatpush1.xpose.msra.mxu0 0.0
        %1269 = vmatprep.subr.mxu0 0.0
        %1270 = vmatpush1.xpose.msra.mxu0 0.0
        %1271 = vmatprep.mubr.f32.mxu0 0.0
        %1272 = vmatmul.mubr.f32.gmra.mrb[0].mxu0 %v1203
        %v1273 = vpop.f32.mrb[0].mxu0
        %v1274 = vadd.f32 0.0, %v1273
        %v1275 = vpop.f32.mrb[0].mxu0
        %1276 = vdwg.mxu0
        %v1277 = vsel %vm1044, %v1274, -inf
        %1278 = vmax.xlane.f32.xlu0 %v1277
        %v1279 = vpop.xlane.xlu0 %1278
        %v1280 = vsub.f32 %v1274, %v1279
        %v1281 = vmul.f32 %v1280, 1.442695
        %v1282 = vpow.pop %v1281
        %v1283 = vsel %vm1044, %v1282, 0.0
        %1284 = vadd.xlane.f32.xlu0 %v1283
        %v1285 = vpop.xlane.xlu0 %1284
        %v1286 = vrcp.pop %v1285
        %v1287 = vmul.f32 %v1282, %v1286
        %1288 = vrot.lane.b32.xlu0 %v1199, 64
        %v1289 = vpop.permute.xlu0 %1288
        %v1292 = vsel %vm1044, %v1287, 0
        %1294 = vmatprep.subr.mxu0 0.0
        %1295 = vmatpush1.msra.mxu0 %v1289
        %1296 = vmatprep.subr.mxu0 0.0
        %1297 = vmatpush1.msra.mxu0 0.0
        %1298 = vmatprep.subr.mxu0 0.0
        %1299 = vmatpush1.msra.mxu0 0.0
        %1300 = vmatprep.subr.mxu0 0.0
        %1301 = vmatpush1.msra.mxu0 0.0
        %1302 = vmatprep.subr.mxu0 0.0
        %1303 = vmatpush1.msra.mxu0 0.0
        %1304 = vmatprep.subr.mxu0 0.0
        %1305 = vmatpush1.msra.mxu0 0.0
        %1306 = vmatprep.subr.mxu0 0.0
        %1307 = vmatpush1.msra.mxu0 0.0
        %1308 = vmatprep.subr.mxu0 0.0
        %1309 = vmatpush1.msra.mxu0 0.0
        %1310 = vmatprep.subr.mxu0 0.0
        %1311 = vmatpush1.msra.mxu0 0.0
        %1312 = vmatprep.subr.mxu0 0.0
        %1313 = vmatpush1.msra.mxu0 0.0
        %1314 = vmatprep.subr.mxu0 0.0
        %1315 = vmatpush1.msra.mxu0 0.0
        %1316 = vmatprep.subr.mxu0 0.0
        %1317 = vmatpush1.msra.mxu0 0.0
        %1318 = vmatprep.subr.mxu0 0.0
        %1319 = vmatpush1.msra.mxu0 0.0
        %1320 = vmatprep.subr.mxu0 0.0
        %1321 = vmatpush1.msra.mxu0 0.0
        %1322 = vmatprep.subr.mxu0 0.0
        %1323 = vmatpush1.msra.mxu0 0.0
        %1324 = vmatprep.subr.mxu0 0.0
        %1325 = vmatpush1.msra.mxu0 0.0
        %1326 = vmatprep.subr.mxu0 0.0
        %1327 = vmatpush1.msra.mxu0 0.0
        %1328 = vmatprep.subr.mxu0 0.0
        %1329 = vmatpush1.msra.mxu0 0.0
        %1330 = vmatprep.subr.mxu0 0.0
        %1331 = vmatpush1.msra.mxu0 0.0
        %1332 = vmatprep.subr.mxu0 0.0
        %1333 = vmatpush1.msra.mxu0 0.0
        %1334 = vmatprep.subr.mxu0 0.0
        %1335 = vmatpush1.msra.mxu0 0.0
        %1336 = vmatprep.subr.mxu0 0.0
        %1337 = vmatpush1.msra.mxu0 0.0
        %1338 = vmatprep.subr.mxu0 0.0
        %1339 = vmatpush1.msra.mxu0 0.0
        %1340 = vmatprep.subr.mxu0 0.0
        %1341 = vmatpush1.msra.mxu0 0.0
        %1342 = vmatprep.subr.mxu0 0.0
        %1343 = vmatpush1.msra.mxu0 0.0
        %1344 = vmatprep.subr.mxu0 0.0
        %1345 = vmatpush1.msra.mxu0 0.0
        %1346 = vmatprep.subr.mxu0 0.0
        %1347 = vmatpush1.msra.mxu0 0.0
        %1348 = vmatprep.subr.mxu0 0.0
        %1349 = vmatpush1.msra.mxu0 0.0
        %1350 = vmatprep.subr.mxu0 0.0
        %1351 = vmatpush1.msra.mxu0 0.0
        %1352 = vmatprep.subr.mxu0 0.0
        %1353 = vmatpush1.msra.mxu0 0.0
        %1354 = vmatprep.subr.mxu0 0.0
        %1355 = vmatpush1.msra.mxu0 0.0
        %1356 = vmatprep.subr.mxu0 0.0
        %1357 = vmatpush1.msra.mxu0 0.0
        %1358 = vmatprep.mubr.f32.mxu0 0.0
        %1359 = vmatmul.mubr.f32.gmra.mrb[0].mxu0 %v1292
        %v1360 = vpop.f32.mrb[0].mxu0
        %v1361 = vadd.f32 0.0, %v1360
        %v1362 = vpop.f32.mrb[0].mxu0
        %1363 = vdwg.mxu0
        %v1365 = vrot.slane %v1361, 1
        %1366 = vrot.lane.b32.xlu0 %v1365, 32
        %v1367 = vpop.permute.xlu0 %1366
        %v1369 = vrot.slane %v1361, 2
        %1370 = vrot.lane.b32.xlu0 %v1369, 64
        %v1371 = vpop.permute.xlu0 %1370
        %v1373 = vrot.slane %v1361, 3
        %1374 = vrot.lane.b32.xlu0 %v1373, 96
        %v1375 = vpop.permute.xlu0 %1374
        %v1377 = vrot.slane %v1361, 4
        %v1379 = vrot.slane %v1361, 5
        %1380 = vrot.lane.b32.xlu0 %v1379, 32
        %v1381 = vpop.permute.xlu0 %1380
        %v1383 = vrot.slane %v1361, 6
        %1384 = vrot.lane.b32.xlu0 %v1383, 64
        %v1385 = vpop.permute.xlu0 %1384
        %v1387 = vrot.slane %v1361, 7
        %1388 = vrot.lane.b32.xlu0 %v1387, 96
        %v1389 = vpop.permute.xlu0 %1388
        %v1391 = vsel %vm927, %v1361, %v1367
        %v1392 = vsel %vm936, %v1391, %v1371
        %v1393 = vsel %vm1161, %v1392, %v1375
        %v1394 = vsel %vm927, %v1377, %v1381
        %v1395 = vsel %vm936, %v1394, %v1385
        %v1396 = vsel %vm1161, %v1395, %v1389
        %v1399 = vcombine.low %v1393, %v1396
        %v1401 = vunpack.c.l.s4 1966171168
        %v1402 = vunpack.c.0.s8 %v1401
        %v1403 = vlaneseq
        %v1404 = vshrl.u32 %v1403, 7
        %v1405 = vsub.s32 %v1402, %v1404
        %v1406 = vrot.slane %v1399, %v1405
        %v1408 = vunpack.c.l.s4 1966171168
        %v1409 = vunpack.c.0.s8 %v1408
        %v1410 = vlaneseq
        %v1411 = vshrl.u32 %v1410, 7
        %v1412 = vsub.s32 %v1409, %v1411
        %v1413 = vrot.slane %v1406, %v1412
        %s1415 = scalar_lea.vmem [#allocation3], 1
        %1416 = vst.msk [vmem:[%s1415] ss:$8 sm:$0x3] %vm1187, %v1413
        %1417 = vst.msk [vmem:[%s1415] ss:$8 sm:$0x0] %vm1187, %v1413
        %vm1418 = vcmask 780290
        %1419 = vst.msk [vmem:[#allocation2 - $0x2] sm:$0x4] %vm1418, %v773
        %1420 = vst.msk [vmem:[#allocation2 - $0x1] sm:$0x4] %vm1418, %v928
        %1421 = vst.msk [vmem:[#allocation2] sm:$0x4] %vm1418, %v937
        %1422 = vst.msk [vmem:[#allocation2 + $0x1] sm:$0x4] %vm1418, %v941
        %1423 = vst.msk [vmem:[#allocation2 + $0x2] sm:$0x4] %vm1418, %v846
        %1424 = vst.msk [vmem:[#allocation2 + $0x3] sm:$0x4] %vm1418, %v951
        %1425 = vst.msk [vmem:[#allocation2 + $0x4] sm:$0x4] %vm1418, %v959
        %1426 = vst.msk [vmem:[#allocation2 + $0x5] sm:$0x4] %vm1418, %v963
        %v1427 = vld [vmem:[#allocation2] sm:$0xff]
        %1429 = vrot.lane.b32.xlu0 %v1427, 96
        %v1430 = vpop.permute.xlu0 %1429
        %v1431 = vsel %vm927, %v1427, 0
        %v1433 = vsel %vm927, %v1430, 0
        %1435 = vmatprep.subr.mxu0 0.0
        %1436 = vmatpush1.xpose.msra.mxu0 %v1433
        %1437 = vmatprep.subr.mxu0 0.0
        %1438 = vmatpush1.xpose.msra.mxu0 0.0
        %1439 = vmatprep.subr.mxu0 0.0
        %1440 = vmatpush1.xpose.msra.mxu0 0.0
        %1441 = vmatprep.subr.mxu0 0.0
        %1442 = vmatpush1.xpose.msra.mxu0 0.0
        %1443 = vmatprep.subr.mxu0 0.0
        %1444 = vmatpush1.xpose.msra.mxu0 0.0
        %1445 = vmatprep.subr.mxu0 0.0
        %1446 = vmatpush1.xpose.msra.mxu0 0.0
        %1447 = vmatprep.subr.mxu0 0.0
        %1448 = vmatpush1.xpose.msra.mxu0 0.0
        %1449 = vmatprep.subr.mxu0 0.0
        %1450 = vmatpush1.xpose.msra.mxu0 0.0
        %1451 = vmatprep.subr.mxu0 0.0
        %1452 = vmatpush1.xpose.msra.mxu0 0.0
        %1453 = vmatprep.subr.mxu0 0.0
        %1454 = vmatpush1.xpose.msra.mxu0 0.0
        %1455 = vmatprep.subr.mxu0 0.0
        %1456 = vmatpush1.xpose.msra.mxu0 0.0
        %1457 = vmatprep.subr.mxu0 0.0
        %1458 = vmatpush1.xpose.msra.mxu0 0.0
        %1459 = vmatprep.subr.mxu0 0.0
        %1460 = vmatpush1.xpose.msra.mxu0 0.0
        %1461 = vmatprep.subr.mxu0 0.0
        %1462 = vmatpush1.xpose.msra.mxu0 0.0
        %1463 = vmatprep.subr.mxu0 0.0
        %1464 = vmatpush1.xpose.msra.mxu0 0.0
        %1465 = vmatprep.subr.mxu0 0.0
        %1466 = vmatpush1.xpose.msra.mxu0 0.0
        %1467 = vmatprep.subr.mxu0 0.0
        %1468 = vmatpush1.xpose.msra.mxu0 0.0
        %1469 = vmatprep.subr.mxu0 0.0
        %1470 = vmatpush1.xpose.msra.mxu0 0.0
        %1471 = vmatprep.subr.mxu0 0.0
        %1472 = vmatpush1.xpose.msra.mxu0 0.0
        %1473 = vmatprep.subr.mxu0 0.0
        %1474 = vmatpush1.xpose.msra.mxu0 0.0
        %1475 = vmatprep.subr.mxu0 0.0
        %1476 = vmatpush1.xpose.msra.mxu0 0.0
        %1477 = vmatprep.subr.mxu0 0.0
        %1478 = vmatpush1.xpose.msra.mxu0 0.0
        %1479 = vmatprep.subr.mxu0 0.0
        %1480 = vmatpush1.xpose.msra.mxu0 0.0
        %1481 = vmatprep.subr.mxu0 0.0
        %1482 = vmatpush1.xpose.msra.mxu0 0.0
        %1483 = vmatprep.subr.mxu0 0.0
        %1484 = vmatpush1.xpose.msra.mxu0 0.0
        %1485 = vmatprep.subr.mxu0 0.0
        %1486 = vmatpush1.xpose.msra.mxu0 0.0
        %1487 = vmatprep.subr.mxu0 0.0
        %1488 = vmatpush1.xpose.msra.mxu0 0.0
        %1489 = vmatprep.subr.mxu0 0.0
        %1490 = vmatpush1.xpose.msra.mxu0 0.0
        %1491 = vmatprep.subr.mxu0 0.0
        %1492 = vmatpush1.xpose.msra.mxu0 0.0
        %1493 = vmatprep.subr.mxu0 0.0
        %1494 = vmatpush1.xpose.msra.mxu0 0.0
        %1495 = vmatprep.subr.mxu0 0.0
        %1496 = vmatpush1.xpose.msra.mxu0 0.0
        %1497 = vmatprep.subr.mxu0 0.0
        %1498 = vmatpush1.xpose.msra.mxu0 0.0
        %1499 = vmatprep.mubr.f32.mxu0 0.0
        %1500 = vmatmul.mubr.f32.gmra.mrb[0].mxu0 %v1431
        %v1501 = vpop.f32.mrb[0].mxu0
        %v1502 = vadd.f32 0.0, %v1501
        %v1503 = vpop.f32.mrb[0].mxu0
        %1504 = vdwg.mxu0
        %v1505 = vsel %vm1044, %v1502, -inf
        %1506 = vmax.xlane.f32.xlu0 %v1505
        %v1507 = vpop.xlane.xlu0 %1506
        %v1508 = vsub.f32 %v1502, %v1507
        %v1509 = vmul.f32 %v1508, 1.442695
        %v1510 = vpow.pop %v1509
        %v1511 = vsel %vm1044, %v1510, 0.0
        %1512 = vadd.xlane.f32.xlu0 %v1511
        %v1513 = vpop.xlane.xlu0 %1512
        %v1514 = vrcp.pop %v1513
        %v1515 = vmul.f32 %v1510, %v1514
        %1516 = vrot.lane.b32.xlu0 %v1427, 64
        %v1517 = vpop.permute.xlu0 %1516
        %v1520 = vsel %vm1044, %v1515, 0
        %1522 = vmatprep.subr.mxu0 0.0
        %1523 = vmatpush1.msra.mxu0 %v1517
        %1524 = vmatprep.subr.mxu0 0.0
        %1525 = vmatpush1.msra.mxu0 0.0
        %1526 = vmatprep.subr.mxu0 0.0
        %1527 = vmatpush1.msra.mxu0 0.0
        %1528 = vmatprep.subr.mxu0 0.0
        %1529 = vmatpush1.msra.mxu0 0.0
        %1530 = vmatprep.subr.mxu0 0.0
        %1531 = vmatpush1.msra.mxu0 0.0
        %1532 = vmatprep.subr.mxu0 0.0
        %1533 = vmatpush1.msra.mxu0 0.0
        %1534 = vmatprep.subr.mxu0 0.0
        %1535 = vmatpush1.msra.mxu0 0.0
        %1536 = vmatprep.subr.mxu0 0.0
        %1537 = vmatpush1.msra.mxu0 0.0
        %1538 = vmatprep.subr.mxu0 0.0
        %1539 = vmatpush1.msra.mxu0 0.0
        %1540 = vmatprep.subr.mxu0 0.0
        %1541 = vmatpush1.msra.mxu0 0.0
        %1542 = vmatprep.subr.mxu0 0.0
        %1543 = vmatpush1.msra.mxu0 0.0
        %1544 = vmatprep.subr.mxu0 0.0
        %1545 = vmatpush1.msra.mxu0 0.0
        %1546 = vmatprep.subr.mxu0 0.0
        %1547 = vmatpush1.msra.mxu0 0.0
        %1548 = vmatprep.subr.mxu0 0.0
        %1549 = vmatpush1.msra.mxu0 0.0
        %1550 = vmatprep.subr.mxu0 0.0
        %1551 = vmatpush1.msra.mxu0 0.0
        %1552 = vmatprep.subr.mxu0 0.0
        %1553 = vmatpush1.msra.mxu0 0.0
        %1554 = vmatprep.subr.mxu0 0.0
        %1555 = vmatpush1.msra.mxu0 0.0
        %1556 = vmatprep.subr.mxu0 0.0
        %1557 = vmatpush1.msra.mxu0 0.0
        %1558 = vmatprep.subr.mxu0 0.0
        %1559 = vmatpush1.msra.mxu0 0.0
        %1560 = vmatprep.subr.mxu0 0.0
        %1561 = vmatpush1.msra.mxu0 0.0
        %1562 = vmatprep.subr.mxu0 0.0
        %1563 = vmatpush1.msra.mxu0 0.0
        %1564 = vmatprep.subr.mxu0 0.0
        %1565 = vmatpush1.msra.mxu0 0.0
        %1566 = vmatprep.subr.mxu0 0.0
        %1567 = vmatpush1.msra.mxu0 0.0
        %1568 = vmatprep.subr.mxu0 0.0
        %1569 = vmatpush1.msra.mxu0 0.0
        %1570 = vmatprep.subr.mxu0 0.0
        %1571 = vmatpush1.msra.mxu0 0.0
        %1572 = vmatprep.subr.mxu0 0.0
        %1573 = vmatpush1.msra.mxu0 0.0
        %1574 = vmatprep.subr.mxu0 0.0
        %1575 = vmatpush1.msra.mxu0 0.0
        %1576 = vmatprep.subr.mxu0 0.0
        %1577 = vmatpush1.msra.mxu0 0.0
        %1578 = vmatprep.subr.mxu0 0.0
        %1579 = vmatpush1.msra.mxu0 0.0
        %1580 = vmatprep.subr.mxu0 0.0
        %1581 = vmatpush1.msra.mxu0 0.0
        %1582 = vmatprep.subr.mxu0 0.0
        %1583 = vmatpush1.msra.mxu0 0.0
        %1584 = vmatprep.subr.mxu0 0.0
        %1585 = vmatpush1.msra.mxu0 0.0
        %1586 = vmatprep.mubr.f32.mxu0 0.0
        %1587 = vmatmul.mubr.f32.gmra.mrb[0].mxu0 %v1520
        %v1588 = vpop.f32.mrb[0].mxu0
        %v1589 = vadd.f32 0.0, %v1588
        %v1590 = vpop.f32.mrb[0].mxu0
        %1591 = vdwg.mxu0
        %v1593 = vrot.slane %v1589, 1
        %1594 = vrot.lane.b32.xlu0 %v1593, 32
        %v1595 = vpop.permute.xlu0 %1594
        %v1597 = vrot.slane %v1589, 2
        %1598 = vrot.lane.b32.xlu0 %v1597, 64
        %v1599 = vpop.permute.xlu0 %1598
        %v1601 = vrot.slane %v1589, 3
        %1602 = vrot.lane.b32.xlu0 %v1601, 96
        %v1603 = vpop.permute.xlu0 %1602
        %v1605 = vrot.slane %v1589, 4
        %v1607 = vrot.slane %v1589, 5
        %1608 = vrot.lane.b32.xlu0 %v1607, 32
        %v1609 = vpop.permute.xlu0 %1608
        %v1611 = vrot.slane %v1589, 6
        %1612 = vrot.lane.b32.xlu0 %v1611, 64
        %v1613 = vpop.permute.xlu0 %1612
        %v1615 = vrot.slane %v1589, 7
        %1616 = vrot.lane.b32.xlu0 %v1615, 96
        %v1617 = vpop.permute.xlu0 %1616
        %v1619 = vsel %vm927, %v1589, %v1595
        %v1620 = vsel %vm936, %v1619, %v1599
        %v1621 = vsel %vm1161, %v1620, %v1603
        %v1622 = vsel %vm927, %v1605, %v1609
        %v1623 = vsel %vm936, %v1622, %v1613
        %v1624 = vsel %vm1161, %v1623, %v1617
        %v1627 = vcombine.low %v1621, %v1624
        %v1629 = vunpack.c.l.s4 1966171168
        %v1630 = vunpack.c.0.s8 %v1629
        %v1631 = vlaneseq
        %v1632 = vshrl.u32 %v1631, 7
        %v1633 = vsub.s32 %v1630, %v1632
        %v1634 = vrot.slane %v1627, %v1633
        %v1636 = vunpack.c.l.s4 1966171168
        %v1637 = vunpack.c.0.s8 %v1636
        %v1638 = vlaneseq
        %v1639 = vshrl.u32 %v1638, 7
        %v1640 = vsub.s32 %v1637, %v1639
        %v1641 = vrot.slane %v1634, %v1640
        %s1643 = scalar_lea.vmem [#allocation3], 2
        %1644 = vst.msk [vmem:[%s1643] ss:$8 sm:$0x3] %vm1187, %v1641
        %1645 = vst.msk [vmem:[%s1643] ss:$8 sm:$0x0] %vm1187, %v1641
        %vm1646 = vcmask 781315
        %1647 = vst.msk [vmem:[#allocation2 - $0x3] sm:$0x8] %vm1646, %v773
        %1648 = vst.msk [vmem:[#allocation2 - $0x2] sm:$0x8] %vm1646, %v928
        %1649 = vst.msk [vmem:[#allocation2 - $0x1] sm:$0x8] %vm1646, %v937
        %1650 = vst.msk [vmem:[#allocation2] sm:$0x8] %vm1646, %v941
        %1651 = vst.msk [vmem:[#allocation2 + $0x1] sm:$0x8] %vm1646, %v846
        %1652 = vst.msk [vmem:[#allocation2 + $0x2] sm:$0x8] %vm1646, %v951
        %1653 = vst.msk [vmem:[#allocation2 + $0x3] sm:$0x8] %vm1646, %v959
        %1654 = vst.msk [vmem:[#allocation2 + $0x4] sm:$0x8] %vm1646, %v963
        %v1655 = vld [vmem:[#allocation2] sm:$0xff]
        %1657 = vrot.lane.b32.xlu0 %v1655, 96
        %v1658 = vpop.permute.xlu0 %1657
        %v1659 = vsel %vm927, %v1655, 0
        %v1661 = vsel %vm927, %v1658, 0
        %1663 = vmatprep.subr.mxu0 0.0
        %1664 = vmatpush1.xpose.msra.mxu0 %v1661
        %1665 = vmatprep.subr.mxu0 0.0
        %1666 = vmatpush1.xpose.msra.mxu0 0.0
        %1667 = vmatprep.subr.mxu0 0.0
        %1668 = vmatpush1.xpose.msra.mxu0 0.0
        %1669 = vmatprep.subr.mxu0 0.0
        %1670 = vmatpush1.xpose.msra.mxu0 0.0
        %1671 = vmatprep.subr.mxu0 0.0
        %1672 = vmatpush1.xpose.msra.mxu0 0.0
        %1673 = vmatprep.subr.mxu0 0.0
        %1674 = vmatpush1.xpose.msra.mxu0 0.0
        %1675 = vmatprep.subr.mxu0 0.0
        %1676 = vmatpush1.xpose.msra.mxu0 0.0
        %1677 = vmatprep.subr.mxu0 0.0
        %1678 = vmatpush1.xpose.msra.mxu0 0.0
        %1679 = vmatprep.subr.mxu0 0.0
        %1680 = vmatpush1.xpose.msra.mxu0 0.0
        %1681 = vmatprep.subr.mxu0 0.0
        %1682 = vmatpush1.xpose.msra.mxu0 0.0
        %1683 = vmatprep.subr.mxu0 0.0
        %1684 = vmatpush1.xpose.msra.mxu0 0.0
        %1685 = vmatprep.subr.mxu0 0.0
        %1686 = vmatpush1.xpose.msra.mxu0 0.0
        %1687 = vmatprep.subr.mxu0 0.0
        %1688 = vmatpush1.xpose.msra.mxu0 0.0
        %1689 = vmatprep.subr.mxu0 0.0
        %1690 = vmatpush1.xpose.msra.mxu0 0.0
        %1691 = vmatprep.subr.mxu0 0.0
        %1692 = vmatpush1.xpose.msra.mxu0 0.0
        %1693 = vmatprep.subr.mxu0 0.0
        %1694 = vmatpush1.xpose.msra.mxu0 0.0
        %1695 = vmatprep.subr.mxu0 0.0
        %1696 = vmatpush1.xpose.msra.mxu0 0.0
        %1697 = vmatprep.subr.mxu0 0.0
        %1698 = vmatpush1.xpose.msra.mxu0 0.0
        %1699 = vmatprep.subr.mxu0 0.0
        %1700 = vmatpush1.xpose.msra.mxu0 0.0
        %1701 = vmatprep.subr.mxu0 0.0
        %1702 = vmatpush1.xpose.msra.mxu0 0.0
        %1703 = vmatprep.subr.mxu0 0.0
        %1704 = vmatpush1.xpose.msra.mxu0 0.0
        %1705 = vmatprep.subr.mxu0 0.0
        %1706 = vmatpush1.xpose.msra.mxu0 0.0
        %1707 = vmatprep.subr.mxu0 0.0
        %1708 = vmatpush1.xpose.msra.mxu0 0.0
        %1709 = vmatprep.subr.mxu0 0.0
        %1710 = vmatpush1.xpose.msra.mxu0 0.0
        %1711 = vmatprep.subr.mxu0 0.0
        %1712 = vmatpush1.xpose.msra.mxu0 0.0
        %1713 = vmatprep.subr.mxu0 0.0
        %1714 = vmatpush1.xpose.msra.mxu0 0.0
        %1715 = vmatprep.subr.mxu0 0.0
        %1716 = vmatpush1.xpose.msra.mxu0 0.0
        %1717 = vmatprep.subr.mxu0 0.0
        %1718 = vmatpush1.xpose.msra.mxu0 0.0
        %1719 = vmatprep.subr.mxu0 0.0
        %1720 = vmatpush1.xpose.msra.mxu0 0.0
        %1721 = vmatprep.subr.mxu0 0.0
        %1722 = vmatpush1.xpose.msra.mxu0 0.0
        %1723 = vmatprep.subr.mxu0 0.0
        %1724 = vmatpush1.xpose.msra.mxu0 0.0
        %1725 = vmatprep.subr.mxu0 0.0
        %1726 = vmatpush1.xpose.msra.mxu0 0.0
        %1727 = vmatprep.mubr.f32.mxu0 0.0
        %1728 = vmatmul.mubr.f32.gmra.mrb[0].mxu0 %v1659
        %v1729 = vpop.f32.mrb[0].mxu0
        %v1730 = vadd.f32 0.0, %v1729
        %v1731 = vpop.f32.mrb[0].mxu0
        %1732 = vdwg.mxu0
        %v1733 = vsel %vm1044, %v1730, -inf
        %1734 = vmax.xlane.f32.xlu0 %v1733
        %v1735 = vpop.xlane.xlu0 %1734
        %v1736 = vsub.f32 %v1730, %v1735
        %v1737 = vmul.f32 %v1736, 1.442695
        %v1738 = vpow.pop %v1737
        %v1739 = vsel %vm1044, %v1738, 0.0
        %1740 = vadd.xlane.f32.xlu0 %v1739
        %v1741 = vpop.xlane.xlu0 %1740
        %v1742 = vrcp.pop %v1741
        %v1743 = vmul.f32 %v1738, %v1742
        %1744 = vrot.lane.b32.xlu0 %v1655, 64
        %v1745 = vpop.permute.xlu0 %1744
        %v1748 = vsel %vm1044, %v1743, 0
        %1750 = vmatprep.subr.mxu0 0.0
        %1751 = vmatpush1.msra.mxu0 %v1745
        %1752 = vmatprep.subr.mxu0 0.0
        %1753 = vmatpush1.msra.mxu0 0.0
        %1754 = vmatprep.subr.mxu0 0.0
        %1755 = vmatpush1.msra.mxu0 0.0
        %1756 = vmatprep.subr.mxu0 0.0
        %1757 = vmatpush1.msra.mxu0 0.0
        %1758 = vmatprep.subr.mxu0 0.0
        %1759 = vmatpush1.msra.mxu0 0.0
        %1760 = vmatprep.subr.mxu0 0.0
        %1761 = vmatpush1.msra.mxu0 0.0
        %1762 = vmatprep.subr.mxu0 0.0
        %1763 = vmatpush1.msra.mxu0 0.0
        %1764 = vmatprep.subr.mxu0 0.0
        %1765 = vmatpush1.msra.mxu0 0.0
        %1766 = vmatprep.subr.mxu0 0.0
        %1767 = vmatpush1.msra.mxu0 0.0
        %1768 = vmatprep.subr.mxu0 0.0
        %1769 = vmatpush1.msra.mxu0 0.0
        %1770 = vmatprep.subr.mxu0 0.0
        %1771 = vmatpush1.msra.mxu0 0.0
        %1772 = vmatprep.subr.mxu0 0.0
        %1773 = vmatpush1.msra.mxu0 0.0
        %1774 = vmatprep.subr.mxu0 0.0
        %1775 = vmatpush1.msra.mxu0 0.0
        %1776 = vmatprep.subr.mxu0 0.0
        %1777 = vmatpush1.msra.mxu0 0.0
        %1778 = vmatprep.subr.mxu0 0.0
        %1779 = vmatpush1.msra.mxu0 0.0
        %1780 = vmatprep.subr.mxu0 0.0
        %1781 = vmatpush1.msra.mxu0 0.0
        %1782 = vmatprep.subr.mxu0 0.0
        %1783 = vmatpush1.msra.mxu0 0.0
        %1784 = vmatprep.subr.mxu0 0.0
        %1785 = vmatpush1.msra.mxu0 0.0
        %1786 = vmatprep.subr.mxu0 0.0
        %1787 = vmatpush1.msra.mxu0 0.0
        %1788 = vmatprep.subr.mxu0 0.0
        %1789 = vmatpush1.msra.mxu0 0.0
        %1790 = vmatprep.subr.mxu0 0.0
        %1791 = vmatpush1.msra.mxu0 0.0
        %1792 = vmatprep.subr.mxu0 0.0
        %1793 = vmatpush1.msra.mxu0 0.0
        %1794 = vmatprep.subr.mxu0 0.0
        %1795 = vmatpush1.msra.mxu0 0.0
        %1796 = vmatprep.subr.mxu0 0.0
        %1797 = vmatpush1.msra.mxu0 0.0
        %1798 = vmatprep.subr.mxu0 0.0
        %1799 = vmatpush1.msra.mxu0 0.0
        %1800 = vmatprep.subr.mxu0 0.0
        %1801 = vmatpush1.msra.mxu0 0.0
        %1802 = vmatprep.subr.mxu0 0.0
        %1803 = vmatpush1.msra.mxu0 0.0
        %1804 = vmatprep.subr.mxu0 0.0
        %1805 = vmatpush1.msra.mxu0 0.0
        %1806 = vmatprep.subr.mxu0 0.0
        %1807 = vmatpush1.msra.mxu0 0.0
        %1808 = vmatprep.subr.mxu0 0.0
        %1809 = vmatpush1.msra.mxu0 0.0
        %1810 = vmatprep.subr.mxu0 0.0
        %1811 = vmatpush1.msra.mxu0 0.0
        %1812 = vmatprep.subr.mxu0 0.0
        %1813 = vmatpush1.msra.mxu0 0.0
        %1814 = vmatprep.mubr.f32.mxu0 0.0
        %1815 = vmatmul.mubr.f32.gmra.mrb[0].mxu0 %v1748
        %v1816 = vpop.f32.mrb[0].mxu0
        %v1817 = vadd.f32 0.0, %v1816
        %v1818 = vpop.f32.mrb[0].mxu0
        %1819 = vdwg.mxu0
        %v1821 = vrot.slane %v1817, 1
        %1822 = vrot.lane.b32.xlu0 %v1821, 32
        %v1823 = vpop.permute.xlu0 %1822
        %v1825 = vrot.slane %v1817, 2
        %1826 = vrot.lane.b32.xlu0 %v1825, 64
        %v1827 = vpop.permute.xlu0 %1826
        %v1829 = vrot.slane %v1817, 3
        %1830 = vrot.lane.b32.xlu0 %v1829, 96
        %v1831 = vpop.permute.xlu0 %1830
        %v1833 = vrot.slane %v1817, 4
        %v1835 = vrot.slane %v1817, 5
        %1836 = vrot.lane.b32.xlu0 %v1835, 32
        %v1837 = vpop.permute.xlu0 %1836
        %v1839 = vrot.slane %v1817, 6
        %1840 = vrot.lane.b32.xlu0 %v1839, 64
        %v1841 = vpop.permute.xlu0 %1840
        %v1843 = vrot.slane %v1817, 7
        %1844 = vrot.lane.b32.xlu0 %v1843, 96
        %v1845 = vpop.permute.xlu0 %1844
        %v1847 = vsel %vm927, %v1817, %v1823
        %v1848 = vsel %vm936, %v1847, %v1827
        %v1849 = vsel %vm1161, %v1848, %v1831
        %v1850 = vsel %vm927, %v1833, %v1837
        %v1851 = vsel %vm936, %v1850, %v1841
        %v1852 = vsel %vm1161, %v1851, %v1845
        %v1855 = vcombine.low %v1849, %v1852
        %v1857 = vunpack.c.l.s4 1966171168
        %v1858 = vunpack.c.0.s8 %v1857
        %v1859 = vlaneseq
        %v1860 = vshrl.u32 %v1859, 7
        %v1861 = vsub.s32 %v1858, %v1860
        %v1862 = vrot.slane %v1855, %v1861
        %v1864 = vunpack.c.l.s4 1966171168
        %v1865 = vunpack.c.0.s8 %v1864
        %v1866 = vlaneseq
        %v1867 = vshrl.u32 %v1866, 7
        %v1868 = vsub.s32 %v1865, %v1867
        %v1869 = vrot.slane %v1862, %v1868
        %s1871 = scalar_lea.vmem [#allocation3], 3
        %1872 = vst.msk [vmem:[%s1871] ss:$8 sm:$0x3] %vm1187, %v1869
        %1873 = vst.msk [vmem:[%s1871] ss:$8 sm:$0x0] %vm1187, %v1869
        %vm1874 = vcmask 782340
        %1875 = vst.msk [vmem:[#allocation2 - $0x4] sm:$0x10] %vm1874, %v773
        %1876 = vst.msk [vmem:[#allocation2 - $0x3] sm:$0x10] %vm1874, %v928
        %1877 = vst.msk [vmem:[#allocation2 - $0x2] sm:$0x10] %vm1874, %v937
        %1878 = vst.msk [vmem:[#allocation2 - $0x1] sm:$0x10] %vm1874, %v941
        %1879 = vst.msk [vmem:[#allocation2] sm:$0x10] %vm1874, %v846
        %1880 = vst.msk [vmem:[#allocation2 + $0x1] sm:$0x10] %vm1874, %v951
        %1881 = vst.msk [vmem:[#allocation2 + $0x2] sm:$0x10] %vm1874, %v959
        %1882 = vst.msk [vmem:[#allocation2 + $0x3] sm:$0x10] %vm1874, %v963
        %v1883 = vld [vmem:[#allocation2] sm:$0xff]
        %1885 = vrot.lane.b32.xlu0 %v1883, 96
        %v1886 = vpop.permute.xlu0 %1885
        %v1887 = vsel %vm927, %v1883, 0
        %v1889 = vsel %vm927, %v1886, 0
        %1891 = vmatprep.subr.mxu0 0.0
        %1892 = vmatpush1.xpose.msra.mxu0 %v1889
        %1893 = vmatprep.subr.mxu0 0.0
        %1894 = vmatpush1.xpose.msra.mxu0 0.0
        %1895 = vmatprep.subr.mxu0 0.0
        %1896 = vmatpush1.xpose.msra.mxu0 0.0
        %1897 = vmatprep.subr.mxu0 0.0
        %1898 = vmatpush1.xpose.msra.mxu0 0.0
        %1899 = vmatprep.subr.mxu0 0.0
        %1900 = vmatpush1.xpose.msra.mxu0 0.0
        %1901 = vmatprep.subr.mxu0 0.0
        %1902 = vmatpush1.xpose.msra.mxu0 0.0
        %1903 = vmatprep.subr.mxu0 0.0
        %1904 = vmatpush1.xpose.msra.mxu0 0.0
        %1905 = vmatprep.subr.mxu0 0.0
        %1906 = vmatpush1.xpose.msra.mxu0 0.0
        %1907 = vmatprep.subr.mxu0 0.0
        %1908 = vmatpush1.xpose.msra.mxu0 0.0
        %1909 = vmatprep.subr.mxu0 0.0
        %1910 = vmatpush1.xpose.msra.mxu0 0.0
        %1911 = vmatprep.subr.mxu0 0.0
        %1912 = vmatpush1.xpose.msra.mxu0 0.0
        %1913 = vmatprep.subr.mxu0 0.0
        %1914 = vmatpush1.xpose.msra.mxu0 0.0
        %1915 = vmatprep.subr.mxu0 0.0
        %1916 = vmatpush1.xpose.msra.mxu0 0.0
        %1917 = vmatprep.subr.mxu0 0.0
        %1918 = vmatpush1.xpose.msra.mxu0 0.0
        %1919 = vmatprep.subr.mxu0 0.0
        %1920 = vmatpush1.xpose.msra.mxu0 0.0
        %1921 = vmatprep.subr.mxu0 0.0
        %1922 = vmatpush1.xpose.msra.mxu0 0.0
        %1923 = vmatprep.subr.mxu0 0.0
        %1924 = vmatpush1.xpose.msra.mxu0 0.0
        %1925 = vmatprep.subr.mxu0 0.0
        %1926 = vmatpush1.xpose.msra.mxu0 0.0
        %1927 = vmatprep.subr.mxu0 0.0
        %1928 = vmatpush1.xpose.msra.mxu0 0.0
        %1929 = vmatprep.subr.mxu0 0.0
        %1930 = vmatpush1.xpose.msra.mxu0 0.0
        %1931 = vmatprep.subr.mxu0 0.0
        %1932 = vmatpush1.xpose.msra.mxu0 0.0
        %1933 = vmatprep.subr.mxu0 0.0
        %1934 = vmatpush1.xpose.msra.mxu0 0.0
        %1935 = vmatprep.subr.mxu0 0.0
        %1936 = vmatpush1.xpose.msra.mxu0 0.0
        %1937 = vmatprep.subr.mxu0 0.0
        %1938 = vmatpush1.xpose.msra.mxu0 0.0
        %1939 = vmatprep.subr.mxu0 0.0
        %1940 = vmatpush1.xpose.msra.mxu0 0.0
        %1941 = vmatprep.subr.mxu0 0.0
        %1942 = vmatpush1.xpose.msra.mxu0 0.0
        %1943 = vmatprep.subr.mxu0 0.0
        %1944 = vmatpush1.xpose.msra.mxu0 0.0
        %1945 = vmatprep.subr.mxu0 0.0
        %1946 = vmatpush1.xpose.msra.mxu0 0.0
        %1947 = vmatprep.subr.mxu0 0.0
        %1948 = vmatpush1.xpose.msra.mxu0 0.0
        %1949 = vmatprep.subr.mxu0 0.0
        %1950 = vmatpush1.xpose.msra.mxu0 0.0
        %1951 = vmatprep.subr.mxu0 0.0
        %1952 = vmatpush1.xpose.msra.mxu0 0.0
        %1953 = vmatprep.subr.mxu0 0.0
        %1954 = vmatpush1.xpose.msra.mxu0 0.0
        %1955 = vmatprep.mubr.f32.mxu0 0.0
        %1956 = vmatmul.mubr.f32.gmra.mrb[0].mxu0 %v1887
        %v1957 = vpop.f32.mrb[0].mxu0
        %v1958 = vadd.f32 0.0, %v1957
        %v1959 = vpop.f32.mrb[0].mxu0
        %1960 = vdwg.mxu0
        %v1961 = vsel %vm1044, %v1958, -inf
        %1962 = vmax.xlane.f32.xlu0 %v1961
        %v1963 = vpop.xlane.xlu0 %1962
        %v1964 = vsub.f32 %v1958, %v1963
        %v1965 = vmul.f32 %v1964, 1.442695
        %v1966 = vpow.pop %v1965
        %v1967 = vsel %vm1044, %v1966, 0.0
        %1968 = vadd.xlane.f32.xlu0 %v1967
        %v1969 = vpop.xlane.xlu0 %1968
        %v1970 = vrcp.pop %v1969
        %v1971 = vmul.f32 %v1966, %v1970
        %1972 = vrot.lane.b32.xlu0 %v1883, 64
        %v1973 = vpop.permute.xlu0 %1972
        %v1976 = vsel %vm1044, %v1971, 0
        %1978 = vmatprep.subr.mxu0 0.0
        %1979 = vmatpush1.msra.mxu0 %v1973
        %1980 = vmatprep.subr.mxu0 0.0
        %1981 = vmatpush1.msra.mxu0 0.0
        %1982 = vmatprep.subr.mxu0 0.0
        %1983 = vmatpush1.msra.mxu0 0.0
        %1984 = vmatprep.subr.mxu0 0.0
        %1985 = vmatpush1.msra.mxu0 0.0
        %1986 = vmatprep.subr.mxu0 0.0
        %1987 = vmatpush1.msra.mxu0 0.0
        %1988 = vmatprep.subr.mxu0 0.0
        %1989 = vmatpush1.msra.mxu0 0.0
        %1990 = vmatprep.subr.mxu0 0.0
        %1991 = vmatpush1.msra.mxu0 0.0
        %1992 = vmatprep.subr.mxu0 0.0
        %1993 = vmatpush1.msra.mxu0 0.0
        %1994 = vmatprep.subr.mxu0 0.0
        %1995 = vmatpush1.msra.mxu0 0.0
        %1996 = vmatprep.subr.mxu0 0.0
        %1997 = vmatpush1.msra.mxu0 0.0
        %1998 = vmatprep.subr.mxu0 0.0
        %1999 = vmatpush1.msra.mxu0 0.0
        %2000 = vmatprep.subr.mxu0 0.0
        %2001 = vmatpush1.msra.mxu0 0.0
        %2002 = vmatprep.subr.mxu0 0.0
        %2003 = vmatpush1.msra.mxu0 0.0
        %2004 = vmatprep.subr.mxu0 0.0
        %2005 = vmatpush1.msra.mxu0 0.0
        %2006 = vmatprep.subr.mxu0 0.0
        %2007 = vmatpush1.msra.mxu0 0.0
        %2008 = vmatprep.subr.mxu0 0.0
        %2009 = vmatpush1.msra.mxu0 0.0
        %2010 = vmatprep.subr.mxu0 0.0
        %2011 = vmatpush1.msra.mxu0 0.0
        %2012 = vmatprep.subr.mxu0 0.0
        %2013 = vmatpush1.msra.mxu0 0.0
        %2014 = vmatprep.subr.mxu0 0.0
        %2015 = vmatpush1.msra.mxu0 0.0
        %2016 = vmatprep.subr.mxu0 0.0
        %2017 = vmatpush1.msra.mxu0 0.0
        %2018 = vmatprep.subr.mxu0 0.0
        %2019 = vmatpush1.msra.mxu0 0.0
        %2020 = vmatprep.subr.mxu0 0.0
        %2021 = vmatpush1.msra.mxu0 0.0
        %2022 = vmatprep.subr.mxu0 0.0
        %2023 = vmatpush1.msra.mxu0 0.0
        %2024 = vmatprep.subr.mxu0 0.0
        %2025 = vmatpush1.msra.mxu0 0.0
        %2026 = vmatprep.subr.mxu0 0.0
        %2027 = vmatpush1.msra.mxu0 0.0
        %2028 = vmatprep.subr.mxu0 0.0
        %2029 = vmatpush1.msra.mxu0 0.0
        %2030 = vmatprep.subr.mxu0 0.0
        %2031 = vmatpush1.msra.mxu0 0.0
        %2032 = vmatprep.subr.mxu0 0.0
        %2033 = vmatpush1.msra.mxu0 0.0
        %2034 = vmatprep.subr.mxu0 0.0
        %2035 = vmatpush1.msra.mxu0 0.0
        %2036 = vmatprep.subr.mxu0 0.0
        %2037 = vmatpush1.msra.mxu0 0.0
        %2038 = vmatprep.subr.mxu0 0.0
        %2039 = vmatpush1.msra.mxu0 0.0
        %2040 = vmatprep.subr.mxu0 0.0
        %2041 = vmatpush1.msra.mxu0 0.0
        %2042 = vmatprep.mubr.f32.mxu0 0.0
        %2043 = vmatmul.mubr.f32.gmra.mrb[0].mxu0 %v1976
        %v2044 = vpop.f32.mrb[0].mxu0
        %v2045 = vadd.f32 0.0, %v2044
        %v2046 = vpop.f32.mrb[0].mxu0
        %2047 = vdwg.mxu0
        %v2049 = vrot.slane %v2045, 1
        %2050 = vrot.lane.b32.xlu0 %v2049, 32
        %v2051 = vpop.permute.xlu0 %2050
        %v2053 = vrot.slane %v2045, 2
        %2054 = vrot.lane.b32.xlu0 %v2053, 64
        %v2055 = vpop.permute.xlu0 %2054
        %v2057 = vrot.slane %v2045, 3
        %2058 = vrot.lane.b32.xlu0 %v2057, 96
        %v2059 = vpop.permute.xlu0 %2058
        %v2061 = vrot.slane %v2045, 4
        %v2063 = vrot.slane %v2045, 5
        %2064 = vrot.lane.b32.xlu0 %v2063, 32
        %v2065 = vpop.permute.xlu0 %2064
        %v2067 = vrot.slane %v2045, 6
        %2068 = vrot.lane.b32.xlu0 %v2067, 64
        %v2069 = vpop.permute.xlu0 %2068
        %v2071 = vrot.slane %v2045, 7
        %2072 = vrot.lane.b32.xlu0 %v2071, 96
        %v2073 = vpop.permute.xlu0 %2072
        %v2075 = vsel %vm927, %v2045, %v2051
        %v2076 = vsel %vm936, %v2075, %v2055
        %v2077 = vsel %vm1161, %v2076, %v2059
        %v2078 = vsel %vm927, %v2061, %v2065
        %v2079 = vsel %vm936, %v2078, %v2069
        %v2080 = vsel %vm1161, %v2079, %v2073
        %v2083 = vcombine.low %v2077, %v2080
        %v2085 = vunpack.c.l.s4 1966171168
        %v2086 = vunpack.c.0.s8 %v2085
        %v2087 = vlaneseq
        %v2088 = vshrl.u32 %v2087, 7
        %v2089 = vsub.s32 %v2086, %v2088
        %v2090 = vrot.slane %v2083, %v2089
        %v2092 = vunpack.c.l.s4 1966171168
        %v2093 = vunpack.c.0.s8 %v2092
        %v2094 = vlaneseq
        %v2095 = vshrl.u32 %v2094, 7
        %v2096 = vsub.s32 %v2093, %v2095
        %v2097 = vrot.slane %v2090, %v2096
        %s2099 = scalar_lea.vmem [#allocation3], 4
        %2100 = vst.msk [vmem:[%s2099] ss:$8 sm:$0x3] %vm1187, %v2097
        %2101 = vst.msk [vmem:[%s2099] ss:$8 sm:$0x0] %vm1187, %v2097
        %vm2102 = vcmask 783365
        %2103 = vst.msk [vmem:[#allocation2 - $0x5] sm:$0x20] %vm2102, %v773
        %2104 = vst.msk [vmem:[#allocation2 - $0x4] sm:$0x20] %vm2102, %v928
        %2105 = vst.msk [vmem:[#allocation2 - $0x3] sm:$0x20] %vm2102, %v937
        %2106 = vst.msk [vmem:[#allocation2 - $0x2] sm:$0x20] %vm2102, %v941
        %2107 = vst.msk [vmem:[#allocation2 - $0x1] sm:$0x20] %vm2102, %v846
        %2108 = vst.msk [vmem:[#allocation2] sm:$0x20] %vm2102, %v951
        %2109 = vst.msk [vmem:[#allocation2 + $0x1] sm:$0x20] %vm2102, %v959
        %2110 = vst.msk [vmem:[#allocation2 + $0x2] sm:$0x20] %vm2102, %v963
        %v2111 = vld [vmem:[#allocation2] sm:$0xff]
        %2113 = vrot.lane.b32.xlu0 %v2111, 96
        %v2114 = vpop.permute.xlu0 %2113
        %v2115 = vsel %vm927, %v2111, 0
        %v2117 = vsel %vm927, %v2114, 0
        %2119 = vmatprep.subr.mxu0 0.0
        %2120 = vmatpush1.xpose.msra.mxu0 %v2117
        %2121 = vmatprep.subr.mxu0 0.0
        %2122 = vmatpush1.xpose.msra.mxu0 0.0
        %2123 = vmatprep.subr.mxu0 0.0
        %2124 = vmatpush1.xpose.msra.mxu0 0.0
        %2125 = vmatprep.subr.mxu0 0.0
        %2126 = vmatpush1.xpose.msra.mxu0 0.0
        %2127 = vmatprep.subr.mxu0 0.0
        %2128 = vmatpush1.xpose.msra.mxu0 0.0
        %2129 = vmatprep.subr.mxu0 0.0
        %2130 = vmatpush1.xpose.msra.mxu0 0.0
        %2131 = vmatprep.subr.mxu0 0.0
        %2132 = vmatpush1.xpose.msra.mxu0 0.0
        %2133 = vmatprep.subr.mxu0 0.0
        %2134 = vmatpush1.xpose.msra.mxu0 0.0
        %2135 = vmatprep.subr.mxu0 0.0
        %2136 = vmatpush1.xpose.msra.mxu0 0.0
        %2137 = vmatprep.subr.mxu0 0.0
        %2138 = vmatpush1.xpose.msra.mxu0 0.0
        %2139 = vmatprep.subr.mxu0 0.0
        %2140 = vmatpush1.xpose.msra.mxu0 0.0
        %2141 = vmatprep.subr.mxu0 0.0
        %2142 = vmatpush1.xpose.msra.mxu0 0.0
        %2143 = vmatprep.subr.mxu0 0.0
        %2144 = vmatpush1.xpose.msra.mxu0 0.0
        %2145 = vmatprep.subr.mxu0 0.0
        %2146 = vmatpush1.xpose.msra.mxu0 0.0
        %2147 = vmatprep.subr.mxu0 0.0
        %2148 = vmatpush1.xpose.msra.mxu0 0.0
        %2149 = vmatprep.subr.mxu0 0.0
        %2150 = vmatpush1.xpose.msra.mxu0 0.0
        %2151 = vmatprep.subr.mxu0 0.0
        %2152 = vmatpush1.xpose.msra.mxu0 0.0
        %2153 = vmatprep.subr.mxu0 0.0
        %2154 = vmatpush1.xpose.msra.mxu0 0.0
        %2155 = vmatprep.subr.mxu0 0.0
        %2156 = vmatpush1.xpose.msra.mxu0 0.0
        %2157 = vmatprep.subr.mxu0 0.0
        %2158 = vmatpush1.xpose.msra.mxu0 0.0
        %2159 = vmatprep.subr.mxu0 0.0
        %2160 = vmatpush1.xpose.msra.mxu0 0.0
        %2161 = vmatprep.subr.mxu0 0.0
        %2162 = vmatpush1.xpose.msra.mxu0 0.0
        %2163 = vmatprep.subr.mxu0 0.0
        %2164 = vmatpush1.xpose.msra.mxu0 0.0
        %2165 = vmatprep.subr.mxu0 0.0
        %2166 = vmatpush1.xpose.msra.mxu0 0.0
        %2167 = vmatprep.subr.mxu0 0.0
        %2168 = vmatpush1.xpose.msra.mxu0 0.0
        %2169 = vmatprep.subr.mxu0 0.0
        %2170 = vmatpush1.xpose.msra.mxu0 0.0
        %2171 = vmatprep.subr.mxu0 0.0
        %2172 = vmatpush1.xpose.msra.mxu0 0.0
        %2173 = vmatprep.subr.mxu0 0.0
        %2174 = vmatpush1.xpose.msra.mxu0 0.0
        %2175 = vmatprep.subr.mxu0 0.0
        %2176 = vmatpush1.xpose.msra.mxu0 0.0
        %2177 = vmatprep.subr.mxu0 0.0
        %2178 = vmatpush1.xpose.msra.mxu0 0.0
        %2179 = vmatprep.subr.mxu0 0.0
        %2180 = vmatpush1.xpose.msra.mxu0 0.0
        %2181 = vmatprep.subr.mxu0 0.0
        %2182 = vmatpush1.xpose.msra.mxu0 0.0
        %2183 = vmatprep.mubr.f32.mxu0 0.0
        %2184 = vmatmul.mubr.f32.gmra.mrb[0].mxu0 %v2115
        %v2185 = vpop.f32.mrb[0].mxu0
        %v2186 = vadd.f32 0.0, %v2185
        %v2187 = vpop.f32.mrb[0].mxu0
        %2188 = vdwg.mxu0
        %v2189 = vsel %vm1044, %v2186, -inf
        %2190 = vmax.xlane.f32.xlu0 %v2189
        %v2191 = vpop.xlane.xlu0 %2190
        %v2192 = vsub.f32 %v2186, %v2191
        %v2193 = vmul.f32 %v2192, 1.442695
        %v2194 = vpow.pop %v2193
        %v2195 = vsel %vm1044, %v2194, 0.0
        %2196 = vadd.xlane.f32.xlu0 %v2195
        %v2197 = vpop.xlane.xlu0 %2196
        %v2198 = vrcp.pop %v2197
        %v2199 = vmul.f32 %v2194, %v2198
        %2200 = vrot.lane.b32.xlu0 %v2111, 64
        %v2201 = vpop.permute.xlu0 %2200
        %v2204 = vsel %vm1044, %v2199, 0
        %2206 = vmatprep.subr.mxu0 0.0
        %2207 = vmatpush1.msra.mxu0 %v2201
        %2208 = vmatprep.subr.mxu0 0.0
        %2209 = vmatpush1.msra.mxu0 0.0
        %2210 = vmatprep.subr.mxu0 0.0
        %2211 = vmatpush1.msra.mxu0 0.0
        %2212 = vmatprep.subr.mxu0 0.0
        %2213 = vmatpush1.msra.mxu0 0.0
        %2214 = vmatprep.subr.mxu0 0.0
        %2215 = vmatpush1.msra.mxu0 0.0
        %2216 = vmatprep.subr.mxu0 0.0
        %2217 = vmatpush1.msra.mxu0 0.0
        %2218 = vmatprep.subr.mxu0 0.0
        %2219 = vmatpush1.msra.mxu0 0.0
        %2220 = vmatprep.subr.mxu0 0.0
        %2221 = vmatpush1.msra.mxu0 0.0
        %2222 = vmatprep.subr.mxu0 0.0
        %2223 = vmatpush1.msra.mxu0 0.0
        %2224 = vmatprep.subr.mxu0 0.0
        %2225 = vmatpush1.msra.mxu0 0.0
        %2226 = vmatprep.subr.mxu0 0.0
        %2227 = vmatpush1.msra.mxu0 0.0
        %2228 = vmatprep.subr.mxu0 0.0
        %2229 = vmatpush1.msra.mxu0 0.0
        %2230 = vmatprep.subr.mxu0 0.0
        %2231 = vmatpush1.msra.mxu0 0.0
        %2232 = vmatprep.subr.mxu0 0.0
        %2233 = vmatpush1.msra.mxu0 0.0
        %2234 = vmatprep.subr.mxu0 0.0
        %2235 = vmatpush1.msra.mxu0 0.0
        %2236 = vmatprep.subr.mxu0 0.0
        %2237 = vmatpush1.msra.mxu0 0.0
        %2238 = vmatprep.subr.mxu0 0.0
        %2239 = vmatpush1.msra.mxu0 0.0
        %2240 = vmatprep.subr.mxu0 0.0
        %2241 = vmatpush1.msra.mxu0 0.0
        %2242 = vmatprep.subr.mxu0 0.0
        %2243 = vmatpush1.msra.mxu0 0.0
        %2244 = vmatprep.subr.mxu0 0.0
        %2245 = vmatpush1.msra.mxu0 0.0
        %2246 = vmatprep.subr.mxu0 0.0
        %2247 = vmatpush1.msra.mxu0 0.0
        %2248 = vmatprep.subr.mxu0 0.0
        %2249 = vmatpush1.msra.mxu0 0.0
        %2250 = vmatprep.subr.mxu0 0.0
        %2251 = vmatpush1.msra.mxu0 0.0
        %2252 = vmatprep.subr.mxu0 0.0
        %2253 = vmatpush1.msra.mxu0 0.0
        %2254 = vmatprep.subr.mxu0 0.0
        %2255 = vmatpush1.msra.mxu0 0.0
        %2256 = vmatprep.subr.mxu0 0.0
        %2257 = vmatpush1.msra.mxu0 0.0
        %2258 = vmatprep.subr.mxu0 0.0
        %2259 = vmatpush1.msra.mxu0 0.0
        %2260 = vmatprep.subr.mxu0 0.0
        %2261 = vmatpush1.msra.mxu0 0.0
        %2262 = vmatprep.subr.mxu0 0.0
        %2263 = vmatpush1.msra.mxu0 0.0
        %2264 = vmatprep.subr.mxu0 0.0
        %2265 = vmatpush1.msra.mxu0 0.0
        %2266 = vmatprep.subr.mxu0 0.0
        %2267 = vmatpush1.msra.mxu0 0.0
        %2268 = vmatprep.subr.mxu0 0.0
        %2269 = vmatpush1.msra.mxu0 0.0
        %2270 = vmatprep.mubr.f32.mxu0 0.0
        %2271 = vmatmul.mubr.f32.gmra.mrb[0].mxu0 %v2204
        %v2272 = vpop.f32.mrb[0].mxu0
        %v2273 = vadd.f32 0.0, %v2272
        %v2274 = vpop.f32.mrb[0].mxu0
        %2275 = vdwg.mxu0
        %v2277 = vrot.slane %v2273, 1
        %2278 = vrot.lane.b32.xlu0 %v2277, 32
        %v2279 = vpop.permute.xlu0 %2278
        %v2281 = vrot.slane %v2273, 2
        %2282 = vrot.lane.b32.xlu0 %v2281, 64
        %v2283 = vpop.permute.xlu0 %2282
        %v2285 = vrot.slane %v2273, 3
        %2286 = vrot.lane.b32.xlu0 %v2285, 96
        %v2287 = vpop.permute.xlu0 %2286
        %v2289 = vrot.slane %v2273, 4
        %v2291 = vrot.slane %v2273, 5
        %2292 = vrot.lane.b32.xlu0 %v2291, 32
        %v2293 = vpop.permute.xlu0 %2292
        %v2295 = vrot.slane %v2273, 6
        %2296 = vrot.lane.b32.xlu0 %v2295, 64
        %v2297 = vpop.permute.xlu0 %2296
        %v2299 = vrot.slane %v2273, 7
        %2300 = vrot.lane.b32.xlu0 %v2299, 96
        %v2301 = vpop.permute.xlu0 %2300
        %v2303 = vsel %vm927, %v2273, %v2279
        %v2304 = vsel %vm936, %v2303, %v2283
        %v2305 = vsel %vm1161, %v2304, %v2287
        %v2306 = vsel %vm927, %v2289, %v2293
        %v2307 = vsel %vm936, %v2306, %v2297
        %v2308 = vsel %vm1161, %v2307, %v2301
        %v2311 = vcombine.low %v2305, %v2308
        %v2313 = vunpack.c.l.s4 1966171168
        %v2314 = vunpack.c.0.s8 %v2313
        %v2315 = vlaneseq
        %v2316 = vshrl.u32 %v2315, 7
        %v2317 = vsub.s32 %v2314, %v2316
        %v2318 = vrot.slane %v2311, %v2317
        %v2320 = vunpack.c.l.s4 1966171168
        %v2321 = vunpack.c.0.s8 %v2320
        %v2322 = vlaneseq
        %v2323 = vshrl.u32 %v2322, 7
        %v2324 = vsub.s32 %v2321, %v2323
        %v2325 = vrot.slane %v2318, %v2324
        %s2327 = scalar_lea.vmem [#allocation3], 5
        %2328 = vst.msk [vmem:[%s2327] ss:$8 sm:$0x3] %vm1187, %v2325
        %2329 = vst.msk [vmem:[%s2327] ss:$8 sm:$0x0] %vm1187, %v2325
        %vm2330 = vcmask 784390
        %2331 = vst.msk [vmem:[#allocation2 - $0x6] sm:$0x40] %vm2330, %v773
        %2332 = vst.msk [vmem:[#allocation2 - $0x5] sm:$0x40] %vm2330, %v928
        %2333 = vst.msk [vmem:[#allocation2 - $0x4] sm:$0x40] %vm2330, %v937
        %2334 = vst.msk [vmem:[#allocation2 - $0x3] sm:$0x40] %vm2330, %v941
        %2335 = vst.msk [vmem:[#allocation2 - $0x2] sm:$0x40] %vm2330, %v846
        %2336 = vst.msk [vmem:[#allocation2 - $0x1] sm:$0x40] %vm2330, %v951
        %2337 = vst.msk [vmem:[#allocation2] sm:$0x40] %vm2330, %v959
        %2338 = vst.msk [vmem:[#allocation2 + $0x1] sm:$0x40] %vm2330, %v963
        %v2339 = vld [vmem:[#allocation2] sm:$0xff]
        %2341 = vrot.lane.b32.xlu0 %v2339, 96
        %v2342 = vpop.permute.xlu0 %2341
        %v2343 = vsel %vm927, %v2339, 0
        %v2345 = vsel %vm927, %v2342, 0
        %2347 = vmatprep.subr.mxu0 0.0
        %2348 = vmatpush1.xpose.msra.mxu0 %v2345
        %2349 = vmatprep.subr.mxu0 0.0
        %2350 = vmatpush1.xpose.msra.mxu0 0.0
        %2351 = vmatprep.subr.mxu0 0.0
        %2352 = vmatpush1.xpose.msra.mxu0 0.0
        %2353 = vmatprep.subr.mxu0 0.0
        %2354 = vmatpush1.xpose.msra.mxu0 0.0
        %2355 = vmatprep.subr.mxu0 0.0
        %2356 = vmatpush1.xpose.msra.mxu0 0.0
        %2357 = vmatprep.subr.mxu0 0.0
        %2358 = vmatpush1.xpose.msra.mxu0 0.0
        %2359 = vmatprep.subr.mxu0 0.0
        %2360 = vmatpush1.xpose.msra.mxu0 0.0
        %2361 = vmatprep.subr.mxu0 0.0
        %2362 = vmatpush1.xpose.msra.mxu0 0.0
        %2363 = vmatprep.subr.mxu0 0.0
        %2364 = vmatpush1.xpose.msra.mxu0 0.0
        %2365 = vmatprep.subr.mxu0 0.0
        %2366 = vmatpush1.xpose.msra.mxu0 0.0
        %2367 = vmatprep.subr.mxu0 0.0
        %2368 = vmatpush1.xpose.msra.mxu0 0.0
        %2369 = vmatprep.subr.mxu0 0.0
        %2370 = vmatpush1.xpose.msra.mxu0 0.0
        %2371 = vmatprep.subr.mxu0 0.0
        %2372 = vmatpush1.xpose.msra.mxu0 0.0
        %2373 = vmatprep.subr.mxu0 0.0
        %2374 = vmatpush1.xpose.msra.mxu0 0.0
        %2375 = vmatprep.subr.mxu0 0.0
        %2376 = vmatpush1.xpose.msra.mxu0 0.0
        %2377 = vmatprep.subr.mxu0 0.0
        %2378 = vmatpush1.xpose.msra.mxu0 0.0
        %2379 = vmatprep.subr.mxu0 0.0
        %2380 = vmatpush1.xpose.msra.mxu0 0.0
        %2381 = vmatprep.subr.mxu0 0.0
        %2382 = vmatpush1.xpose.msra.mxu0 0.0
        %2383 = vmatprep.subr.mxu0 0.0
        %2384 = vmatpush1.xpose.msra.mxu0 0.0
        %2385 = vmatprep.subr.mxu0 0.0
        %2386 = vmatpush1.xpose.msra.mxu0 0.0
        %2387 = vmatprep.subr.mxu0 0.0
        %2388 = vmatpush1.xpose.msra.mxu0 0.0
        %2389 = vmatprep.subr.mxu0 0.0
        %2390 = vmatpush1.xpose.msra.mxu0 0.0
        %2391 = vmatprep.subr.mxu0 0.0
        %2392 = vmatpush1.xpose.msra.mxu0 0.0
        %2393 = vmatprep.subr.mxu0 0.0
        %2394 = vmatpush1.xpose.msra.mxu0 0.0
        %2395 = vmatprep.subr.mxu0 0.0
        %2396 = vmatpush1.xpose.msra.mxu0 0.0
        %2397 = vmatprep.subr.mxu0 0.0
        %2398 = vmatpush1.xpose.msra.mxu0 0.0
        %2399 = vmatprep.subr.mxu0 0.0
        %2400 = vmatpush1.xpose.msra.mxu0 0.0
        %2401 = vmatprep.subr.mxu0 0.0
        %2402 = vmatpush1.xpose.msra.mxu0 0.0
        %2403 = vmatprep.subr.mxu0 0.0
        %2404 = vmatpush1.xpose.msra.mxu0 0.0
        %2405 = vmatprep.subr.mxu0 0.0
        %2406 = vmatpush1.xpose.msra.mxu0 0.0
        %2407 = vmatprep.subr.mxu0 0.0
        %2408 = vmatpush1.xpose.msra.mxu0 0.0
        %2409 = vmatprep.subr.mxu0 0.0
        %2410 = vmatpush1.xpose.msra.mxu0 0.0
        %2411 = vmatprep.mubr.f32.mxu0 0.0
        %2412 = vmatmul.mubr.f32.gmra.mrb[0].mxu0 %v2343
        %v2413 = vpop.f32.mrb[0].mxu0
        %v2414 = vadd.f32 0.0, %v2413
        %v2415 = vpop.f32.mrb[0].mxu0
        %2416 = vdwg.mxu0
        %v2417 = vsel %vm1044, %v2414, -inf
        %2418 = vmax.xlane.f32.xlu0 %v2417
        %v2419 = vpop.xlane.xlu0 %2418
        %v2420 = vsub.f32 %v2414, %v2419
        %v2421 = vmul.f32 %v2420, 1.442695
        %v2422 = vpow.pop %v2421
        %v2423 = vsel %vm1044, %v2422, 0.0
        %2424 = vadd.xlane.f32.xlu0 %v2423
        %v2425 = vpop.xlane.xlu0 %2424
        %v2426 = vrcp.pop %v2425
        %v2427 = vmul.f32 %v2422, %v2426
        %2428 = vrot.lane.b32.xlu0 %v2339, 64
        %v2429 = vpop.permute.xlu0 %2428
        %v2432 = vsel %vm1044, %v2427, 0
        %2434 = vmatprep.subr.mxu0 0.0
        %2435 = vmatpush1.msra.mxu0 %v2429
        %2436 = vmatprep.subr.mxu0 0.0
        %2437 = vmatpush1.msra.mxu0 0.0
        %2438 = vmatprep.subr.mxu0 0.0
        %2439 = vmatpush1.msra.mxu0 0.0
        %2440 = vmatprep.subr.mxu0 0.0
        %2441 = vmatpush1.msra.mxu0 0.0
        %2442 = vmatprep.subr.mxu0 0.0
        %2443 = vmatpush1.msra.mxu0 0.0
        %2444 = vmatprep.subr.mxu0 0.0
        %2445 = vmatpush1.msra.mxu0 0.0
        %2446 = vmatprep.subr.mxu0 0.0
        %2447 = vmatpush1.msra.mxu0 0.0
        %2448 = vmatprep.subr.mxu0 0.0
        %2449 = vmatpush1.msra.mxu0 0.0
        %2450 = vmatprep.subr.mxu0 0.0
        %2451 = vmatpush1.msra.mxu0 0.0
        %2452 = vmatprep.subr.mxu0 0.0
        %2453 = vmatpush1.msra.mxu0 0.0
        %2454 = vmatprep.subr.mxu0 0.0
        %2455 = vmatpush1.msra.mxu0 0.0
        %2456 = vmatprep.subr.mxu0 0.0
        %2457 = vmatpush1.msra.mxu0 0.0
        %2458 = vmatprep.subr.mxu0 0.0
        %2459 = vmatpush1.msra.mxu0 0.0
        %2460 = vmatprep.subr.mxu0 0.0
        %2461 = vmatpush1.msra.mxu0 0.0
        %2462 = vmatprep.subr.mxu0 0.0
        %2463 = vmatpush1.msra.mxu0 0.0
        %2464 = vmatprep.subr.mxu0 0.0
        %2465 = vmatpush1.msra.mxu0 0.0
        %2466 = vmatprep.subr.mxu0 0.0
        %2467 = vmatpush1.msra.mxu0 0.0
        %2468 = vmatprep.subr.mxu0 0.0
        %2469 = vmatpush1.msra.mxu0 0.0
        %2470 = vmatprep.subr.mxu0 0.0
        %2471 = vmatpush1.msra.mxu0 0.0
        %2472 = vmatprep.subr.mxu0 0.0
        %2473 = vmatpush1.msra.mxu0 0.0
        %2474 = vmatprep.subr.mxu0 0.0
        %2475 = vmatpush1.msra.mxu0 0.0
        %2476 = vmatprep.subr.mxu0 0.0
        %2477 = vmatpush1.msra.mxu0 0.0
        %2478 = vmatprep.subr.mxu0 0.0
        %2479 = vmatpush1.msra.mxu0 0.0
        %2480 = vmatprep.subr.mxu0 0.0
        %2481 = vmatpush1.msra.mxu0 0.0
        %2482 = vmatprep.subr.mxu0 0.0
        %2483 = vmatpush1.msra.mxu0 0.0
        %2484 = vmatprep.subr.mxu0 0.0
        %2485 = vmatpush1.msra.mxu0 0.0
        %2486 = vmatprep.subr.mxu0 0.0
        %2487 = vmatpush1.msra.mxu0 0.0
        %2488 = vmatprep.subr.mxu0 0.0
        %2489 = vmatpush1.msra.mxu0 0.0
        %2490 = vmatprep.subr.mxu0 0.0
        %2491 = vmatpush1.msra.mxu0 0.0
        %2492 = vmatprep.subr.mxu0 0.0
        %2493 = vmatpush1.msra.mxu0 0.0
        %2494 = vmatprep.subr.mxu0 0.0
        %2495 = vmatpush1.msra.mxu0 0.0
        %2496 = vmatprep.subr.mxu0 0.0
        %2497 = vmatpush1.msra.mxu0 0.0
        %2498 = vmatprep.mubr.f32.mxu0 0.0
        %2499 = vmatmul.mubr.f32.gmra.mrb[0].mxu0 %v2432
        %v2500 = vpop.f32.mrb[0].mxu0
        %v2501 = vadd.f32 0.0, %v2500
        %v2502 = vpop.f32.mrb[0].mxu0
        %2503 = vdwg.mxu0
        %v2505 = vrot.slane %v2501, 1
        %2506 = vrot.lane.b32.xlu0 %v2505, 32
        %v2507 = vpop.permute.xlu0 %2506
        %v2509 = vrot.slane %v2501, 2
        %2510 = vrot.lane.b32.xlu0 %v2509, 64
        %v2511 = vpop.permute.xlu0 %2510
        %v2513 = vrot.slane %v2501, 3
        %2514 = vrot.lane.b32.xlu0 %v2513, 96
        %v2515 = vpop.permute.xlu0 %2514
        %v2517 = vrot.slane %v2501, 4
        %v2519 = vrot.slane %v2501, 5
        %2520 = vrot.lane.b32.xlu0 %v2519, 32
        %v2521 = vpop.permute.xlu0 %2520
        %v2523 = vrot.slane %v2501, 6
        %2524 = vrot.lane.b32.xlu0 %v2523, 64
        %v2525 = vpop.permute.xlu0 %2524
        %v2527 = vrot.slane %v2501, 7
        %2528 = vrot.lane.b32.xlu0 %v2527, 96
        %v2529 = vpop.permute.xlu0 %2528
        %v2531 = vsel %vm927, %v2501, %v2507
        %v2532 = vsel %vm936, %v2531, %v2511
        %v2533 = vsel %vm1161, %v2532, %v2515
        %v2534 = vsel %vm927, %v2517, %v2521
        %v2535 = vsel %vm936, %v2534, %v2525
        %v2536 = vsel %vm1161, %v2535, %v2529
        %v2539 = vcombine.low %v2533, %v2536
        %v2541 = vunpack.c.l.s4 1966171168
        %v2542 = vunpack.c.0.s8 %v2541
        %v2543 = vlaneseq
        %v2544 = vshrl.u32 %v2543, 7
        %v2545 = vsub.s32 %v2542, %v2544
        %v2546 = vrot.slane %v2539, %v2545
        %v2548 = vunpack.c.l.s4 1966171168
        %v2549 = vunpack.c.0.s8 %v2548
        %v2550 = vlaneseq
        %v2551 = vshrl.u32 %v2550, 7
        %v2552 = vsub.s32 %v2549, %v2551
        %v2553 = vrot.slane %v2546, %v2552
        %s2555 = scalar_lea.vmem [#allocation3], 6
        %2556 = vst.msk [vmem:[%s2555] ss:$8 sm:$0x3] %vm1187, %v2553
        %2557 = vst.msk [vmem:[%s2555] ss:$8 sm:$0x0] %vm1187, %v2553
        %vm2558 = vcmask 785415
        %2559 = vst.msk [vmem:[#allocation2 - $0x7] sm:$0x80] %vm2558, %v773
        %2560 = vst.msk [vmem:[#allocation2 - $0x6] sm:$0x80] %vm2558, %v928
        %2561 = vst.msk [vmem:[#allocation2 - $0x5] sm:$0x80] %vm2558, %v937
        %2562 = vst.msk [vmem:[#allocation2 - $0x4] sm:$0x80] %vm2558, %v941
        %2563 = vst.msk [vmem:[#allocation2 - $0x3] sm:$0x80] %vm2558, %v846
        %2564 = vst.msk [vmem:[#allocation2 - $0x2] sm:$0x80] %vm2558, %v951
        %2565 = vst.msk [vmem:[#allocation2 - $0x1] sm:$0x80] %vm2558, %v959
        %2566 = vst.msk [vmem:[#allocation2] sm:$0x80] %vm2558, %v963
        %v2567 = vld [vmem:[#allocation2] sm:$0xff]
        %2569 = vrot.lane.b32.xlu0 %v2567, 96
        %v2570 = vpop.permute.xlu0 %2569
        %v2571 = vsel %vm927, %v2567, 0
        %v2573 = vsel %vm927, %v2570, 0
        %2575 = vmatprep.subr.mxu0 0.0
        %2576 = vmatpush1.xpose.msra.mxu0 %v2573
        %2577 = vmatprep.subr.mxu0 0.0
        %2578 = vmatpush1.xpose.msra.mxu0 0.0
        %2579 = vmatprep.subr.mxu0 0.0
        %2580 = vmatpush1.xpose.msra.mxu0 0.0
        %2581 = vmatprep.subr.mxu0 0.0
        %2582 = vmatpush1.xpose.msra.mxu0 0.0
        %2583 = vmatprep.subr.mxu0 0.0
        %2584 = vmatpush1.xpose.msra.mxu0 0.0
        %2585 = vmatprep.subr.mxu0 0.0
        %2586 = vmatpush1.xpose.msra.mxu0 0.0
        %2587 = vmatprep.subr.mxu0 0.0
        %2588 = vmatpush1.xpose.msra.mxu0 0.0
        %2589 = vmatprep.subr.mxu0 0.0
        %2590 = vmatpush1.xpose.msra.mxu0 0.0
        %2591 = vmatprep.subr.mxu0 0.0
        %2592 = vmatpush1.xpose.msra.mxu0 0.0
        %2593 = vmatprep.subr.mxu0 0.0
        %2594 = vmatpush1.xpose.msra.mxu0 0.0
        %2595 = vmatprep.subr.mxu0 0.0
        %2596 = vmatpush1.xpose.msra.mxu0 0.0
        %2597 = vmatprep.subr.mxu0 0.0
        %2598 = vmatpush1.xpose.msra.mxu0 0.0
        %2599 = vmatprep.subr.mxu0 0.0
        %2600 = vmatpush1.xpose.msra.mxu0 0.0
        %2601 = vmatprep.subr.mxu0 0.0
        %2602 = vmatpush1.xpose.msra.mxu0 0.0
        %2603 = vmatprep.subr.mxu0 0.0
        %2604 = vmatpush1.xpose.msra.mxu0 0.0
        %2605 = vmatprep.subr.mxu0 0.0
        %2606 = vmatpush1.xpose.msra.mxu0 0.0
        %2607 = vmatprep.subr.mxu0 0.0
        %2608 = vmatpush1.xpose.msra.mxu0 0.0
        %2609 = vmatprep.subr.mxu0 0.0
        %2610 = vmatpush1.xpose.msra.mxu0 0.0
        %2611 = vmatprep.subr.mxu0 0.0
        %2612 = vmatpush1.xpose.msra.mxu0 0.0
        %2613 = vmatprep.subr.mxu0 0.0
        %2614 = vmatpush1.xpose.msra.mxu0 0.0
        %2615 = vmatprep.subr.mxu0 0.0
        %2616 = vmatpush1.xpose.msra.mxu0 0.0
        %2617 = vmatprep.subr.mxu0 0.0
        %2618 = vmatpush1.xpose.msra.mxu0 0.0
        %2619 = vmatprep.subr.mxu0 0.0
        %2620 = vmatpush1.xpose.msra.mxu0 0.0
        %2621 = vmatprep.subr.mxu0 0.0
        %2622 = vmatpush1.xpose.msra.mxu0 0.0
        %2623 = vmatprep.subr.mxu0 0.0
        %2624 = vmatpush1.xpose.msra.mxu0 0.0
        %2625 = vmatprep.subr.mxu0 0.0
        %2626 = vmatpush1.xpose.msra.mxu0 0.0
        %2627 = vmatprep.subr.mxu0 0.0
        %2628 = vmatpush1.xpose.msra.mxu0 0.0
        %2629 = vmatprep.subr.mxu0 0.0
        %2630 = vmatpush1.xpose.msra.mxu0 0.0
        %2631 = vmatprep.subr.mxu0 0.0
        %2632 = vmatpush1.xpose.msra.mxu0 0.0
        %2633 = vmatprep.subr.mxu0 0.0
        %2634 = vmatpush1.xpose.msra.mxu0 0.0
        %2635 = vmatprep.subr.mxu0 0.0
        %2636 = vmatpush1.xpose.msra.mxu0 0.0
        %2637 = vmatprep.subr.mxu0 0.0
        %2638 = vmatpush1.xpose.msra.mxu0 0.0
        %2639 = vmatprep.mubr.f32.mxu0 0.0
        %2640 = vmatmul.mubr.f32.gmra.mrb[0].mxu0 %v2571
        %v2641 = vpop.f32.mrb[0].mxu0
        %v2642 = vadd.f32 0.0, %v2641
        %v2643 = vpop.f32.mrb[0].mxu0
        %2644 = vdwg.mxu0
        %v2645 = vsel %vm1044, %v2642, -inf
        %2646 = vmax.xlane.f32.xlu0 %v2645
        %v2647 = vpop.xlane.xlu0 %2646
        %v2648 = vsub.f32 %v2642, %v2647
        %v2649 = vmul.f32 %v2648, 1.442695
        %v2650 = vpow.pop %v2649
        %v2651 = vsel %vm1044, %v2650, 0.0
        %2652 = vadd.xlane.f32.xlu0 %v2651
        %v2653 = vpop.xlane.xlu0 %2652
        %v2654 = vrcp.pop %v2653
        %v2655 = vmul.f32 %v2650, %v2654
        %2656 = vrot.lane.b32.xlu0 %v2567, 64
        %v2657 = vpop.permute.xlu0 %2656
        %v2660 = vsel %vm1044, %v2655, 0
        %2662 = vmatprep.subr.mxu0 0.0
        %2663 = vmatpush1.msra.mxu0 %v2657
        %2664 = vmatprep.subr.mxu0 0.0
        %2665 = vmatpush1.msra.mxu0 0.0
        %2666 = vmatprep.subr.mxu0 0.0
        %2667 = vmatpush1.msra.mxu0 0.0
        %2668 = vmatprep.subr.mxu0 0.0
        %2669 = vmatpush1.msra.mxu0 0.0
        %2670 = vmatprep.subr.mxu0 0.0
        %2671 = vmatpush1.msra.mxu0 0.0
        %2672 = vmatprep.subr.mxu0 0.0
        %2673 = vmatpush1.msra.mxu0 0.0
        %2674 = vmatprep.subr.mxu0 0.0
        %2675 = vmatpush1.msra.mxu0 0.0
        %2676 = vmatprep.subr.mxu0 0.0
        %2677 = vmatpush1.msra.mxu0 0.0
        %2678 = vmatprep.subr.mxu0 0.0
        %2679 = vmatpush1.msra.mxu0 0.0
        %2680 = vmatprep.subr.mxu0 0.0
        %2681 = vmatpush1.msra.mxu0 0.0
        %2682 = vmatprep.subr.mxu0 0.0
        %2683 = vmatpush1.msra.mxu0 0.0
        %2684 = vmatprep.subr.mxu0 0.0
        %2685 = vmatpush1.msra.mxu0 0.0
        %2686 = vmatprep.subr.mxu0 0.0
        %2687 = vmatpush1.msra.mxu0 0.0
        %2688 = vmatprep.subr.mxu0 0.0
        %2689 = vmatpush1.msra.mxu0 0.0
        %2690 = vmatprep.subr.mxu0 0.0
        %2691 = vmatpush1.msra.mxu0 0.0
        %2692 = vmatprep.subr.mxu0 0.0
        %2693 = vmatpush1.msra.mxu0 0.0
        %2694 = vmatprep.subr.mxu0 0.0
        %2695 = vmatpush1.msra.mxu0 0.0
        %2696 = vmatprep.subr.mxu0 0.0
        %2697 = vmatpush1.msra.mxu0 0.0
        %2698 = vmatprep.subr.mxu0 0.0
        %2699 = vmatpush1.msra.mxu0 0.0
        %2700 = vmatprep.subr.mxu0 0.0
        %2701 = vmatpush1.msra.mxu0 0.0
        %2702 = vmatprep.subr.mxu0 0.0
        %2703 = vmatpush1.msra.mxu0 0.0
        %2704 = vmatprep.subr.mxu0 0.0
        %2705 = vmatpush1.msra.mxu0 0.0
        %2706 = vmatprep.subr.mxu0 0.0
        %2707 = vmatpush1.msra.mxu0 0.0
        %2708 = vmatprep.subr.mxu0 0.0
        %2709 = vmatpush1.msra.mxu0 0.0
        %2710 = vmatprep.subr.mxu0 0.0
        %2711 = vmatpush1.msra.mxu0 0.0
        %2712 = vmatprep.subr.mxu0 0.0
        %2713 = vmatpush1.msra.mxu0 0.0
        %2714 = vmatprep.subr.mxu0 0.0
        %2715 = vmatpush1.msra.mxu0 0.0
        %2716 = vmatprep.subr.mxu0 0.0
        %2717 = vmatpush1.msra.mxu0 0.0
        %2718 = vmatprep.subr.mxu0 0.0
        %2719 = vmatpush1.msra.mxu0 0.0
        %2720 = vmatprep.subr.mxu0 0.0
        %2721 = vmatpush1.msra.mxu0 0.0
        %2722 = vmatprep.subr.mxu0 0.0
        %2723 = vmatpush1.msra.mxu0 0.0
        %2724 = vmatprep.subr.mxu0 0.0
        %2725 = vmatpush1.msra.mxu0 0.0
        %2726 = vmatprep.mubr.f32.mxu0 0.0
        %2727 = vmatmul.mubr.f32.gmra.mrb[0].mxu0 %v2660
        %v2728 = vpop.f32.mrb[0].mxu0
        %v2729 = vadd.f32 0.0, %v2728
        %v2730 = vpop.f32.mrb[0].mxu0
        %2731 = vdwg.mxu0
        %v2733 = vrot.slane %v2729, 1
        %2734 = vrot.lane.b32.xlu0 %v2733, 32
        %v2735 = vpop.permute.xlu0 %2734
        %v2737 = vrot.slane %v2729, 2
        %2738 = vrot.lane.b32.xlu0 %v2737, 64
        %v2739 = vpop.permute.xlu0 %2738
        %v2741 = vrot.slane %v2729, 3
        %2742 = vrot.lane.b32.xlu0 %v2741, 96
        %v2743 = vpop.permute.xlu0 %2742
        %v2745 = vrot.slane %v2729, 4
        %v2747 = vrot.slane %v2729, 5
        %2748 = vrot.lane.b32.xlu0 %v2747, 32
        %v2749 = vpop.permute.xlu0 %2748
        %v2751 = vrot.slane %v2729, 6
        %2752 = vrot.lane.b32.xlu0 %v2751, 64
        %v2753 = vpop.permute.xlu0 %2752
        %v2755 = vrot.slane %v2729, 7
        %2756 = vrot.lane.b32.xlu0 %v2755, 96
        %v2757 = vpop.permute.xlu0 %2756
        %v2759 = vsel %vm927, %v2729, %v2735
        %v2760 = vsel %vm936, %v2759, %v2739
        %v2761 = vsel %vm1161, %v2760, %v2743
        %v2762 = vsel %vm927, %v2745, %v2749
        %v2763 = vsel %vm936, %v2762, %v2753
        %v2764 = vsel %vm1161, %v2763, %v2757
        %v2767 = vcombine.low %v2761, %v2764
        %v2769 = vunpack.c.l.s4 1966171168
        %v2770 = vunpack.c.0.s8 %v2769
        %v2771 = vlaneseq
        %v2772 = vshrl.u32 %v2771, 7
        %v2773 = vsub.s32 %v2770, %v2772
        %v2774 = vrot.slane %v2767, %v2773
        %v2776 = vunpack.c.l.s4 1966171168
        %v2777 = vunpack.c.0.s8 %v2776
        %v2778 = vlaneseq
        %v2779 = vshrl.u32 %v2778, 7
        %v2780 = vsub.s32 %v2777, %v2779
        %v2781 = vrot.slane %v2774, %v2780
        %s2783 = scalar_lea.vmem [#allocation3], 7
        %2784 = vst.msk [vmem:[%s2783] ss:$8 sm:$0x3] %vm1187, %v2781
        %2785 = vst.msk [vmem:[%s2783] ss:$8 sm:$0x0] %vm1187, %v2781
        %v2786 = vld [vmem:[#allocation3] sm:$0xff]
        %v2787 = vld [vmem:[#allocation3 + $0x8] sm:$0xff]
        %v2788 = vld [vmem:[#allocation7] sm:$0xff]
        %v2789 = vld [vmem:[#allocation7 + $0x8] sm:$0xff]
        %v2790 = vld [vmem:[#allocation7 + $0x10] sm:$0xff]
        %v2791 = vld [vmem:[#allocation7 + $0x18] sm:$0xff]
        %v2792 = vld [vmem:[#allocation7 + $0x20] sm:$0xff]
        %v2793 = vld [vmem:[#allocation7 + $0x28] sm:$0xff]
        %v2794 = vld [vmem:[#allocation7 + $0x30] sm:$0xff]
        %v2795 = vld [vmem:[#allocation7 + $0x38] sm:$0xff]
        %v2796 = vld [vmem:[#allocation7 + $0x40] sm:$0xff]
        %v2797 = vld [vmem:[#allocation7 + $0x48] sm:$0xff]
        %v2798 = vld [vmem:[#allocation7 + $0x50] sm:$0xff]
        %v2799 = vld [vmem:[#allocation7 + $0x58] sm:$0xff]
        %v2800 = vld [vmem:[#allocation7 + $0x60] sm:$0xff]
        %v2801 = vld [vmem:[#allocation7 + $0x68] sm:$0xff]
        %v2802 = vld [vmem:[#allocation7 + $0x70] sm:$0xff]
        %v2803 = vld [vmem:[#allocation7 + $0x78] sm:$0xff]
        %v2804 = vld [vmem:[#allocation7 + $0x80] sm:$0xff]
        %v2805 = vld [vmem:[#allocation7 + $0x88] sm:$0xff]
        %v2806 = vld [vmem:[#allocation7 + $0x90] sm:$0xff]
        %v2807 = vld [vmem:[#allocation7 + $0x98] sm:$0xff]
        %v2808 = vld [vmem:[#allocation7 + $0xa0] sm:$0xff]
        %v2809 = vld [vmem:[#allocation7 + $0xa8] sm:$0xff]
        %v2810 = vld [vmem:[#allocation7 + $0xb0] sm:$0xff]
        %v2811 = vld [vmem:[#allocation7 + $0xb8] sm:$0xff]
        %v2812 = vld [vmem:[#allocation7 + $0xc0] sm:$0xff]
        %v2813 = vld [vmem:[#allocation7 + $0xc8] sm:$0xff]
        %v2814 = vld [vmem:[#allocation7 + $0xd0] sm:$0xff]
        %v2815 = vld [vmem:[#allocation7 + $0xd8] sm:$0xff]
        %v2816 = vld [vmem:[#allocation7 + $0xe0] sm:$0xff]
        %v2817 = vld [vmem:[#allocation7 + $0xe8] sm:$0xff]
        %v2818 = vld [vmem:[#allocation7 + $0xf0] sm:$0xff]
        %v2819 = vld [vmem:[#allocation7 + $0xf8] sm:$0xff]
        %v2820 = vld [vmem:[#allocation7 + $0x100] sm:$0xff]
        %v2821 = vld [vmem:[#allocation7 + $0x108] sm:$0xff]
        %v2822 = vld [vmem:[#allocation7 + $0x110] sm:$0xff]
        %v2823 = vld [vmem:[#allocation7 + $0x118] sm:$0xff]
        %v2824 = vld [vmem:[#allocation7 + $0x120] sm:$0xff]
        %v2825 = vld [vmem:[#allocation7 + $0x128] sm:$0xff]
        %v2826 = vld [vmem:[#allocation7 + $0x130] sm:$0xff]
        %v2827 = vld [vmem:[#allocation7 + $0x138] sm:$0xff]
        %v2828 = vld [vmem:[#allocation7 + $0x140] sm:$0xff]
        %v2829 = vld [vmem:[#allocation7 + $0x148] sm:$0xff]
        %v2830 = vld [vmem:[#allocation7 + $0x150] sm:$0xff]
        %v2831 = vld [vmem:[#allocation7 + $0x158] sm:$0xff]
        %v2832 = vld [vmem:[#allocation7 + $0x160] sm:$0xff]
        %v2833 = vld [vmem:[#allocation7 + $0x168] sm:$0xff]
        %v2834 = vld [vmem:[#allocation7 + $0x170] sm:$0xff]
        %v2835 = vld [vmem:[#allocation7 + $0x178] sm:$0xff]
        %v2836 = vld [vmem:[#allocation7 + $0x180] sm:$0xff]
        %v2837 = vld [vmem:[#allocation7 + $0x188] sm:$0xff]
        %v2838 = vld [vmem:[#allocation7 + $0x190] sm:$0xff]
        %v2839 = vld [vmem:[#allocation7 + $0x198] sm:$0xff]
        %v2840 = vld [vmem:[#allocation7 + $0x1a0] sm:$0xff]
        %v2841 = vld [vmem:[#allocation7 + $0x1a8] sm:$0xff]
        %v2842 = vld [vmem:[#allocation7 + $0x1b0] sm:$0xff]
        %v2843 = vld [vmem:[#allocation7 + $0x1b8] sm:$0xff]
        %v2844 = vld [vmem:[#allocation7 + $0x1c0] sm:$0xff]
        %v2845 = vld [vmem:[#allocation7 + $0x1c8] sm:$0xff]
        %v2846 = vld [vmem:[#allocation7 + $0x1d0] sm:$0xff]
        %v2847 = vld [vmem:[#allocation7 + $0x1d8] sm:$0xff]
        %v2848 = vld [vmem:[#allocation7 + $0x1e0] sm:$0xff]
        %v2849 = vld [vmem:[#allocation7 + $0x1e8] sm:$0xff]
        %v2850 = vld [vmem:[#allocation7 + $0x1f0] sm:$0xff]
        %v2851 = vld [vmem:[#allocation7 + $0x1f8] sm:$0xff]
        %v2853 = vlaneseq
        %v2854 = vshrl.u32 %v2853, 7
        %v2855 = vsub.s32 0, %v2854
        %v2856 = vrot.slane %v337, %v2855
        %v2857 = vlaneseq
        %v2858 = vshrl.u32 %v2857, 7
        %v2859 = vsub.s32 1, %v2858
        %v2860 = vrot.slane %v337, %v2859
        %2863 = vmatprep.subr.mxu0 %v2789
        %2864 = vmatpush1.msra.mxu0 %v2788
        %2865 = vmatprep.subr.mxu0 %v2791
        %2866 = vmatpush1.msra.mxu0 %v2790
        %2867 = vmatprep.subr.mxu0 %v2793
        %2868 = vmatpush1.msra.mxu0 %v2792
        %2869 = vmatprep.subr.mxu0 %v2795
        %2870 = vmatpush1.msra.mxu0 %v2794
        %2871 = vmatprep.subr.mxu0 %v2797
        %2872 = vmatpush1.msra.mxu0 %v2796
        %2873 = vmatprep.subr.mxu0 %v2799
        %2874 = vmatpush1.msra.mxu0 %v2798
        %2875 = vmatprep.subr.mxu0 %v2801
        %2876 = vmatpush1.msra.mxu0 %v2800
        %2877 = vmatprep.subr.mxu0 %v2803
        %2878 = vmatpush1.msra.mxu0 %v2802
        %2879 = vmatprep.subr.mxu0 %v2805
        %2880 = vmatpush1.msra.mxu0 %v2804
        %2881 = vmatprep.subr.mxu0 %v2807
        %2882 = vmatpush1.msra.mxu0 %v2806
        %2883 = vmatprep.subr.mxu0 %v2809
        %2884 = vmatpush1.msra.mxu0 %v2808
        %2885 = vmatprep.subr.mxu0 %v2811
        %2886 = vmatpush1.msra.mxu0 %v2810
        %2887 = vmatprep.subr.mxu0 %v2813
        %2888 = vmatpush1.msra.mxu0 %v2812
        %2889 = vmatprep.subr.mxu0 %v2815
        %2890 = vmatpush1.msra.mxu0 %v2814
        %2891 = vmatprep.subr.mxu0 %v2817
        %2892 = vmatpush1.msra.mxu0 %v2816
        %2893 = vmatprep.subr.mxu0 %v2819
        %2894 = vmatpush1.msra.mxu0 %v2818
        %2895 = vmatprep.subr.mxu0 %v2821
        %2896 = vmatpush1.msra.mxu0 %v2820
        %2897 = vmatprep.subr.mxu0 %v2823
        %2898 = vmatpush1.msra.mxu0 %v2822
        %2899 = vmatprep.subr.mxu0 %v2825
        %2900 = vmatpush1.msra.mxu0 %v2824
        %2901 = vmatprep.subr.mxu0 %v2827
        %2902 = vmatpush1.msra.mxu0 %v2826
        %2903 = vmatprep.subr.mxu0 %v2829
        %2904 = vmatpush1.msra.mxu0 %v2828
        %2905 = vmatprep.subr.mxu0 %v2831
        %2906 = vmatpush1.msra.mxu0 %v2830
        %2907 = vmatprep.subr.mxu0 %v2833
        %2908 = vmatpush1.msra.mxu0 %v2832
        %2909 = vmatprep.subr.mxu0 %v2835
        %2910 = vmatpush1.msra.mxu0 %v2834
        %2911 = vmatprep.subr.mxu0 %v2837
        %2912 = vmatpush1.msra.mxu0 %v2836
        %2913 = vmatprep.subr.mxu0 %v2839
        %2914 = vmatpush1.msra.mxu0 %v2838
        %2915 = vmatprep.subr.mxu0 %v2841
        %2916 = vmatpush1.msra.mxu0 %v2840
        %2917 = vmatprep.subr.mxu0 %v2843
        %2918 = vmatpush1.msra.mxu0 %v2842
        %2919 = vmatprep.subr.mxu0 %v2845
        %2920 = vmatpush1.msra.mxu0 %v2844
        %2921 = vmatprep.subr.mxu0 %v2847
        %2922 = vmatpush1.msra.mxu0 %v2846
        %2923 = vmatprep.subr.mxu0 %v2849
        %2924 = vmatpush1.msra.mxu0 %v2848
        %2925 = vmatprep.subr.mxu0 %v2851
        %2926 = vmatpush1.msra.mxu0 %v2850
        %2927 = vmatprep.mubr.f32.mxu0 %v2787
        %2928 = vmatmul.mubr.f32.gmra.mrb[0].mxu0 %v2786
        %v2929 = vpop.f32.mrb[0].mxu0
        %v2930 = vadd.f32 %v2856, %v2929
        %v2931 = vpop.f32.mrb[0].mxu0
        %v2932 = vadd.f32 %v2860, %v2931
        %2933 = vdwg.mxu0
        %v2934 = vadd.f32 %v2930, %v480
        %v2935 = vadd.f32 %v2932, %v481
        %v2936 = vadd.f32 %v2934, %v2935
        %2937 = vadd.xlane.f32.xlu0 %v2936
        %v2938 = vpop.xlane.xlu0 %2937
        %v2939 = vmul.f32 %v2938, %v436
        %v2940 = vsub.f32 %v2934, %v2939
        %v2941 = vsub.f32 %v2935, %v2939
        %v2942 = vmul.f32 %v2940, %v2940
        %v2943 = vmul.f32 %v2941, %v2941
        %v2944 = vadd.f32 %v2942, %v2943
        %2945 = vadd.xlane.f32.xlu0 %v2944
        %v2946 = vpop.xlane.xlu0 %2945
        %v2947 = vmul.f32 %v2946, %v436
        %v2948 = vadd.f32 %v2947, 1e-05
        %v2949 = vrsqrt.pop %v2948
        %v2950 = vmul.f32 %v2940, %v2949
        %v2951 = vmul.f32 %v2941, %v2949
        %v2953 = vlaneseq
        %v2954 = vshrl.u32 %v2953, 7
        %v2955 = vsub.s32 0, %v2954
        %v2956 = vrot.slane %v339, %v2955
        %v2957 = vlaneseq
        %v2958 = vshrl.u32 %v2957, 7
        %v2959 = vsub.s32 1, %v2958
        %v2960 = vrot.slane %v339, %v2959
        %v2963 = vmul.f32 %v2950, %v2956
        %v2964 = vmul.f32 %v2951, %v2960
        %v2966 = vlaneseq
        %v2967 = vshrl.u32 %v2966, 7
        %v2968 = vsub.s32 0, %v2967
        %v2969 = vrot.slane %v341, %v2968
        %v2970 = vlaneseq
        %v2971 = vshrl.u32 %v2970, 7
        %v2972 = vsub.s32 1, %v2971
        %v2973 = vrot.slane %v341, %v2972
        %v2976 = vadd.f32 %v2963, %v2969
        %v2977 = vadd.f32 %v2964, %v2973
        %v2978 = vld [vmem:[%s4] sm:$0xff]
        %v2979 = vld [vmem:[%s4 + $0x8] sm:$0xff]
        %v2980 = vld [vmem:[%s4 + $0x10] sm:$0xff]
        %v2981 = vld [vmem:[%s4 + $0x18] sm:$0xff]
        %v2982 = vld [vmem:[%s4 + $0x20] sm:$0xff]
        %v2983 = vld [vmem:[%s4 + $0x28] sm:$0xff]
        %v2984 = vld [vmem:[%s4 + $0x30] sm:$0xff]
        %v2985 = vld [vmem:[%s4 + $0x38] sm:$0xff]
        %v2986 = vld [vmem:[%s4 + $0x40] sm:$0xff]
        %v2987 = vld [vmem:[%s4 + $0x48] sm:$0xff]
        %v2988 = vld [vmem:[%s4 + $0x50] sm:$0xff]
        %v2989 = vld [vmem:[%s4 + $0x58] sm:$0xff]
        %v2990 = vld [vmem:[%s4 + $0x60] sm:$0xff]
        %v2991 = vld [vmem:[%s4 + $0x68] sm:$0xff]
        %v2992 = vld [vmem:[%s4 + $0x70] sm:$0xff]
        %v2993 = vld [vmem:[%s4 + $0x78] sm:$0xff]
        %v2994 = vld [vmem:[%s4 + $0x80] sm:$0xff]
        %v2995 = vld [vmem:[%s4 + $0x88] sm:$0xff]
        %v2996 = vld [vmem:[%s4 + $0x90] sm:$0xff]
        %v2997 = vld [vmem:[%s4 + $0x98] sm:$0xff]
        %v2998 = vld [vmem:[%s4 + $0xa0] sm:$0xff]
        %v2999 = vld [vmem:[%s4 + $0xa8] sm:$0xff]
        %v3000 = vld [vmem:[%s4 + $0xb0] sm:$0xff]
        %v3001 = vld [vmem:[%s4 + $0xb8] sm:$0xff]
        %v3002 = vld [vmem:[%s4 + $0xc0] sm:$0xff]
        %v3003 = vld [vmem:[%s4 + $0xc8] sm:$0xff]
        %v3004 = vld [vmem:[%s4 + $0xd0] sm:$0xff]
        %v3005 = vld [vmem:[%s4 + $0xd8] sm:$0xff]
        %v3006 = vld [vmem:[%s4 + $0xe0] sm:$0xff]
        %v3007 = vld [vmem:[%s4 + $0xe8] sm:$0xff]
        %v3008 = vld [vmem:[%s4 + $0xf0] sm:$0xff]
        %v3009 = vld [vmem:[%s4 + $0xf8] sm:$0xff]
        %v3010 = vld [vmem:[%s7] sm:$0x1]
        %v3012 = vlaneseq
        %v3013 = vshrl.u32 %v3012, 7
        %v3014 = vsub.s32 0, %v3013
        %v3015 = vrot.slane %v3010, %v3014
        %3017 = vmatprep.subr.mxu0 0.0
        %3018 = vmatpush1.msra.mxu0 %v2978
        %3019 = vmatprep.subr.mxu0 0.0
        %3020 = vmatpush1.msra.mxu0 %v2979
        %3021 = vmatprep.subr.mxu0 0.0
        %3022 = vmatpush1.msra.mxu0 %v2980
        %3023 = vmatprep.subr.mxu0 0.0
        %3024 = vmatpush1.msra.mxu0 %v2981
        %3025 = vmatprep.subr.mxu0 0.0
        %3026 = vmatpush1.msra.mxu0 %v2982
        %3027 = vmatprep.subr.mxu0 0.0
        %3028 = vmatpush1.msra.mxu0 %v2983
        %3029 = vmatprep.subr.mxu0 0.0
        %3030 = vmatpush1.msra.mxu0 %v2984
        %3031 = vmatprep.subr.mxu0 0.0
        %3032 = vmatpush1.msra.mxu0 %v2985
        %3033 = vmatprep.subr.mxu0 0.0
        %3034 = vmatpush1.msra.mxu0 %v2986
        %3035 = vmatprep.subr.mxu0 0.0
        %3036 = vmatpush1.msra.mxu0 %v2987
        %3037 = vmatprep.subr.mxu0 0.0
        %3038 = vmatpush1.msra.mxu0 %v2988
        %3039 = vmatprep.subr.mxu0 0.0
        %3040 = vmatpush1.msra.mxu0 %v2989
        %3041 = vmatprep.subr.mxu0 0.0
        %3042 = vmatpush1.msra.mxu0 %v2990
        %3043 = vmatprep.subr.mxu0 0.0
        %3044 = vmatpush1.msra.mxu0 %v2991
        %3045 = vmatprep.subr.mxu0 0.0
        %3046 = vmatpush1.msra.mxu0 %v2992
        %3047 = vmatprep.subr.mxu0 0.0
        %3048 = vmatpush1.msra.mxu0 %v2993
        %3049 = vmatprep.subr.mxu0 0.0
        %3050 = vmatpush1.msra.mxu0 %v2994
        %3051 = vmatprep.subr.mxu0 0.0
        %3052 = vmatpush1.msra.mxu0 %v2995
        %3053 = vmatprep.subr.mxu0 0.0
        %3054 = vmatpush1.msra.mxu0 %v2996
        %3055 = vmatprep.subr.mxu0 0.0
        %3056 = vmatpush1.msra.mxu0 %v2997
        %3057 = vmatprep.subr.mxu0 0.0
        %3058 = vmatpush1.msra.mxu0 %v2998
        %3059 = vmatprep.subr.mxu0 0.0
        %3060 = vmatpush1.msra.mxu0 %v2999
        %3061 = vmatprep.subr.mxu0 0.0
        %3062 = vmatpush1.msra.mxu0 %v3000
        %3063 = vmatprep.subr.mxu0 0.0
        %3064 = vmatpush1.msra.mxu0 %v3001
        %3065 = vmatprep.subr.mxu0 0.0
        %3066 = vmatpush1.msra.mxu0 %v3002
        %3067 = vmatprep.subr.mxu0 0.0
        %3068 = vmatpush1.msra.mxu0 %v3003
        %3069 = vmatprep.subr.mxu0 0.0
        %3070 = vmatpush1.msra.mxu0 %v3004
        %3071 = vmatprep.subr.mxu0 0.0
        %3072 = vmatpush1.msra.mxu0 %v3005
        %3073 = vmatprep.subr.mxu0 0.0
        %3074 = vmatpush1.msra.mxu0 %v3006
        %3075 = vmatprep.subr.mxu0 0.0
        %3076 = vmatpush1.msra.mxu0 %v3007
        %3077 = vmatprep.subr.mxu0 0.0
        %3078 = vmatpush1.msra.mxu0 %v3008
        %3079 = vmatprep.subr.mxu0 0.0
        %3080 = vmatpush1.msra.mxu0 %v3009
        %3081 = vmatprep.mubr.f32.mxu0 %v2977
        %3082 = vmatmul.mubr.f32.gmra.mrb[0].mxu0 %v2976
        %v3083 = vpop.f32.mrb[0].mxu0
        %v3084 = vadd.f32 %v3015, %v3083
        %v3085 = vpop.f32.mrb[0].mxu0
        %3086 = vdwg.mxu0
        %vm3087 = vcmp.ge.f32.partialorder %v3084, 0.0
        %v3088 = vmul.f32 %v3084, 0.4
        %v3089 = vsel %vm3087, %v3084, %v3088
        %3090 = vst.msk [vmem:[%s326] sm:$0xff] %vm927, %v3089
        %s3091 = sand.u32 %s205, 1
        %s3092 = scalar_lea.sflag [#allocation6], %s3091
        %s3093 = sand.u32 %s205, 1
        %s3094 = smul.addr %s3093, 8
        %s3095 = scalar_lea.vmem [#allocation9], %s3094
        // Predicated region
        $region61: #{tpu_custom_call.1} parent=51 // pred_check
          %p3096 = pneg %p215
        $region62: #{tpu_custom_call.1} parent=51 // pred_check_branch
          %3098 = sbr.rel (%p3096) target = $region64
        $region63: #{tpu_custom_call.1} parent=51 // pred_region
          %s3100 = ssub.s32 128, 128
          %3101 = vsyncadd %s3092, %s3100
          %s3102 = smul.addr %s24, 128
          %s3103 = scalar_lea.hbm %s8, %s3102
          %s3105 = sshll.u32 %s3095, 4
          %s3106 = int_to_ptr.vmem [resolvable:$true] %s3105
          %3108 = dma.vmem_to_hbm [thread:$0]  %s3106, 128, %s3103, %s3092
        $region64: #{tpu_custom_call.1} parent=51 // pred_fallthru
          _
      $region52: #{tpu_custom_call.1} parent=5 // pred_fallthru
        _
      %p3109 = scmp.le.s32.totalorder 2, %s19
      // Predicated region
      $region65: #{tpu_custom_call.1} parent=5 // pred_check
        %p3110 = pneg %p3109
      $region66: #{tpu_custom_call.1} parent=5 // pred_check_branch
        %3112 = sbr.rel (%p3110) target = $region68
      $region67: #{tpu_custom_call.1} parent=5 // pred_region
        %s3113 = ssub.s32 %s19, 2
        // Predicated region
        $region69: #{tpu_custom_call.1} parent=67 // pred_check
          %p3114 = pneg %p221
        $region70: #{tpu_custom_call.1} parent=67 // pred_check_branch
          %3116 = sbr.rel (%p3114) target = $region72
        $region71: #{tpu_custom_call.1} parent=67 // pred_region
          %s3117 = sand.u32 %s206, 1
          %s3118 = scalar_lea.sflag [#allocation6], %s3117
          %s3119 = sand.u32 %s206, 1
          %s3120 = smul.addr %s3119, 8
          %s3121 = scalar_lea.vmem [#allocation9], %s3120
          %3122 = dma.done %s3118, 128
        $region72: #{tpu_custom_call.1} parent=67 // pred_fallthru
          _
      $region68: #{tpu_custom_call.1} parent=5 // pred_fallthru
        _
    $region6: #{tpu_custom_call.1} parent=1 // loop_footer
      %s23 = sadd.s32 1, %s19
    $region7: #{tpu_custom_call.1} parent=1 // loop_footer_branch
      %18 = sbr.rel target = $region3
    $region8: #{tpu_custom_call.1} parent=1 // loop_exit
      _
    %3123 = vsyncpa [#allocation5], 1
    %s3124 = scalar_lea.sflag [#allocation5], 1
    %3125 = vsyncpa %s3124, 1
    %3126 = vsyncpa [#allocation8], 1
    %3127 = vsyncpa [#allocation6], 1
    %s3128 = scalar_lea.sflag [#allocation6], 1
    %3129 = vsyncpa %s3128, 1

</llo_original>
